<compile_context>
chip_gen: v7x
topology: tpu7x:2x2x1
jax: 0.10.0
libtpu: 0.0.40
codegen_flags: <defaults>
</compile_context>

<pallas_src>
import functools

import jax
import jax.numpy as jnp
from jax import lax
from jax.experimental import pallas as pl
from jax.experimental.pallas import tpu as pltpu

LEAKY_SLOPE = 0.01  # torch.nn.LeakyReLU default


def _round_up(x, m):
    return ((x + m - 1) // m) * m


def _extractor_kernel(x_ref, w_ref, b1_ref, b2_ref, b3_ref, out_ref, p_ref,
                      *, bt, s_pad, s_len, fp):
    n = bt * s_pad  # rows in this block = bt sequences x padded seq length

    # One fused conv matmul: (bt*s_pad, 768) x (768, 9*Fp), f32 accumulation,
    # written straight into the zero-tailed VMEM scratch.  Lane layout of the
    # result (tap-major):
    #   j=0: [c1 | c2 | c3]   j=1: [c1 | c2 | c3]   j=2: [c2 | c3]   j=3: [c3]
    p_ref[0:n, :] = jnp.dot(x_ref[...], w_ref[...],
                            preferred_element_type=jnp.float32)
    p_ref[n:n + 8, :] = jnp.zeros((8, 9 * fp), jnp.float32)

    # Tap realignment on the narrow f32 result: row i of the j-shifted slab is
    # p[i + j].  Rows that cross a sequence boundary (or read the zero tail)
    # land at window positions pos >= s_len - k + 1 and are killed by the
    # -inf validity mask below (mask-before-max ordering keeps this exact).
    r0 = p_ref[0:n, 0:3 * fp]
    r1 = p_ref[1:n + 1, 3 * fp:6 * fp]
    r2 = p_ref[2:n + 2, 6 * fp:8 * fp]
    r3 = p_ref[3:n + 3, 8 * fp:9 * fp]

    conv1 = r0[:, 0:fp] + r1[:, 0:fp] + b1_ref[...]
    conv2 = r0[:, fp:2 * fp] + r1[:, fp:2 * fp] + r2[:, 0:fp] + b2_ref[...]
    conv3 = (r0[:, 2 * fp:3 * fp] + r1[:, 2 * fp:3 * fp]
             + r2[:, fp:2 * fp] + r3 + b3_ref[...])

    # LeakyReLU + masked max over the valid window starts of each sequence.
    # One small (1, s_pad, Fp) position iota, broadcast against every slab.
    pos = lax.broadcasted_iota(jnp.int32, (1, s_pad, fp), 1)

    def pool(c, k):
        c = jnp.where(c >= 0.0, c, LEAKY_SLOPE * c)              # LeakyReLU
        c = c.reshape(bt, s_pad, fp)                             # tile-aligned
        c = jnp.where(pos < (s_len - k + 1), c, -jnp.inf)        # valid starts
        return jnp.max(c, axis=1)                                # (bt, Fp)

    # Lane-dense (bt, 3*Fp) feature output; Linear + LogSoftmax run in XLA.
    out_ref[:, 0:fp] = pool(conv1, 2)
    out_ref[:, fp:2 * fp] = pool(conv2, 3)
    out_ref[:, 2 * fp:3 * fp] = pool(conv3, 4)


def pack_params(params, n_filter_padded=None):
    """Repack raw params into the padded, fused kernel layout.

    raw layout (PyTorch-equivalent):
      w_k: (k, 768, F) with w_k[j, e, f] == conv_k.weight[f, 0, j, e]
      b_k: (F,)         wl: (3F, 2) == linear.weight.T         bl: (2,)
    """
    E, F = params["w1"].shape[1], params["w1"].shape[2]
    fp = n_filter_padded or _round_up(F, 128)
    ws = {2: params["w1"], 3: params["w2"], 4: params["w3"]}
    pad_w = lambda w: jnp.pad(w, ((0, 0), (0, fp - F)))
    # Tap-major lane order: j=0:(k=2,3,4)  j=1:(2,3,4)  j=2:(3,4)  j=3:(4,)
    blocks = [pad_w(ws[k][j]) for j in range(4) for k in (2, 3, 4) if j < k]
    pad_b = lambda b: jnp.pad(b, (0, fp - F)).reshape(1, fp)
    wl = params["wl"]
    pad_wl = lambda i: jnp.pad(wl[i * F:(i + 1) * F], ((0, fp - F), (0, 0)))
    packed = dict(
        w_big=jnp.concatenate(blocks, axis=1),                   # (768, 9*Fp)
        b1=pad_b(params["b1"]), b2=pad_b(params["b2"]), b3=pad_b(params["b3"]),
        # Linear weight repacked to match the padded pooled-feature layout
        # (padded filter lanes pool to exactly 0 and hit zero rows here).
        wl_pad=jnp.concatenate([pad_wl(0), pad_wl(1), pad_wl(2)], axis=0),
        bl=params["bl"].reshape(1, 2),
    )
    return packed, fp


def extractor_cnn_forward(x, packed, fp, *, block_batch=None,
                          weight_dtype=jnp.bfloat16):
    """x: (B, S, 768) -> (B, 2) log-probabilities."""
    B, S, E = x.shape
    assert S >= 4, "need seq_len >= largest conv kernel (4)"
    s_pad = _round_up(S, 8)

    # --- batch-block selection --------------------------------------------
    auto = block_batch is None
    if auto:
        # Target ~512 MXU rows / step (256-deep MXU on v6e/v7x; v5e saturates
        # around 128-256 rows and the extra rows are harmless there).
        block_batch = max(8, _round_up(-(-512 // s_pad), 8))
    bt = max(8, _round_up(min(block_batch, _round_up(B, 8)), 8))
    b_pad = _round_up(B, bt)
    if auto and b_pad // bt < 2 and _round_up(B, 8) >= 16:
        # Keep >= 2 parallel grid steps when the batch allows it (v7x shards
        # the parallel grid axis across its 2 TensorCores).
        bt = max(8, _round_up(_round_up(B, 8) // 2, 8))
        b_pad = _round_up(B, bt)
    n = bt * s_pad

    if (b_pad, s_pad) != (B, S):
        x = jnp.pad(x, ((0, b_pad - B), (0, s_pad - S), (0, 0)))
    x_flat = x.reshape(b_pad * s_pad, E).astype(weight_dtype)
    w_big = packed["w_big"].astype(weight_dtype)

    kernel = functools.partial(_extractor_kernel, bt=bt, s_pad=s_pad,
                               s_len=S, fp=fp)
    # Constant index_map -> the block never changes: weights are fetched once
    # and stay VMEM resident across all grid steps.
    const = lambda shape: pl.BlockSpec(shape, lambda i: (0,) * len(shape))

    itemsize = jnp.finfo(weight_dtype).bits // 8
    vmem_est = (2 * n * E * itemsize            # x block (double buffered)
                + 2 * E * 9 * fp * itemsize     # fused conv weight slab
                + (n + 8) * 9 * fp * 4          # matmul-result scratch
                + 2 * n * 9 * fp * 4            # realigned tap slabs / temps
                + 3 * n * fp * 4                # conv1..3 slabs
                + 4 * bt * 3 * fp * 4)          # pooled features + out block
    # Cap well under v7x's 64 MiB physical VMEM; the default block needs far
    # less than the 32 MiB scoped default anyway.
    vmem_limit = int(min(max(32 << 20, int(1.2 * vmem_est)), 56 << 20))

    feats = pl.pallas_call(
        kernel,
        out_shape=jax.ShapeDtypeStruct((b_pad, 3 * fp), jnp.float32),
        grid_spec=pltpu.PrefetchScalarGridSpec(
            num_scalar_prefetch=0,
            grid=(b_pad // bt,),
            in_specs=[
                pl.BlockSpec((n, E), lambda i: (i, 0)),           # x block
                const((E, 9 * fp)),                               # fused conv W
                const((1, fp)), const((1, fp)), const((1, fp)),   # conv biases
            ],
            out_specs=pl.BlockSpec((bt, 3 * fp), lambda i: (i, 0)),
            scratch_shapes=[pltpu.VMEM((n + 8, 9 * fp), jnp.float32)],
        ),
        compiler_params=pltpu.CompilerParams(
            dimension_semantics=("parallel",),
            vmem_limit_bytes=vmem_limit),
    )(x_flat, w_big, packed["b1"], packed["b2"], packed["b3"])

    # Tiny epilogue in XLA: Linear(3F -> 2) + LogSoftmax over the 2 classes
    # (torch LogSoftmax(dim=0) on the squeezed per-sample vector).
    logits = feats[:B] @ packed["wl_pad"] + packed["bl"]          # (B, 2)
    return logits - jax.nn.logsumexp(logits, axis=1, keepdims=True)


def make_params(key, n_filter, embed):
    ks = jax.random.split(key, 8)
    s = 0.05
    return {
        "w1": s * jax.random.normal(ks[0], (2, embed, n_filter), jnp.float32),
        "b1": s * jax.random.normal(ks[1], (n_filter,), jnp.float32),
        "w2": s * jax.random.normal(ks[2], (3, embed, n_filter), jnp.float32),
        "b2": s * jax.random.normal(ks[3], (n_filter,), jnp.float32),
        "w3": s * jax.random.normal(ks[4], (4, embed, n_filter), jnp.float32),
        "b3": s * jax.random.normal(ks[5], (n_filter,), jnp.float32),
        "wl": s * jax.random.normal(ks[6], (3 * n_filter, 2), jnp.float32),
        "bl": s * jax.random.normal(ks[7], (2,), jnp.float32),
    }


def reference_forward(x, p):
    """Pure-JAX reference matching the PyTorch module semantics."""
    def conv_pool(xi, w, b):
        k = w.shape[0]
        L = xi.shape[0] - k + 1
        win = jnp.stack([xi[j:j + L] for j in range(k)], axis=0)   # (k, L, E)
        out = jnp.einsum("jle,jef->lf", win, w) + b                # (L, F)
        out = jnp.where(out >= 0.0, out, LEAKY_SLOPE * out)
        return out.max(axis=0)                                     # (F,)

    outs = []
    for i in range(x.shape[0]):
        xi = x[i]
        feats = jnp.concatenate([conv_pool(xi, p["w1"], p["b1"]),
                                 conv_pool(xi, p["w2"], p["b2"]),
                                 conv_pool(xi, p["w3"], p["b3"])])
        logits = feats @ p["wl"] + p["bl"]
        outs.append(logits - jax.nn.logsumexp(logits))
    return jnp.stack(outs, axis=0)


if __name__ == "__main__":
    # batch, seq_len, embedding (fixed at 768 by the module), n_filter.
    B, S, E, F = 10, 8, 768, 100

    key = jax.random.PRNGKey(0)
    k_x, k_p = jax.random.split(key)
    # PyTorch consumes x[i].unsqueeze(0) of shape (1, 1, S, 768); here x is the
    # channel-squeezed (B, S, 768) tensor.
    x = jax.random.normal(k_x, (B, S, E), jnp.float32)
    raw = make_params(k_p, F, E)
    packed, fp = pack_params(raw)
    ref = reference_forward(x, raw)

    # f32 operand path: exactness check of the fused conv / pooling logic.
    out_f32 = extractor_cnn_forward(x, packed, fp, weight_dtype=jnp.float32)
    out_f32 = jax.block_until_ready(out_f32)
    assert out_f32.shape == (B, 2)
    assert jnp.allclose(out_f32, ref, atol=2e-4, rtol=2e-4), (out_f32, ref)

    # Default path: bf16 storage for x / conv weights, f32 MXU accumulation
    # (recommended on v5e / v6e / v7x alike).
    out = extractor_cnn_forward(x, packed, fp)
    out = jax.block_until_ready(out)
    assert out.shape == (B, 2)
    assert jnp.allclose(out, ref, atol=1e-1, rtol=1e-1), (out, ref)

    print("KERNEL_OK")
</pallas_src>

<mosaic_0001>
module attributes {stable_mosaic.version = 11 : i64} {
  func.func @_extractor_kernel(%arg0: i32, %arg1: memref<64x768xf32, #tpu.memory_space<vmem>>, %arg2: memref<768x1152xf32, #tpu.memory_space<vmem>>, %arg3: memref<1x128xf32, #tpu.memory_space<vmem>>, %arg4: memref<1x128xf32, #tpu.memory_space<vmem>>, %arg5: memref<1x128xf32, #tpu.memory_space<vmem>>, %arg6: memref<8x384xf32, #tpu.memory_space<vmem>>, %arg7: memref<72x1152xf32, #tpu.memory_space<vmem>>) attributes {dimension_semantics = [#tpu.dimension_semantics<parallel>], iteration_bounds = array<i64: 2>, scalar_prefetch = 0 : i64, scratch_operands = 1 : i64, tpu.core_type = #tpu.core_type<tc>, window_params = [{transform_indices = @transform_0, window_bounds = array<i64: 64, 768>}, {pipeline_mode = #tpu.pipeline_mode<synchronous>, transform_indices = @transform_1, window_bounds = array<i64: 768, 1152>}, {pipeline_mode = #tpu.pipeline_mode<synchronous>, transform_indices = @transform_2, window_bounds = array<i64: 1, 128>}, {pipeline_mode = #tpu.pipeline_mode<synchronous>, transform_indices = @transform_3, window_bounds = array<i64: 1, 128>}, {pipeline_mode = #tpu.pipeline_mode<synchronous>, transform_indices = @transform_4, window_bounds = array<i64: 1, 128>}, {transform_indices = @transform_5, window_bounds = array<i64: 8, 384>}]} {
    %c0 = arith.constant 0 : index
    %c0_0 = arith.constant 0 : index
    %0 = vector.load %arg1[%c0, %c0_0] : memref<64x768xf32, #tpu.memory_space<vmem>>, vector<64x768xf32>
    %c0_1 = arith.constant 0 : index
    %c0_2 = arith.constant 0 : index
    %1 = vector.load %arg2[%c0_1, %c0_2] : memref<768x1152xf32, #tpu.memory_space<vmem>>, vector<768x1152xf32>
    %cst = arith.constant dense<0.000000e+00> : vector<64x1152xf32>
    %2 = tpu.matmul %0, %1, %cst {dimension_numbers = #tpu.dot_dimension_numbers<[1], [0], [0], [1], [0, 0, 1, 1], [], []>} : vector<64x768xf32>, vector<768x1152xf32>, vector<64x1152xf32> -> vector<64x1152xf32>
    %c0_3 = arith.constant 0 : index
    %c0_4 = arith.constant 0 : index
    %3 = vector.load %arg7[%c0_3, %c0_4] : memref<72x1152xf32, #tpu.memory_space<vmem>>, vector<64x1152xf32>
    tpu.vector_store %arg7[%c0_3, %c0_4], %2 {strides = array<i32>} : memref<72x1152xf32, #tpu.memory_space<vmem>>, vector<64x1152xf32>,
    %cst_5 = arith.constant 0.000000e+00 : f32
    %4 = vector.broadcast %cst_5 : f32 to vector<8x1152xf32>
    %c64 = arith.constant 64 : index
    %c0_6 = arith.constant 0 : index
    %5 = vector.load %arg7[%c64, %c0_6] : memref<72x1152xf32, #tpu.memory_space<vmem>>, vector<8x1152xf32>
    tpu.vector_store %arg7[%c64, %c0_6], %4 {strides = array<i32>} : memref<72x1152xf32, #tpu.memory_space<vmem>>, vector<8x1152xf32>,
    %c0_7 = arith.constant 0 : index
    %c0_8 = arith.constant 0 : index
    %6 = vector.load %arg7[%c0_7, %c0_8] : memref<72x1152xf32, #tpu.memory_space<vmem>>, vector<64x384xf32>
    %c1 = arith.constant 1 : index
    %c384 = arith.constant 384 : index
    %7 = vector.load %arg7[%c1, %c384] : memref<72x1152xf32, #tpu.memory_space<vmem>>, vector<64x384xf32>
    %c2 = arith.constant 2 : index
    %c768 = arith.constant 768 : index
    %8 = vector.load %arg7[%c2, %c768] : memref<72x1152xf32, #tpu.memory_space<vmem>>, vector<64x256xf32>
    %c3 = arith.constant 3 : index
    %c1024 = arith.constant 1024 : index
    %9 = vector.load %arg7[%c3, %c1024] : memref<72x1152xf32, #tpu.memory_space<vmem>>, vector<64x128xf32>
    %10 = vector.extract_strided_slice %6 {offsets = [0, 0], sizes = [64, 128], strides = [1, 1]} : vector<64x384xf32> to vector<64x128xf32>
    %11 = vector.extract_strided_slice %7 {offsets = [0, 0], sizes = [64, 128], strides = [1, 1]} : vector<64x384xf32> to vector<64x128xf32>
    %12 = arith.addf %10, %11 : vector<64x128xf32>
    %c0_9 = arith.constant 0 : index
    %c0_10 = arith.constant 0 : index
    %13 = vector.load %arg3[%c0_9, %c0_10] : memref<1x128xf32, #tpu.memory_space<vmem>>, vector<1x128xf32>
    %14 = vector.broadcast %13 : vector<1x128xf32> to vector<64x128xf32>
    %15 = arith.addf %12, %14 : vector<64x128xf32>
    %16 = vector.extract_strided_slice %6 {offsets = [0, 128], sizes = [64, 128], strides = [1, 1]} : vector<64x384xf32> to vector<64x128xf32>
    %17 = vector.extract_strided_slice %7 {offsets = [0, 128], sizes = [64, 128], strides = [1, 1]} : vector<64x384xf32> to vector<64x128xf32>
    %18 = arith.addf %16, %17 : vector<64x128xf32>
    %19 = vector.extract_strided_slice %8 {offsets = [0, 0], sizes = [64, 128], strides = [1, 1]} : vector<64x256xf32> to vector<64x128xf32>
    %20 = arith.addf %18, %19 : vector<64x128xf32>
    %c0_11 = arith.constant 0 : index
    %c0_12 = arith.constant 0 : index
    %21 = vector.load %arg4[%c0_11, %c0_12] : memref<1x128xf32, #tpu.memory_space<vmem>>, vector<1x128xf32>
    %22 = vector.broadcast %21 : vector<1x128xf32> to vector<64x128xf32>
    %23 = arith.addf %20, %22 : vector<64x128xf32>
    %24 = vector.extract_strided_slice %6 {offsets = [0, 256], sizes = [64, 128], strides = [1, 1]} : vector<64x384xf32> to vector<64x128xf32>
    %25 = vector.extract_strided_slice %7 {offsets = [0, 256], sizes = [64, 128], strides = [1, 1]} : vector<64x384xf32> to vector<64x128xf32>
    %26 = arith.addf %24, %25 : vector<64x128xf32>
    %27 = vector.extract_strided_slice %8 {offsets = [0, 128], sizes = [64, 128], strides = [1, 1]} : vector<64x256xf32> to vector<64x128xf32>
    %28 = arith.addf %26, %27 : vector<64x128xf32>
    %29 = arith.addf %28, %9 : vector<64x128xf32>
    %c0_13 = arith.constant 0 : index
    %c0_14 = arith.constant 0 : index
    %30 = vector.load %arg5[%c0_13, %c0_14] : memref<1x128xf32, #tpu.memory_space<vmem>>, vector<1x128xf32>
    %31 = vector.broadcast %30 : vector<1x128xf32> to vector<64x128xf32>
    %32 = arith.addf %29, %31 : vector<64x128xf32>
    %33 = tpu.iota {dimensions = array<i32: 1>} : vector<1x8x128xi32>
    %cst_15 = arith.constant 0.000000e+00 : f32
    %34 = vector.broadcast %cst_15 : f32 to vector<64x128xf32>
    %35 = arith.cmpf oge, %15, %34 : vector<64x128xf32>
    %cst_16 = arith.constant 0.00999999977 : f32
    %36 = vector.broadcast %cst_16 : f32 to vector<64x128xf32>
    %37 = arith.mulf %36, %15 : vector<64x128xf32>
    %38 = arith.select %35, %15, %37 : vector<64x128xi1>, vector<64x128xf32>
    %39 = vector.shape_cast %38 : vector<64x128xf32> to vector<8x8x128xf32>
    %c7_i32 = arith.constant 7 : i32
    %40 = vector.broadcast %c7_i32 : i32 to vector<1x8x128xi32>
    %41 = arith.cmpi slt, %33, %40 : vector<1x8x128xi32>
    %cst_17 = arith.constant 0xFF800000 : f32
    %42 = vector.shape_cast %41 : vector<1x8x128xi1> to vector<1x8x128xi1>
    %43 = vector.broadcast %42 : vector<1x8x128xi1> to vector<8x8x128xi1>
    %44 = vector.broadcast %cst_17 : f32 to vector<8x8x128xf32>
    %45 = arith.select %43, %39, %44 : vector<8x8x128xi1>, vector<8x8x128xf32>
    %cst_18 = arith.constant dense<0xFF800000> : vector<8x128xf32>
    %46 = vector.multi_reduction <maximumf>, %45, %cst_18 [1] : vector<8x8x128xf32> to vector<8x128xf32>
    %c0_19 = arith.constant 0 : index
    %c0_20 = arith.constant 0 : index
    %47 = vector.load %arg6[%c0_19, %c0_20] : memref<8x384xf32, #tpu.memory_space<vmem>>, vector<8x128xf32>
    tpu.vector_store %arg6[%c0_19, %c0_20], %46 {strides = array<i32>} : memref<8x384xf32, #tpu.memory_space<vmem>>, vector<8x128xf32>,
    %cst_21 = arith.constant 0.000000e+00 : f32
    %48 = vector.broadcast %cst_21 : f32 to vector<64x128xf32>
    %49 = arith.cmpf oge, %23, %48 : vector<64x128xf32>
    %cst_22 = arith.constant 0.00999999977 : f32
    %50 = vector.broadcast %cst_22 : f32 to vector<64x128xf32>
    %51 = arith.mulf %50, %23 : vector<64x128xf32>
    %52 = arith.select %49, %23, %51 : vector<64x128xi1>, vector<64x128xf32>
    %53 = vector.shape_cast %52 : vector<64x128xf32> to vector<8x8x128xf32>
    %c6_i32 = arith.constant 6 : i32
    %54 = vector.broadcast %c6_i32 : i32 to vector<1x8x128xi32>
    %55 = arith.cmpi slt, %33, %54 : vector<1x8x128xi32>
    %cst_23 = arith.constant 0xFF800000 : f32
    %56 = vector.shape_cast %55 : vector<1x8x128xi1> to vector<1x8x128xi1>
    %57 = vector.broadcast %56 : vector<1x8x128xi1> to vector<8x8x128xi1>
    %58 = vector.broadcast %cst_23 : f32 to vector<8x8x128xf32>
    %59 = arith.select %57, %53, %58 : vector<8x8x128xi1>, vector<8x8x128xf32>
    %cst_24 = arith.constant dense<0xFF800000> : vector<8x128xf32>
    %60 = vector.multi_reduction <maximumf>, %59, %cst_24 [1] : vector<8x8x128xf32> to vector<8x128xf32>
    %c0_25 = arith.constant 0 : index
    %c128 = arith.constant 128 : index
    %61 = vector.load %arg6[%c0_25, %c128] : memref<8x384xf32, #tpu.memory_space<vmem>>, vector<8x128xf32>
    tpu.vector_store %arg6[%c0_25, %c128], %60 {strides = array<i32>} : memref<8x384xf32, #tpu.memory_space<vmem>>, vector<8x128xf32>,
    %cst_26 = arith.constant 0.000000e+00 : f32
    %62 = vector.broadcast %cst_26 : f32 to vector<64x128xf32>
    %63 = arith.cmpf oge, %32, %62 : vector<64x128xf32>
    %cst_27 = arith.constant 0.00999999977 : f32
    %64 = vector.broadcast %cst_27 : f32 to vector<64x128xf32>
    %65 = arith.mulf %64, %32 : vector<64x128xf32>
    %66 = arith.select %63, %32, %65 : vector<64x128xi1>, vector<64x128xf32>
    %67 = vector.shape_cast %66 : vector<64x128xf32> to vector<8x8x128xf32>
    %c5_i32 = arith.constant 5 : i32
    %68 = vector.broadcast %c5_i32 : i32 to vector<1x8x128xi32>
    %69 = arith.cmpi slt, %33, %68 : vector<1x8x128xi32>
    %cst_28 = arith.constant 0xFF800000 : f32
    %70 = vector.shape_cast %69 : vector<1x8x128xi1> to vector<1x8x128xi1>
    %71 = vector.broadcast %70 : vector<1x8x128xi1> to vector<8x8x128xi1>
    %72 = vector.broadcast %cst_28 : f32 to vector<8x8x128xf32>
    %73 = arith.select %71, %67, %72 : vector<8x8x128xi1>, vector<8x8x128xf32>
    %cst_29 = arith.constant dense<0xFF800000> : vector<8x128xf32>
    %74 = vector.multi_reduction <maximumf>, %73, %cst_29 [1] : vector<8x8x128xf32> to vector<8x128xf32>
    %c0_30 = arith.constant 0 : index
    %c256 = arith.constant 256 : index
    %75 = vector.load %arg6[%c0_30, %c256] : memref<8x384xf32, #tpu.memory_space<vmem>>, vector<8x128xf32>
    tpu.vector_store %arg6[%c0_30, %c256], %74 {strides = array<i32>} : memref<8x384xf32, #tpu.memory_space<vmem>>, vector<8x128xf32>,
    return
  }
  func.func @transform_0(%arg0: i32) -> (i32, i32) {
    %c0_i32 = arith.constant 0 : i32
    %c0_i32_0 = arith.constant 0 : i32
    return %arg0, %c0_i32 : i32, i32
  }
  func.func @transform_1(%arg0: i32) -> (i32, i32) {
    %c0_i32 = arith.constant 0 : i32
    %c0_i32_0 = arith.constant 0 : i32
    %c0_i32_1 = arith.constant 0 : i32
    return %c0_i32, %c0_i32_0 : i32, i32
  }
  func.func @transform_2(%arg0: i32) -> (i32, i32) {
    %c0_i32 = arith.constant 0 : i32
    %c0_i32_0 = arith.constant 0 : i32
    %c0_i32_1 = arith.constant 0 : i32
    return %c0_i32, %c0_i32_0 : i32, i32
  }
  func.func @transform_3(%arg0: i32) -> (i32, i32) {
    %c0_i32 = arith.constant 0 : i32
    %c0_i32_0 = arith.constant 0 : i32
    %c0_i32_1 = arith.constant 0 : i32
    return %c0_i32, %c0_i32_0 : i32, i32
  }
  func.func @transform_4(%arg0: i32) -> (i32, i32) {
    %c0_i32 = arith.constant 0 : i32
    %c0_i32_0 = arith.constant 0 : i32
    %c0_i32_1 = arith.constant 0 : i32
    return %c0_i32, %c0_i32_0 : i32, i32
  }
  func.func @transform_5(%arg0: i32) -> (i32, i32) {
    %c0_i32 = arith.constant 0 : i32
    %c0_i32_0 = arith.constant 0 : i32
    return %arg0, %c0_i32 : i32, i32
  }
}

</mosaic_0001>

<llo_original>
// kernel: tpu_custom_call.1
$region0: #{tpu_custom_call.1}
  #allocation0 [shape = 'u32[]', space=smem, size = 0x4, offset = 0x4, fixed_abs, tag = 'smem constant byte address 0x4 - core index']
  #allocation1 [shape = 'u32[144,128]{1,0:T(1,128)}', space=vmem, size = 0x12000, scoped, tag = 'internal scratch']
  #allocation2 [shape = 'f32[72,1152]{1,0:T(8,128)}', space=vmem, size = 0x51000, scoped, tag = 'scratch operand']
  %s0 = inlined_call_operand.hbm [shape: f32[128,768], index: 0, kind: input, shape index: {}]
  %s1 = inlined_call_operand.hbm [shape: f32[768,1152], index: 1, kind: input, shape index: {}]
  %s2 = inlined_call_operand.hbm [shape: f32[1,128], index: 2, kind: input, shape index: {}]
  %s3 = inlined_call_operand.hbm [shape: f32[1,128], index: 3, kind: input, shape index: {}]
  %s4 = inlined_call_operand.hbm [shape: f32[1,128], index: 4, kind: input, shape index: {}]
  %s5 = inlined_call_operand.hbm [shape: f32[16,384], index: 5, kind: output, shape index: {}]
  %s6 = sld [smem:[#allocation0]]
  $region73: #{tpu_custom_call.1} parent=0
    _
  %s8 = ssub.s32 1, %s6
  %s9 = scalar_select 0, %s8, %s6
  $region1: #{tpu_custom_call.1} parent=0
    #allocation3 [shape = 'u8[393216]{0}', space=vmem, size = 0x60000, scoped, tag = 'input window, operand 0']
    #allocation4 [shape = 's32[2]{0}', space=sflag, size = 0x8, scoped, tag = 'scoped memory for tpu_custom_call.1']
    #allocation5 [shape = 's32[2]{0}', space=sflag, size = 0x8, scoped, tag = 'scoped memory for tpu_custom_call.1']
    #allocation6 [shape = 'u8[3538944]{0}', space=vmem, size = 0x360000, scoped, tag = 'input window, operand 1, single buffered']
    #allocation7 [shape = 's32[1]{0}', space=sflag, size = 0x4, scoped, tag = 'scoped memory for tpu_custom_call.1']
    #allocation8 [shape = 'u8[512]{0}', space=vmem, size = 0x400, scoped, tag = 'input window, operand 2, single buffered']
    #allocation9 [shape = 'u8[512]{0}', space=vmem, size = 0x400, scoped, tag = 'input window, operand 3, single buffered']
    #allocation10 [shape = 's32[1]{0}', space=sflag, size = 0x4, scoped, tag = 'scoped memory for tpu_custom_call.1']
    #allocation11 [shape = 'u8[512]{0}', space=vmem, size = 0x400, scoped, tag = 'input window, operand 4, single buffered']
    #allocation12 [shape = 'u8[24576]{0}', space=vmem, size = 0x6000, scoped, tag = 'output window, operand 0']
    %10 = vsyncpa [#allocation4], 0
    %s11 = scalar_lea.sflag [#allocation4], 1
    %12 = vsyncpa %s11, 0
    %13 = vsyncpa [#allocation7], 0
    %14 = vsyncpa [#allocation10], 0
    %15 = vsyncpa [#allocation5], 0
    %s16 = scalar_lea.sflag [#allocation5], 1
    %17 = vsyncpa %s16, 0
    loop: start=0, step=1, limit=4
    $region2: #{tpu_custom_call.1} parent=1 // loop_pre_header
      _
    $region3: #{tpu_custom_call.1} parent=1 // loop_header
      %s19 = sphi 0, %s23
      %p20 = scmp.ge.s32.totalorder %s19, 4
      %s29 = sphi 0, %s31
      %s32 = sphi 0, %s29
      %s33 = sphi 0, %s32
      %s49 = sphi 0, %s33
      %s53 = sphi 0, %s53
      %s55 = sphi 0, %s53
      %s56 = sphi 0, %s55
      %s70 = sphi 0, %s56
      %s74 = sphi 0, %s74
      %s76 = sphi 0, %s74
      %s77 = sphi 0, %s76
      %s91 = sphi 0, %s77
      %s95 = sphi 0, %s95
      %s97 = sphi 0, %s95
      %s98 = sphi 0, %s97
      %s112 = sphi 0, %s98
      %s116 = sphi 0, %s116
      %s118 = sphi 0, %s116
      %s119 = sphi 0, %s118
      %s133 = sphi 0, %s119
      %s139 = sphi 0, %s141
      %s142 = sphi 0, %s139
      %s143 = sphi 0, %s142
      %s159 = sphi 0, %s143
    $region4: #{tpu_custom_call.1} parent=1 // loop_header_branch
      %22 = sbr.rel (%p20) target = $region8
    $region5: #{tpu_custom_call.1} parent=1 // loop_body
      %s24 = ssub.s32 %s19, 1
      %s25 = ssub.s32 %s19, 2
      %s26 = sadd.s32 %s19, 1
      %s27 = ssub.s32 %s19, %s26
      %p28 = scmp.eq.s32.totalorder %s27, 0
      %s30 = sadd.s32 %s29, 1
      %s31 = scalar_select %p28, %s29, %s30
      %p34 = pneg %p28
      %p35 = scmp.eq.s32.totalorder %s19, 1
      %p36 = por %p34, %p35
      %p37 = scmp.ne.s32.totalorder %s29, %s32
      %p38 = scmp.eq.s32.totalorder %s19, 0
      %p39 = por %p37, %p38
      %p40 = scmp.ne.s32.totalorder %s29, %s32
      %p41 = scmp.eq.s32.totalorder %s24, 1
      %p42 = por %p40, %p41
      %p43 = scmp.ne.s32.totalorder %s32, %s33
      %p44 = scmp.eq.s32.totalorder %s24, 0
      %p45 = por %p43, %p44
      %p46 = scmp.ne.s32.totalorder %s32, %s33
      %p47 = scmp.eq.s32.totalorder %s25, 1
      %p48 = por %p46, %p47
      %p50 = scmp.ne.s32.totalorder %s33, %s49
      %p51 = scmp.eq.s32.totalorder %s25, 0
      %p52 = por %p50, %p51
      %s54 = sadd.s32 %s53, 1
      %p57 = scmp.eq.s32.totalorder %s19, 1
      %p58 = scmp.ne.s32.totalorder %s53, %s55
      %p59 = scmp.eq.s32.totalorder %s19, 0
      %p60 = por %p58, %p59
      %p61 = scmp.ne.s32.totalorder %s53, %s55
      %p62 = scmp.eq.s32.totalorder %s24, 1
      %p63 = por %p61, %p62
      %p64 = scmp.ne.s32.totalorder %s55, %s56
      %p65 = scmp.eq.s32.totalorder %s24, 0
      %p66 = por %p64, %p65
      %p67 = scmp.ne.s32.totalorder %s55, %s56
      %p68 = scmp.eq.s32.totalorder %s25, 1
      %p69 = por %p67, %p68
      %p71 = scmp.ne.s32.totalorder %s56, %s70
      %p72 = scmp.eq.s32.totalorder %s25, 0
      %p73 = por %p71, %p72
      %s75 = sadd.s32 %s74, 1
      %p78 = scmp.eq.s32.totalorder %s19, 1
      %p79 = scmp.ne.s32.totalorder %s74, %s76
      %p80 = scmp.eq.s32.totalorder %s19, 0
      %p81 = por %p79, %p80
      %p82 = scmp.ne.s32.totalorder %s74, %s76
      %p83 = scmp.eq.s32.totalorder %s24, 1
      %p84 = por %p82, %p83
      %p85 = scmp.ne.s32.totalorder %s76, %s77
      %p86 = scmp.eq.s32.totalorder %s24, 0
      %p87 = por %p85, %p86
      %p88 = scmp.ne.s32.totalorder %s76, %s77
      %p89 = scmp.eq.s32.totalorder %s25, 1
      %p90 = por %p88, %p89
      %p92 = scmp.ne.s32.totalorder %s77, %s91
      %p93 = scmp.eq.s32.totalorder %s25, 0
      %p94 = por %p92, %p93
      %s96 = sadd.s32 %s95, 1
      %p99 = scmp.eq.s32.totalorder %s19, 1
      %p100 = scmp.ne.s32.totalorder %s95, %s97
      %p101 = scmp.eq.s32.totalorder %s19, 0
      %p102 = por %p100, %p101
      %p103 = scmp.ne.s32.totalorder %s95, %s97
      %p104 = scmp.eq.s32.totalorder %s24, 1
      %p105 = por %p103, %p104
      %p106 = scmp.ne.s32.totalorder %s97, %s98
      %p107 = scmp.eq.s32.totalorder %s24, 0
      %p108 = por %p106, %p107
      %p109 = scmp.ne.s32.totalorder %s97, %s98
      %p110 = scmp.eq.s32.totalorder %s25, 1
      %p111 = por %p109, %p110
      %p113 = scmp.ne.s32.totalorder %s98, %s112
      %p114 = scmp.eq.s32.totalorder %s25, 0
      %p115 = por %p113, %p114
      %s117 = sadd.s32 %s116, 1
      %p120 = scmp.eq.s32.totalorder %s19, 1
      %p121 = scmp.ne.s32.totalorder %s116, %s118
      %p122 = scmp.eq.s32.totalorder %s19, 0
      %p123 = por %p121, %p122
      %p124 = scmp.ne.s32.totalorder %s116, %s118
      %p125 = scmp.eq.s32.totalorder %s24, 1
      %p126 = por %p124, %p125
      %p127 = scmp.ne.s32.totalorder %s118, %s119
      %p128 = scmp.eq.s32.totalorder %s24, 0
      %p129 = por %p127, %p128
      %p130 = scmp.ne.s32.totalorder %s118, %s119
      %p131 = scmp.eq.s32.totalorder %s25, 1
      %p132 = por %p130, %p131
      %p134 = scmp.ne.s32.totalorder %s119, %s133
      %p135 = scmp.eq.s32.totalorder %s25, 0
      %p136 = por %p134, %p135
      %s137 = ssub.s32 %s19, %s26
      %p138 = scmp.eq.s32.totalorder %s137, 0
      %s140 = sadd.s32 %s139, 1
      %s141 = scalar_select %p138, %s139, %s140
      %p144 = pneg %p138
      %p145 = scmp.eq.s32.totalorder %s19, 1
      %p146 = por %p144, %p145
      %p147 = scmp.ne.s32.totalorder %s139, %s142
      %p148 = scmp.eq.s32.totalorder %s19, 0
      %p149 = por %p147, %p148
      %p150 = scmp.ne.s32.totalorder %s139, %s142
      %p151 = scmp.eq.s32.totalorder %s24, 1
      %p152 = por %p150, %p151
      %p153 = scmp.ne.s32.totalorder %s142, %s143
      %p154 = scmp.eq.s32.totalorder %s24, 0
      %p155 = por %p153, %p154
      %p156 = scmp.ne.s32.totalorder %s142, %s143
      %p157 = scmp.eq.s32.totalorder %s25, 1
      %p158 = por %p156, %p157
      %p160 = scmp.ne.s32.totalorder %s143, %s159
      %p161 = scmp.eq.s32.totalorder %s25, 0
      %p162 = por %p160, %p161
      %p163 = scmp.le.s32.totalorder 1, %s19
      %p164 = scmp.lt.s32.totalorder %s19, 3
      %p165 = pnand %p163, %p164
      %p166 = pneg %p165
      // Predicated region
      $region9: #{tpu_custom_call.1} parent=5 // pred_check
        _
      $region10: #{tpu_custom_call.1} parent=5 // pred_check_branch
        %168 = sbr.rel (%p165) target = $region12
      $region11: #{tpu_custom_call.1} parent=5 // pred_region
        %s169 = ssub.s32 %s19, 1
        // Predicated region
        $region13: #{tpu_custom_call.1} parent=11 // pred_check
          %p170 = pneg %p66
        $region14: #{tpu_custom_call.1} parent=11 // pred_check_branch
          %172 = sbr.rel (%p170) target = $region16
        $region15: #{tpu_custom_call.1} parent=11 // pred_region
          %s174 = ssub.s32 110592, 110592
          %175 = vsyncadd [#allocation7], %s174
          %s176 = sshll.u32 [#allocation6], 4
          %s177 = int_to_ptr.vmem [resolvable:$true] %s176
          %182 = dma.hbm_to_vmem [thread:$0]  %s1, 110592, %s177, [#allocation7], 1152, 1152, 72
        $region16: #{tpu_custom_call.1} parent=11 // pred_fallthru
          _
        // Predicated region
        $region17: #{tpu_custom_call.1} parent=11 // pred_check
          %p183 = pneg %p87
        $region18: #{tpu_custom_call.1} parent=11 // pred_check_branch
          %185 = sbr.rel (%p183) target = $region20
        $region19: #{tpu_custom_call.1} parent=11 // pred_region
          %s187 = ssub.s32 16, 16
          %188 = vsyncadd [#allocation7], %s187
          %s190 = sshll.u32 [#allocation8], 4
          %s191 = int_to_ptr.vmem [resolvable:$true] %s190
          %193 = dma.hbm_to_vmem [thread:$0]  %s2, 16, %s191, [#allocation7]
        $region20: #{tpu_custom_call.1} parent=11 // pred_fallthru
          _
        // Predicated region
        $region21: #{tpu_custom_call.1} parent=11 // pred_check
          %p194 = pneg %p108
        $region22: #{tpu_custom_call.1} parent=11 // pred_check_branch
          %196 = sbr.rel (%p194) target = $region24
        $region23: #{tpu_custom_call.1} parent=11 // pred_region
          %s198 = ssub.s32 16, 16
          %199 = vsyncadd [#allocation10], %s198
          %s201 = sshll.u32 [#allocation9], 4
          %s202 = int_to_ptr.vmem [resolvable:$true] %s201
          %204 = dma.hbm_to_vmem [thread:$0]  %s3, 16, %s202, [#allocation10]
        $region24: #{tpu_custom_call.1} parent=11 // pred_fallthru
          _
        // Predicated region
        $region25: #{tpu_custom_call.1} parent=11 // pred_check
          %p205 = pneg %p129
        $region26: #{tpu_custom_call.1} parent=11 // pred_check_branch
          %207 = sbr.rel (%p205) target = $region28
        $region27: #{tpu_custom_call.1} parent=11 // pred_region
          %s209 = ssub.s32 16, 16
          %210 = vsyncadd [#allocation10], %s209
          %s212 = sshll.u32 [#allocation11], 4
          %s213 = int_to_ptr.vmem [resolvable:$true] %s212
          %215 = dma.hbm_to_vmem [thread:$0]  %s4, 16, %s213, [#allocation10]
        $region28: #{tpu_custom_call.1} parent=11 // pred_fallthru
          _
      $region12: #{tpu_custom_call.1} parent=5 // pred_fallthru
        _
      %p216 = scmp.lt.s32.totalorder %s19, 2
      // Predicated region
      $region29: #{tpu_custom_call.1} parent=5 // pred_check
        %p217 = pneg %p216
      $region30: #{tpu_custom_call.1} parent=5 // pred_check_branch
        %219 = sbr.rel (%p217) target = $region32
      $region31: #{tpu_custom_call.1} parent=5 // pred_region
        // Predicated region
        $region33: #{tpu_custom_call.1} parent=31 // pred_check
          %p220 = pneg %p39
        $region34: #{tpu_custom_call.1} parent=31 // pred_check_branch
          %222 = sbr.rel (%p220) target = $region36
        $region35: #{tpu_custom_call.1} parent=31 // pred_region
          %s223 = sand.u32 %s29, 1
          %s224 = scalar_lea.sflag [#allocation4], %s223
          %s225 = sand.u32 %s29, 1
          %s226 = smul.addr %s225, 384
          %s227 = scalar_lea.vmem [#allocation3], %s226
          %s228 = smul.u32 8, %s19
          %s230 = ssub.s32 6144, 6144
          %231 = vsyncadd %s224, %s230
          %s232 = smul.addr %s228, 6
          %s233 = smul.addr %s232, 128
          %s234 = scalar_lea.hbm %s0, %s233
          %s235 = sshll.u32 %s227, 4
          %s236 = int_to_ptr.vmem [resolvable:$true] %s235
          %241 = dma.hbm_to_vmem [thread:$0]  %s234, 6144, %s236, %s224, 768, 768, 48
        $region36: #{tpu_custom_call.1} parent=31 // pred_fallthru
          _
      $region32: #{tpu_custom_call.1} parent=5 // pred_fallthru
        _
      %p242 = scmp.le.s32.totalorder 1, %s19
      %p243 = scmp.lt.s32.totalorder %s19, 3
      %p244 = pnand %p242, %p243
      %p245 = pneg %p244
      // Predicated region
      $region37: #{tpu_custom_call.1} parent=5 // pred_check
        _
      $region38: #{tpu_custom_call.1} parent=5 // pred_check_branch
        %247 = sbr.rel (%p244) target = $region40
      $region39: #{tpu_custom_call.1} parent=5 // pred_region
        %s248 = ssub.s32 %s19, 1
        %s249 = sand.u32 %s32, 1
        %s250 = scalar_lea.sflag [#allocation4], %s249
        %s251 = sand.u32 %s32, 1
        %s252 = smul.addr %s251, 384
        %s253 = scalar_lea.vmem [#allocation3], %s252
        // Predicated region
        $region41: #{tpu_custom_call.1} parent=39 // pred_check
          %p254 = pneg %p45
        $region42: #{tpu_custom_call.1} parent=39 // pred_check_branch
          %256 = sbr.rel (%p254) target = $region44
        $region43: #{tpu_custom_call.1} parent=39 // pred_region
          %257 = dma.done %s250, 6144
        $region44: #{tpu_custom_call.1} parent=39 // pred_fallthru
          _
        // Predicated region
        $region45: #{tpu_custom_call.1} parent=39 // pred_check
          %p258 = pneg %p66
        $region46: #{tpu_custom_call.1} parent=39 // pred_check_branch
          %260 = sbr.rel (%p258) target = $region48
        $region47: #{tpu_custom_call.1} parent=39 // pred_region
          %261 = dma.done [#allocation7], 110592
        $region48: #{tpu_custom_call.1} parent=39 // pred_fallthru
          _
        // Predicated region
        $region49: #{tpu_custom_call.1} parent=39 // pred_check
          %p262 = pneg %p87
        $region50: #{tpu_custom_call.1} parent=39 // pred_check_branch
          %264 = sbr.rel (%p262) target = $region52
        $region51: #{tpu_custom_call.1} parent=39 // pred_region
          %265 = dma.done [#allocation7], 16
        $region52: #{tpu_custom_call.1} parent=39 // pred_fallthru
          _
        // Predicated region
        $region53: #{tpu_custom_call.1} parent=39 // pred_check
          %p266 = pneg %p108
        $region54: #{tpu_custom_call.1} parent=39 // pred_check_branch
          %268 = sbr.rel (%p266) target = $region56
        $region55: #{tpu_custom_call.1} parent=39 // pred_region
          %269 = dma.done [#allocation10], 16
        $region56: #{tpu_custom_call.1} parent=39 // pred_fallthru
          _
        // Predicated region
        $region57: #{tpu_custom_call.1} parent=39 // pred_check
          %p270 = pneg %p129
        $region58: #{tpu_custom_call.1} parent=39 // pred_check_branch
          %272 = sbr.rel (%p270) target = $region60
        $region59: #{tpu_custom_call.1} parent=39 // pred_region
          %273 = dma.done [#allocation10], 16
        $region60: #{tpu_custom_call.1} parent=39 // pred_fallthru
          _
        %s274 = sand.u32 %s32, 1
        %s275 = scalar_lea.sflag [#allocation4], %s274
        %s276 = sand.u32 %s32, 1
        %s277 = smul.addr %s276, 384
        %s278 = scalar_lea.vmem [#allocation3], %s277
        %p279 = pneg %p45
        %p280 = pneg %p42
        %p281 = pneg %p66
        %p282 = pneg %p63
        %p283 = pneg %p87
        %p284 = pneg %p84
        %p285 = pneg %p108
        %p286 = pneg %p105
        %p287 = pneg %p129
        %p288 = pneg %p126
        %p289 = pneg %p155
        %p290 = pneg %p152
        %s291 = sand.u32 %s142, 1
        %s292 = scalar_lea.sflag [#allocation5], %s291
        %s293 = sand.u32 %s142, 1
        %s294 = smul.addr %s293, 24
        %s295 = scalar_lea.vmem [#allocation12], %s294
        %s296 = smul.u32 8, %s24
        %v297 = vld [vmem:[%s253] sm:$0xff]
        %v298 = vld [vmem:[%s253 + $0x8] sm:$0xff]
        %v299 = vld [vmem:[%s253 + $0x10] sm:$0xff]
        %v300 = vld [vmem:[%s253 + $0x18] sm:$0xff]
        %v301 = vld [vmem:[%s253 + $0x20] sm:$0xff]
        %v302 = vld [vmem:[%s253 + $0x28] sm:$0xff]
        %v303 = vld [vmem:[%s253 + $0x30] sm:$0xff]
        %v304 = vld [vmem:[%s253 + $0x38] sm:$0xff]
        %v305 = vld [vmem:[%s253 + $0x40] sm:$0xff]
        %v306 = vld [vmem:[%s253 + $0x48] sm:$0xff]
        %v307 = vld [vmem:[%s253 + $0x50] sm:$0xff]
        %v308 = vld [vmem:[%s253 + $0x58] sm:$0xff]
        %v309 = vld [vmem:[%s253 + $0x60] sm:$0xff]
        %v310 = vld [vmem:[%s253 + $0x68] sm:$0xff]
        %v311 = vld [vmem:[%s253 + $0x70] sm:$0xff]
        %v312 = vld [vmem:[%s253 + $0x78] sm:$0xff]
        %v313 = vld [vmem:[%s253 + $0x80] sm:$0xff]
        %v314 = vld [vmem:[%s253 + $0x88] sm:$0xff]
        %v315 = vld [vmem:[%s253 + $0x90] sm:$0xff]
        %v316 = vld [vmem:[%s253 + $0x98] sm:$0xff]
        %v317 = vld [vmem:[%s253 + $0xa0] sm:$0xff]
        %v318 = vld [vmem:[%s253 + $0xa8] sm:$0xff]
        %v319 = vld [vmem:[%s253 + $0xb0] sm:$0xff]
        %v320 = vld [vmem:[%s253 + $0xb8] sm:$0xff]
        %v321 = vld [vmem:[%s253 + $0xc0] sm:$0xff]
        %v322 = vld [vmem:[%s253 + $0xc8] sm:$0xff]
        %v323 = vld [vmem:[%s253 + $0xd0] sm:$0xff]
        %v324 = vld [vmem:[%s253 + $0xd8] sm:$0xff]
        %v325 = vld [vmem:[%s253 + $0xe0] sm:$0xff]
        %v326 = vld [vmem:[%s253 + $0xe8] sm:$0xff]
        %v327 = vld [vmem:[%s253 + $0xf0] sm:$0xff]
        %v328 = vld [vmem:[%s253 + $0xf8] sm:$0xff]
        %v329 = vld [vmem:[%s253 + $0x100] sm:$0xff]
        %v330 = vld [vmem:[%s253 + $0x108] sm:$0xff]
        %v331 = vld [vmem:[%s253 + $0x110] sm:$0xff]
        %v332 = vld [vmem:[%s253 + $0x118] sm:$0xff]
        %v333 = vld [vmem:[%s253 + $0x120] sm:$0xff]
        %v334 = vld [vmem:[%s253 + $0x128] sm:$0xff]
        %v335 = vld [vmem:[%s253 + $0x130] sm:$0xff]
        %v336 = vld [vmem:[%s253 + $0x138] sm:$0xff]
        %v337 = vld [vmem:[%s253 + $0x140] sm:$0xff]
        %v338 = vld [vmem:[%s253 + $0x148] sm:$0xff]
        %v339 = vld [vmem:[%s253 + $0x150] sm:$0xff]
        %v340 = vld [vmem:[%s253 + $0x158] sm:$0xff]
        %v341 = vld [vmem:[%s253 + $0x160] sm:$0xff]
        %v342 = vld [vmem:[%s253 + $0x168] sm:$0xff]
        %v343 = vld [vmem:[%s253 + $0x170] sm:$0xff]
        %v344 = vld [vmem:[%s253 + $0x178] sm:$0xff]
        %v345 = vld [vmem:[#allocation6] sm:$0xff]
        %v346 = vld [vmem:[#allocation6 + $0x8] sm:$0xff]
        %v347 = vld [vmem:[#allocation6 + $0x10] sm:$0xff]
        %v348 = vld [vmem:[#allocation6 + $0x18] sm:$0xff]
        %v349 = vld [vmem:[#allocation6 + $0x20] sm:$0xff]
        %v350 = vld [vmem:[#allocation6 + $0x28] sm:$0xff]
        %v351 = vld [vmem:[#allocation6 + $0x30] sm:$0xff]
        %v352 = vld [vmem:[#allocation6 + $0x38] sm:$0xff]
        %v353 = vld [vmem:[#allocation6 + $0x40] sm:$0xff]
        %v354 = vld [vmem:[#allocation6 + $0x48] sm:$0xff]
        %v355 = vld [vmem:[#allocation6 + $0x50] sm:$0xff]
        %v356 = vld [vmem:[#allocation6 + $0x58] sm:$0xff]
        %v357 = vld [vmem:[#allocation6 + $0x60] sm:$0xff]
        %v358 = vld [vmem:[#allocation6 + $0x68] sm:$0xff]
        %v359 = vld [vmem:[#allocation6 + $0x70] sm:$0xff]
        %v360 = vld [vmem:[#allocation6 + $0x78] sm:$0xff]
        %v361 = vld [vmem:[#allocation6 + $0x80] sm:$0xff]
        %v362 = vld [vmem:[#allocation6 + $0x88] sm:$0xff]
        %v363 = vld [vmem:[#allocation6 + $0x90] sm:$0xff]
        %v364 = vld [vmem:[#allocation6 + $0x98] sm:$0xff]
        %v365 = vld [vmem:[#allocation6 + $0xa0] sm:$0xff]
        %v366 = vld [vmem:[#allocation6 + $0xa8] sm:$0xff]
        %v367 = vld [vmem:[#allocation6 + $0xb0] sm:$0xff]
        %v368 = vld [vmem:[#allocation6 + $0xb8] sm:$0xff]
        %v369 = vld [vmem:[#allocation6 + $0xc0] sm:$0xff]
        %v370 = vld [vmem:[#allocation6 + $0xc8] sm:$0xff]
        %v371 = vld [vmem:[#allocation6 + $0xd0] sm:$0xff]
        %v372 = vld [vmem:[#allocation6 + $0xd8] sm:$0xff]
        %v373 = vld [vmem:[#allocation6 + $0xe0] sm:$0xff]
        %v374 = vld [vmem:[#allocation6 + $0xe8] sm:$0xff]
        %v375 = vld [vmem:[#allocation6 + $0xf0] sm:$0xff]
        %v376 = vld [vmem:[#allocation6 + $0xf8] sm:$0xff]
        %v377 = vld [vmem:[#allocation6 + $0x100] sm:$0xff]
        %v378 = vld [vmem:[#allocation6 + $0x108] sm:$0xff]
        %v379 = vld [vmem:[#allocation6 + $0x110] sm:$0xff]
        %v380 = vld [vmem:[#allocation6 + $0x118] sm:$0xff]
        %v381 = vld [vmem:[#allocation6 + $0x120] sm:$0xff]
        %v382 = vld [vmem:[#allocation6 + $0x128] sm:$0xff]
        %v383 = vld [vmem:[#allocation6 + $0x130] sm:$0xff]
        %v384 = vld [vmem:[#allocation6 + $0x138] sm:$0xff]
        %v385 = vld [vmem:[#allocation6 + $0x140] sm:$0xff]
        %v386 = vld [vmem:[#allocation6 + $0x148] sm:$0xff]
        %v387 = vld [vmem:[#allocation6 + $0x150] sm:$0xff]
        %v388 = vld [vmem:[#allocation6 + $0x158] sm:$0xff]
        %v389 = vld [vmem:[#allocation6 + $0x160] sm:$0xff]
        %v390 = vld [vmem:[#allocation6 + $0x168] sm:$0xff]
        %v391 = vld [vmem:[#allocation6 + $0x170] sm:$0xff]
        %v392 = vld [vmem:[#allocation6 + $0x178] sm:$0xff]
        %v393 = vld [vmem:[#allocation6 + $0x180] sm:$0xff]
        %v394 = vld [vmem:[#allocation6 + $0x188] sm:$0xff]
        %v395 = vld [vmem:[#allocation6 + $0x190] sm:$0xff]
        %v396 = vld [vmem:[#allocation6 + $0x198] sm:$0xff]
        %v397 = vld [vmem:[#allocation6 + $0x1a0] sm:$0xff]
        %v398 = vld [vmem:[#allocation6 + $0x1a8] sm:$0xff]
        %v399 = vld [vmem:[#allocation6 + $0x1b0] sm:$0xff]
        %v400 = vld [vmem:[#allocation6 + $0x1b8] sm:$0xff]
        %v401 = vld [vmem:[#allocation6 + $0x1c0] sm:$0xff]
        %v402 = vld [vmem:[#allocation6 + $0x1c8] sm:$0xff]
        %v403 = vld [vmem:[#allocation6 + $0x1d0] sm:$0xff]
        %v404 = vld [vmem:[#allocation6 + $0x1d8] sm:$0xff]
        %v405 = vld [vmem:[#allocation6 + $0x1e0] sm:$0xff]
        %v406 = vld [vmem:[#allocation6 + $0x1e8] sm:$0xff]
        %v407 = vld [vmem:[#allocation6 + $0x1f0] sm:$0xff]
        %v408 = vld [vmem:[#allocation6 + $0x1f8] sm:$0xff]
        %v409 = vld [vmem:[#allocation6 + $0x200] sm:$0xff]
        %v410 = vld [vmem:[#allocation6 + $0x208] sm:$0xff]
        %v411 = vld [vmem:[#allocation6 + $0x210] sm:$0xff]
        %v412 = vld [vmem:[#allocation6 + $0x218] sm:$0xff]
        %v413 = vld [vmem:[#allocation6 + $0x220] sm:$0xff]
        %v414 = vld [vmem:[#allocation6 + $0x228] sm:$0xff]
        %v415 = vld [vmem:[#allocation6 + $0x230] sm:$0xff]
        %v416 = vld [vmem:[#allocation6 + $0x238] sm:$0xff]
        %v417 = vld [vmem:[#allocation6 + $0x240] sm:$0xff]
        %v418 = vld [vmem:[#allocation6 + $0x248] sm:$0xff]
        %v419 = vld [vmem:[#allocation6 + $0x250] sm:$0xff]
        %v420 = vld [vmem:[#allocation6 + $0x258] sm:$0xff]
        %v421 = vld [vmem:[#allocation6 + $0x260] sm:$0xff]
        %v422 = vld [vmem:[#allocation6 + $0x268] sm:$0xff]
        %v423 = vld [vmem:[#allocation6 + $0x270] sm:$0xff]
        %v424 = vld [vmem:[#allocation6 + $0x278] sm:$0xff]
        %v425 = vld [vmem:[#allocation6 + $0x280] sm:$0xff]
        %v426 = vld [vmem:[#allocation6 + $0x288] sm:$0xff]
        %v427 = vld [vmem:[#allocation6 + $0x290] sm:$0xff]
        %v428 = vld [vmem:[#allocation6 + $0x298] sm:$0xff]
        %v429 = vld [vmem:[#allocation6 + $0x2a0] sm:$0xff]
        %v430 = vld [vmem:[#allocation6 + $0x2a8] sm:$0xff]
        %v431 = vld [vmem:[#allocation6 + $0x2b0] sm:$0xff]
        %v432 = vld [vmem:[#allocation6 + $0x2b8] sm:$0xff]
        %v433 = vld [vmem:[#allocation6 + $0x2c0] sm:$0xff]
        %v434 = vld [vmem:[#allocation6 + $0x2c8] sm:$0xff]
        %v435 = vld [vmem:[#allocation6 + $0x2d0] sm:$0xff]
        %v436 = vld [vmem:[#allocation6 + $0x2d8] sm:$0xff]
        %v437 = vld [vmem:[#allocation6 + $0x2e0] sm:$0xff]
        %v438 = vld [vmem:[#allocation6 + $0x2e8] sm:$0xff]
        %v439 = vld [vmem:[#allocation6 + $0x2f0] sm:$0xff]
        %v440 = vld [vmem:[#allocation6 + $0x2f8] sm:$0xff]
        %v441 = vld [vmem:[#allocation6 + $0x300] sm:$0xff]
        %v442 = vld [vmem:[#allocation6 + $0x308] sm:$0xff]
        %v443 = vld [vmem:[#allocation6 + $0x310] sm:$0xff]
        %v444 = vld [vmem:[#allocation6 + $0x318] sm:$0xff]
        %v445 = vld [vmem:[#allocation6 + $0x320] sm:$0xff]
        %v446 = vld [vmem:[#allocation6 + $0x328] sm:$0xff]
        %v447 = vld [vmem:[#allocation6 + $0x330] sm:$0xff]
        %v448 = vld [vmem:[#allocation6 + $0x338] sm:$0xff]
        %v449 = vld [vmem:[#allocation6 + $0x340] sm:$0xff]
        %v450 = vld [vmem:[#allocation6 + $0x348] sm:$0xff]
        %v451 = vld [vmem:[#allocation6 + $0x350] sm:$0xff]
        %v452 = vld [vmem:[#allocation6 + $0x358] sm:$0xff]
        %v453 = vld [vmem:[#allocation6 + $0x360] sm:$0xff]
        %v454 = vld [vmem:[#allocation6 + $0x368] sm:$0xff]
        %v455 = vld [vmem:[#allocation6 + $0x370] sm:$0xff]
        %v456 = vld [vmem:[#allocation6 + $0x378] sm:$0xff]
        %v457 = vld [vmem:[#allocation6 + $0x380] sm:$0xff]
        %v458 = vld [vmem:[#allocation6 + $0x388] sm:$0xff]
        %v459 = vld [vmem:[#allocation6 + $0x390] sm:$0xff]
        %v460 = vld [vmem:[#allocation6 + $0x398] sm:$0xff]
        %v461 = vld [vmem:[#allocation6 + $0x3a0] sm:$0xff]
        %v462 = vld [vmem:[#allocation6 + $0x3a8] sm:$0xff]
        %v463 = vld [vmem:[#allocation6 + $0x3b0] sm:$0xff]
        %v464 = vld [vmem:[#allocation6 + $0x3b8] sm:$0xff]
        %v465 = vld [vmem:[#allocation6 + $0x3c0] sm:$0xff]
        %v466 = vld [vmem:[#allocation6 + $0x3c8] sm:$0xff]
        %v467 = vld [vmem:[#allocation6 + $0x3d0] sm:$0xff]
        %v468 = vld [vmem:[#allocation6 + $0x3d8] sm:$0xff]
        %v469 = vld [vmem:[#allocation6 + $0x3e0] sm:$0xff]
        %v470 = vld [vmem:[#allocation6 + $0x3e8] sm:$0xff]
        %v471 = vld [vmem:[#allocation6 + $0x3f0] sm:$0xff]
        %v472 = vld [vmem:[#allocation6 + $0x3f8] sm:$0xff]
        %v473 = vld [vmem:[#allocation6 + $0x400] sm:$0xff]
        %v474 = vld [vmem:[#allocation6 + $0x408] sm:$0xff]
        %v475 = vld [vmem:[#allocation6 + $0x410] sm:$0xff]
        %v476 = vld [vmem:[#allocation6 + $0x418] sm:$0xff]
        %v477 = vld [vmem:[#allocation6 + $0x420] sm:$0xff]
        %v478 = vld [vmem:[#allocation6 + $0x428] sm:$0xff]
        %v479 = vld [vmem:[#allocation6 + $0x430] sm:$0xff]
        %v480 = vld [vmem:[#allocation6 + $0x438] sm:$0xff]
        %v481 = vld [vmem:[#allocation6 + $0x440] sm:$0xff]
        %v482 = vld [vmem:[#allocation6 + $0x448] sm:$0xff]
        %v483 = vld [vmem:[#allocation6 + $0x450] sm:$0xff]
        %v484 = vld [vmem:[#allocation6 + $0x458] sm:$0xff]
        %v485 = vld [vmem:[#allocation6 + $0x460] sm:$0xff]
        %v486 = vld [vmem:[#allocation6 + $0x468] sm:$0xff]
        %v487 = vld [vmem:[#allocation6 + $0x470] sm:$0xff]
        %v488 = vld [vmem:[#allocation6 + $0x478] sm:$0xff]
        %v489 = vld [vmem:[#allocation6 + $0x480] sm:$0xff]
        %v490 = vld [vmem:[#allocation6 + $0x488] sm:$0xff]
        %v491 = vld [vmem:[#allocation6 + $0x490] sm:$0xff]
        %v492 = vld [vmem:[#allocation6 + $0x498] sm:$0xff]
        %v493 = vld [vmem:[#allocation6 + $0x4a0] sm:$0xff]
        %v494 = vld [vmem:[#allocation6 + $0x4a8] sm:$0xff]
        %v495 = vld [vmem:[#allocation6 + $0x4b0] sm:$0xff]
        %v496 = vld [vmem:[#allocation6 + $0x4b8] sm:$0xff]
        %v497 = vld [vmem:[#allocation6 + $0x4c0] sm:$0xff]
        %v498 = vld [vmem:[#allocation6 + $0x4c8] sm:$0xff]
        %v499 = vld [vmem:[#allocation6 + $0x4d0] sm:$0xff]
        %v500 = vld [vmem:[#allocation6 + $0x4d8] sm:$0xff]
        %v501 = vld [vmem:[#allocation6 + $0x4e0] sm:$0xff]
        %v502 = vld [vmem:[#allocation6 + $0x4e8] sm:$0xff]
        %v503 = vld [vmem:[#allocation6 + $0x4f0] sm:$0xff]
        %v504 = vld [vmem:[#allocation6 + $0x4f8] sm:$0xff]
        %v505 = vld [vmem:[#allocation6 + $0x500] sm:$0xff]
        %v506 = vld [vmem:[#allocation6 + $0x508] sm:$0xff]
        %v507 = vld [vmem:[#allocation6 + $0x510] sm:$0xff]
        %v508 = vld [vmem:[#allocation6 + $0x518] sm:$0xff]
        %v509 = vld [vmem:[#allocation6 + $0x520] sm:$0xff]
        %v510 = vld [vmem:[#allocation6 + $0x528] sm:$0xff]
        %v511 = vld [vmem:[#allocation6 + $0x530] sm:$0xff]
        %v512 = vld [vmem:[#allocation6 + $0x538] sm:$0xff]
        %v513 = vld [vmem:[#allocation6 + $0x540] sm:$0xff]
        %v514 = vld [vmem:[#allocation6 + $0x548] sm:$0xff]
        %v515 = vld [vmem:[#allocation6 + $0x550] sm:$0xff]
        %v516 = vld [vmem:[#allocation6 + $0x558] sm:$0xff]
        %v517 = vld [vmem:[#allocation6 + $0x560] sm:$0xff]
        %v518 = vld [vmem:[#allocation6 + $0x568] sm:$0xff]
        %v519 = vld [vmem:[#allocation6 + $0x570] sm:$0xff]
        %v520 = vld [vmem:[#allocation6 + $0x578] sm:$0xff]
        %v521 = vld [vmem:[#allocation6 + $0x580] sm:$0xff]
        %v522 = vld [vmem:[#allocation6 + $0x588] sm:$0xff]
        %v523 = vld [vmem:[#allocation6 + $0x590] sm:$0xff]
        %v524 = vld [vmem:[#allocation6 + $0x598] sm:$0xff]
        %v525 = vld [vmem:[#allocation6 + $0x5a0] sm:$0xff]
        %v526 = vld [vmem:[#allocation6 + $0x5a8] sm:$0xff]
        %v527 = vld [vmem:[#allocation6 + $0x5b0] sm:$0xff]
        %v528 = vld [vmem:[#allocation6 + $0x5b8] sm:$0xff]
        %v529 = vld [vmem:[#allocation6 + $0x5c0] sm:$0xff]
        %v530 = vld [vmem:[#allocation6 + $0x5c8] sm:$0xff]
        %v531 = vld [vmem:[#allocation6 + $0x5d0] sm:$0xff]
        %v532 = vld [vmem:[#allocation6 + $0x5d8] sm:$0xff]
        %v533 = vld [vmem:[#allocation6 + $0x5e0] sm:$0xff]
        %v534 = vld [vmem:[#allocation6 + $0x5e8] sm:$0xff]
        %v535 = vld [vmem:[#allocation6 + $0x5f0] sm:$0xff]
        %v536 = vld [vmem:[#allocation6 + $0x5f8] sm:$0xff]
        %v537 = vld [vmem:[#allocation6 + $0x600] sm:$0xff]
        %v538 = vld [vmem:[#allocation6 + $0x608] sm:$0xff]
        %v539 = vld [vmem:[#allocation6 + $0x610] sm:$0xff]
        %v540 = vld [vmem:[#allocation6 + $0x618] sm:$0xff]
        %v541 = vld [vmem:[#allocation6 + $0x620] sm:$0xff]
        %v542 = vld [vmem:[#allocation6 + $0x628] sm:$0xff]
        %v543 = vld [vmem:[#allocation6 + $0x630] sm:$0xff]
        %v544 = vld [vmem:[#allocation6 + $0x638] sm:$0xff]
        %v545 = vld [vmem:[#allocation6 + $0x640] sm:$0xff]
        %v546 = vld [vmem:[#allocation6 + $0x648] sm:$0xff]
        %v547 = vld [vmem:[#allocation6 + $0x650] sm:$0xff]
        %v548 = vld [vmem:[#allocation6 + $0x658] sm:$0xff]
        %v549 = vld [vmem:[#allocation6 + $0x660] sm:$0xff]
        %v550 = vld [vmem:[#allocation6 + $0x668] sm:$0xff]
        %v551 = vld [vmem:[#allocation6 + $0x670] sm:$0xff]
        %v552 = vld [vmem:[#allocation6 + $0x678] sm:$0xff]
        %v553 = vld [vmem:[#allocation6 + $0x680] sm:$0xff]
        %v554 = vld [vmem:[#allocation6 + $0x688] sm:$0xff]
        %v555 = vld [vmem:[#allocation6 + $0x690] sm:$0xff]
        %v556 = vld [vmem:[#allocation6 + $0x698] sm:$0xff]
        %v557 = vld [vmem:[#allocation6 + $0x6a0] sm:$0xff]
        %v558 = vld [vmem:[#allocation6 + $0x6a8] sm:$0xff]
        %v559 = vld [vmem:[#allocation6 + $0x6b0] sm:$0xff]
        %v560 = vld [vmem:[#allocation6 + $0x6b8] sm:$0xff]
        %v561 = vld [vmem:[#allocation6 + $0x6c0] sm:$0xff]
        %v562 = vld [vmem:[#allocation6 + $0x6c8] sm:$0xff]
        %v563 = vld [vmem:[#allocation6 + $0x6d0] sm:$0xff]
        %v564 = vld [vmem:[#allocation6 + $0x6d8] sm:$0xff]
        %v565 = vld [vmem:[#allocation6 + $0x6e0] sm:$0xff]
        %v566 = vld [vmem:[#allocation6 + $0x6e8] sm:$0xff]
        %v567 = vld [vmem:[#allocation6 + $0x6f0] sm:$0xff]
        %v568 = vld [vmem:[#allocation6 + $0x6f8] sm:$0xff]
        %v569 = vld [vmem:[#allocation6 + $0x700] sm:$0xff]
        %v570 = vld [vmem:[#allocation6 + $0x708] sm:$0xff]
        %v571 = vld [vmem:[#allocation6 + $0x710] sm:$0xff]
        %v572 = vld [vmem:[#allocation6 + $0x718] sm:$0xff]
        %v573 = vld [vmem:[#allocation6 + $0x720] sm:$0xff]
        %v574 = vld [vmem:[#allocation6 + $0x728] sm:$0xff]
        %v575 = vld [vmem:[#allocation6 + $0x730] sm:$0xff]
        %v576 = vld [vmem:[#allocation6 + $0x738] sm:$0xff]
        %v577 = vld [vmem:[#allocation6 + $0x740] sm:$0xff]
        %v578 = vld [vmem:[#allocation6 + $0x748] sm:$0xff]
        %v579 = vld [vmem:[#allocation6 + $0x750] sm:$0xff]
        %v580 = vld [vmem:[#allocation6 + $0x758] sm:$0xff]
        %v581 = vld [vmem:[#allocation6 + $0x760] sm:$0xff]
        %v582 = vld [vmem:[#allocation6 + $0x768] sm:$0xff]
        %v583 = vld [vmem:[#allocation6 + $0x770] sm:$0xff]
        %v584 = vld [vmem:[#allocation6 + $0x778] sm:$0xff]
        %v585 = vld [vmem:[#allocation6 + $0x780] sm:$0xff]
        %v586 = vld [vmem:[#allocation6 + $0x788] sm:$0xff]
        %v587 = vld [vmem:[#allocation6 + $0x790] sm:$0xff]
        %v588 = vld [vmem:[#allocation6 + $0x798] sm:$0xff]
        %v589 = vld [vmem:[#allocation6 + $0x7a0] sm:$0xff]
        %v590 = vld [vmem:[#allocation6 + $0x7a8] sm:$0xff]
        %v591 = vld [vmem:[#allocation6 + $0x7b0] sm:$0xff]
        %v592 = vld [vmem:[#allocation6 + $0x7b8] sm:$0xff]
        %v593 = vld [vmem:[#allocation6 + $0x7c0] sm:$0xff]
        %v594 = vld [vmem:[#allocation6 + $0x7c8] sm:$0xff]
        %v595 = vld [vmem:[#allocation6 + $0x7d0] sm:$0xff]
        %v596 = vld [vmem:[#allocation6 + $0x7d8] sm:$0xff]
        %v597 = vld [vmem:[#allocation6 + $0x7e0] sm:$0xff]
        %v598 = vld [vmem:[#allocation6 + $0x7e8] sm:$0xff]
        %v599 = vld [vmem:[#allocation6 + $0x7f0] sm:$0xff]
        %v600 = vld [vmem:[#allocation6 + $0x7f8] sm:$0xff]
        %v601 = vld [vmem:[#allocation6 + $0x800] sm:$0xff]
        %v602 = vld [vmem:[#allocation6 + $0x808] sm:$0xff]
        %v603 = vld [vmem:[#allocation6 + $0x810] sm:$0xff]
        %v604 = vld [vmem:[#allocation6 + $0x818] sm:$0xff]
        %v605 = vld [vmem:[#allocation6 + $0x820] sm:$0xff]
        %v606 = vld [vmem:[#allocation6 + $0x828] sm:$0xff]
        %v607 = vld [vmem:[#allocation6 + $0x830] sm:$0xff]
        %v608 = vld [vmem:[#allocation6 + $0x838] sm:$0xff]
        %v609 = vld [vmem:[#allocation6 + $0x840] sm:$0xff]
        %v610 = vld [vmem:[#allocation6 + $0x848] sm:$0xff]
        %v611 = vld [vmem:[#allocation6 + $0x850] sm:$0xff]
        %v612 = vld [vmem:[#allocation6 + $0x858] sm:$0xff]
        %v613 = vld [vmem:[#allocation6 + $0x860] sm:$0xff]
        %v614 = vld [vmem:[#allocation6 + $0x868] sm:$0xff]
        %v615 = vld [vmem:[#allocation6 + $0x870] sm:$0xff]
        %v616 = vld [vmem:[#allocation6 + $0x878] sm:$0xff]
        %v617 = vld [vmem:[#allocation6 + $0x880] sm:$0xff]
        %v618 = vld [vmem:[#allocation6 + $0x888] sm:$0xff]
        %v619 = vld [vmem:[#allocation6 + $0x890] sm:$0xff]
        %v620 = vld [vmem:[#allocation6 + $0x898] sm:$0xff]
        %v621 = vld [vmem:[#allocation6 + $0x8a0] sm:$0xff]
        %v622 = vld [vmem:[#allocation6 + $0x8a8] sm:$0xff]
        %v623 = vld [vmem:[#allocation6 + $0x8b0] sm:$0xff]
        %v624 = vld [vmem:[#allocation6 + $0x8b8] sm:$0xff]
        %v625 = vld [vmem:[#allocation6 + $0x8c0] sm:$0xff]
        %v626 = vld [vmem:[#allocation6 + $0x8c8] sm:$0xff]
        %v627 = vld [vmem:[#allocation6 + $0x8d0] sm:$0xff]
        %v628 = vld [vmem:[#allocation6 + $0x8d8] sm:$0xff]
        %v629 = vld [vmem:[#allocation6 + $0x8e0] sm:$0xff]
        %v630 = vld [vmem:[#allocation6 + $0x8e8] sm:$0xff]
        %v631 = vld [vmem:[#allocation6 + $0x8f0] sm:$0xff]
        %v632 = vld [vmem:[#allocation6 + $0x8f8] sm:$0xff]
        %v633 = vld [vmem:[#allocation6 + $0x900] sm:$0xff]
        %v634 = vld [vmem:[#allocation6 + $0x908] sm:$0xff]
        %v635 = vld [vmem:[#allocation6 + $0x910] sm:$0xff]
        %v636 = vld [vmem:[#allocation6 + $0x918] sm:$0xff]
        %v637 = vld [vmem:[#allocation6 + $0x920] sm:$0xff]
        %v638 = vld [vmem:[#allocation6 + $0x928] sm:$0xff]
        %v639 = vld [vmem:[#allocation6 + $0x930] sm:$0xff]
        %v640 = vld [vmem:[#allocation6 + $0x938] sm:$0xff]
        %v641 = vld [vmem:[#allocation6 + $0x940] sm:$0xff]
        %v642 = vld [vmem:[#allocation6 + $0x948] sm:$0xff]
        %v643 = vld [vmem:[#allocation6 + $0x950] sm:$0xff]
        %v644 = vld [vmem:[#allocation6 + $0x958] sm:$0xff]
        %v645 = vld [vmem:[#allocation6 + $0x960] sm:$0xff]
        %v646 = vld [vmem:[#allocation6 + $0x968] sm:$0xff]
        %v647 = vld [vmem:[#allocation6 + $0x970] sm:$0xff]
        %v648 = vld [vmem:[#allocation6 + $0x978] sm:$0xff]
        %v649 = vld [vmem:[#allocation6 + $0x980] sm:$0xff]
        %v650 = vld [vmem:[#allocation6 + $0x988] sm:$0xff]
        %v651 = vld [vmem:[#allocation6 + $0x990] sm:$0xff]
        %v652 = vld [vmem:[#allocation6 + $0x998] sm:$0xff]
        %v653 = vld [vmem:[#allocation6 + $0x9a0] sm:$0xff]
        %v654 = vld [vmem:[#allocation6 + $0x9a8] sm:$0xff]
        %v655 = vld [vmem:[#allocation6 + $0x9b0] sm:$0xff]
        %v656 = vld [vmem:[#allocation6 + $0x9b8] sm:$0xff]
        %v657 = vld [vmem:[#allocation6 + $0x9c0] sm:$0xff]
        %v658 = vld [vmem:[#allocation6 + $0x9c8] sm:$0xff]
        %v659 = vld [vmem:[#allocation6 + $0x9d0] sm:$0xff]
        %v660 = vld [vmem:[#allocation6 + $0x9d8] sm:$0xff]
        %v661 = vld [vmem:[#allocation6 + $0x9e0] sm:$0xff]
        %v662 = vld [vmem:[#allocation6 + $0x9e8] sm:$0xff]
        %v663 = vld [vmem:[#allocation6 + $0x9f0] sm:$0xff]
        %v664 = vld [vmem:[#allocation6 + $0x9f8] sm:$0xff]
        %v665 = vld [vmem:[#allocation6 + $0xa00] sm:$0xff]
        %v666 = vld [vmem:[#allocation6 + $0xa08] sm:$0xff]
        %v667 = vld [vmem:[#allocation6 + $0xa10] sm:$0xff]
        %v668 = vld [vmem:[#allocation6 + $0xa18] sm:$0xff]
        %v669 = vld [vmem:[#allocation6 + $0xa20] sm:$0xff]
        %v670 = vld [vmem:[#allocation6 + $0xa28] sm:$0xff]
        %v671 = vld [vmem:[#allocation6 + $0xa30] sm:$0xff]
        %v672 = vld [vmem:[#allocation6 + $0xa38] sm:$0xff]
        %v673 = vld [vmem:[#allocation6 + $0xa40] sm:$0xff]
        %v674 = vld [vmem:[#allocation6 + $0xa48] sm:$0xff]
        %v675 = vld [vmem:[#allocation6 + $0xa50] sm:$0xff]
        %v676 = vld [vmem:[#allocation6 + $0xa58] sm:$0xff]
        %v677 = vld [vmem:[#allocation6 + $0xa60] sm:$0xff]
        %v678 = vld [vmem:[#allocation6 + $0xa68] sm:$0xff]
        %v679 = vld [vmem:[#allocation6 + $0xa70] sm:$0xff]
        %v680 = vld [vmem:[#allocation6 + $0xa78] sm:$0xff]
        %v681 = vld [vmem:[#allocation6 + $0xa80] sm:$0xff]
        %v682 = vld [vmem:[#allocation6 + $0xa88] sm:$0xff]
        %v683 = vld [vmem:[#allocation6 + $0xa90] sm:$0xff]
        %v684 = vld [vmem:[#allocation6 + $0xa98] sm:$0xff]
        %v685 = vld [vmem:[#allocation6 + $0xaa0] sm:$0xff]
        %v686 = vld [vmem:[#allocation6 + $0xaa8] sm:$0xff]
        %v687 = vld [vmem:[#allocation6 + $0xab0] sm:$0xff]
        %v688 = vld [vmem:[#allocation6 + $0xab8] sm:$0xff]
        %v689 = vld [vmem:[#allocation6 + $0xac0] sm:$0xff]
        %v690 = vld [vmem:[#allocation6 + $0xac8] sm:$0xff]
        %v691 = vld [vmem:[#allocation6 + $0xad0] sm:$0xff]
        %v692 = vld [vmem:[#allocation6 + $0xad8] sm:$0xff]
        %v693 = vld [vmem:[#allocation6 + $0xae0] sm:$0xff]
        %v694 = vld [vmem:[#allocation6 + $0xae8] sm:$0xff]
        %v695 = vld [vmem:[#allocation6 + $0xaf0] sm:$0xff]
        %v696 = vld [vmem:[#allocation6 + $0xaf8] sm:$0xff]
        %v697 = vld [vmem:[#allocation6 + $0xb00] sm:$0xff]
        %v698 = vld [vmem:[#allocation6 + $0xb08] sm:$0xff]
        %v699 = vld [vmem:[#allocation6 + $0xb10] sm:$0xff]
        %v700 = vld [vmem:[#allocation6 + $0xb18] sm:$0xff]
        %v701 = vld [vmem:[#allocation6 + $0xb20] sm:$0xff]
        %v702 = vld [vmem:[#allocation6 + $0xb28] sm:$0xff]
        %v703 = vld [vmem:[#allocation6 + $0xb30] sm:$0xff]
        %v704 = vld [vmem:[#allocation6 + $0xb38] sm:$0xff]
        %v705 = vld [vmem:[#allocation6 + $0xb40] sm:$0xff]
        %v706 = vld [vmem:[#allocation6 + $0xb48] sm:$0xff]
        %v707 = vld [vmem:[#allocation6 + $0xb50] sm:$0xff]
        %v708 = vld [vmem:[#allocation6 + $0xb58] sm:$0xff]
        %v709 = vld [vmem:[#allocation6 + $0xb60] sm:$0xff]
        %v710 = vld [vmem:[#allocation6 + $0xb68] sm:$0xff]
        %v711 = vld [vmem:[#allocation6 + $0xb70] sm:$0xff]
        %v712 = vld [vmem:[#allocation6 + $0xb78] sm:$0xff]
        %v713 = vld [vmem:[#allocation6 + $0xb80] sm:$0xff]
        %v714 = vld [vmem:[#allocation6 + $0xb88] sm:$0xff]
        %v715 = vld [vmem:[#allocation6 + $0xb90] sm:$0xff]
        %v716 = vld [vmem:[#allocation6 + $0xb98] sm:$0xff]
        %v717 = vld [vmem:[#allocation6 + $0xba0] sm:$0xff]
        %v718 = vld [vmem:[#allocation6 + $0xba8] sm:$0xff]
        %v719 = vld [vmem:[#allocation6 + $0xbb0] sm:$0xff]
        %v720 = vld [vmem:[#allocation6 + $0xbb8] sm:$0xff]
        %v721 = vld [vmem:[#allocation6 + $0xbc0] sm:$0xff]
        %v722 = vld [vmem:[#allocation6 + $0xbc8] sm:$0xff]
        %v723 = vld [vmem:[#allocation6 + $0xbd0] sm:$0xff]
        %v724 = vld [vmem:[#allocation6 + $0xbd8] sm:$0xff]
        %v725 = vld [vmem:[#allocation6 + $0xbe0] sm:$0xff]
        %v726 = vld [vmem:[#allocation6 + $0xbe8] sm:$0xff]
        %v727 = vld [vmem:[#allocation6 + $0xbf0] sm:$0xff]
        %v728 = vld [vmem:[#allocation6 + $0xbf8] sm:$0xff]
        %v729 = vld [vmem:[#allocation6 + $0xc00] sm:$0xff]
        %v730 = vld [vmem:[#allocation6 + $0xc08] sm:$0xff]
        %v731 = vld [vmem:[#allocation6 + $0xc10] sm:$0xff]
        %v732 = vld [vmem:[#allocation6 + $0xc18] sm:$0xff]
        %v733 = vld [vmem:[#allocation6 + $0xc20] sm:$0xff]
        %v734 = vld [vmem:[#allocation6 + $0xc28] sm:$0xff]
        %v735 = vld [vmem:[#allocation6 + $0xc30] sm:$0xff]
        %v736 = vld [vmem:[#allocation6 + $0xc38] sm:$0xff]
        %v737 = vld [vmem:[#allocation6 + $0xc40] sm:$0xff]
        %v738 = vld [vmem:[#allocation6 + $0xc48] sm:$0xff]
        %v739 = vld [vmem:[#allocation6 + $0xc50] sm:$0xff]
        %v740 = vld [vmem:[#allocation6 + $0xc58] sm:$0xff]
        %v741 = vld [vmem:[#allocation6 + $0xc60] sm:$0xff]
        %v742 = vld [vmem:[#allocation6 + $0xc68] sm:$0xff]
        %v743 = vld [vmem:[#allocation6 + $0xc70] sm:$0xff]
        %v744 = vld [vmem:[#allocation6 + $0xc78] sm:$0xff]
        %v745 = vld [vmem:[#allocation6 + $0xc80] sm:$0xff]
        %v746 = vld [vmem:[#allocation6 + $0xc88] sm:$0xff]
        %v747 = vld [vmem:[#allocation6 + $0xc90] sm:$0xff]
        %v748 = vld [vmem:[#allocation6 + $0xc98] sm:$0xff]
        %v749 = vld [vmem:[#allocation6 + $0xca0] sm:$0xff]
        %v750 = vld [vmem:[#allocation6 + $0xca8] sm:$0xff]
        %v751 = vld [vmem:[#allocation6 + $0xcb0] sm:$0xff]
        %v752 = vld [vmem:[#allocation6 + $0xcb8] sm:$0xff]
        %v753 = vld [vmem:[#allocation6 + $0xcc0] sm:$0xff]
        %v754 = vld [vmem:[#allocation6 + $0xcc8] sm:$0xff]
        %v755 = vld [vmem:[#allocation6 + $0xcd0] sm:$0xff]
        %v756 = vld [vmem:[#allocation6 + $0xcd8] sm:$0xff]
        %v757 = vld [vmem:[#allocation6 + $0xce0] sm:$0xff]
        %v758 = vld [vmem:[#allocation6 + $0xce8] sm:$0xff]
        %v759 = vld [vmem:[#allocation6 + $0xcf0] sm:$0xff]
        %v760 = vld [vmem:[#allocation6 + $0xcf8] sm:$0xff]
        %v761 = vld [vmem:[#allocation6 + $0xd00] sm:$0xff]
        %v762 = vld [vmem:[#allocation6 + $0xd08] sm:$0xff]
        %v763 = vld [vmem:[#allocation6 + $0xd10] sm:$0xff]
        %v764 = vld [vmem:[#allocation6 + $0xd18] sm:$0xff]
        %v765 = vld [vmem:[#allocation6 + $0xd20] sm:$0xff]
        %v766 = vld [vmem:[#allocation6 + $0xd28] sm:$0xff]
        %v767 = vld [vmem:[#allocation6 + $0xd30] sm:$0xff]
        %v768 = vld [vmem:[#allocation6 + $0xd38] sm:$0xff]
        %v769 = vld [vmem:[#allocation6 + $0xd40] sm:$0xff]
        %v770 = vld [vmem:[#allocation6 + $0xd48] sm:$0xff]
        %v771 = vld [vmem:[#allocation6 + $0xd50] sm:$0xff]
        %v772 = vld [vmem:[#allocation6 + $0xd58] sm:$0xff]
        %v773 = vld [vmem:[#allocation6 + $0xd60] sm:$0xff]
        %v774 = vld [vmem:[#allocation6 + $0xd68] sm:$0xff]
        %v775 = vld [vmem:[#allocation6 + $0xd70] sm:$0xff]
        %v776 = vld [vmem:[#allocation6 + $0xd78] sm:$0xff]
        %v777 = vld [vmem:[#allocation6 + $0xd80] sm:$0xff]
        %v778 = vld [vmem:[#allocation6 + $0xd88] sm:$0xff]
        %v779 = vld [vmem:[#allocation6 + $0xd90] sm:$0xff]
        %v780 = vld [vmem:[#allocation6 + $0xd98] sm:$0xff]
        %v781 = vld [vmem:[#allocation6 + $0xda0] sm:$0xff]
        %v782 = vld [vmem:[#allocation6 + $0xda8] sm:$0xff]
        %v783 = vld [vmem:[#allocation6 + $0xdb0] sm:$0xff]
        %v784 = vld [vmem:[#allocation6 + $0xdb8] sm:$0xff]
        %v785 = vld [vmem:[#allocation6 + $0xdc0] sm:$0xff]
        %v786 = vld [vmem:[#allocation6 + $0xdc8] sm:$0xff]
        %v787 = vld [vmem:[#allocation6 + $0xdd0] sm:$0xff]
        %v788 = vld [vmem:[#allocation6 + $0xdd8] sm:$0xff]
        %v789 = vld [vmem:[#allocation6 + $0xde0] sm:$0xff]
        %v790 = vld [vmem:[#allocation6 + $0xde8] sm:$0xff]
        %v791 = vld [vmem:[#allocation6 + $0xdf0] sm:$0xff]
        %v792 = vld [vmem:[#allocation6 + $0xdf8] sm:$0xff]
        %v793 = vld [vmem:[#allocation6 + $0xe00] sm:$0xff]
        %v794 = vld [vmem:[#allocation6 + $0xe08] sm:$0xff]
        %v795 = vld [vmem:[#allocation6 + $0xe10] sm:$0xff]
        %v796 = vld [vmem:[#allocation6 + $0xe18] sm:$0xff]
        %v797 = vld [vmem:[#allocation6 + $0xe20] sm:$0xff]
        %v798 = vld [vmem:[#allocation6 + $0xe28] sm:$0xff]
        %v799 = vld [vmem:[#allocation6 + $0xe30] sm:$0xff]
        %v800 = vld [vmem:[#allocation6 + $0xe38] sm:$0xff]
        %v801 = vld [vmem:[#allocation6 + $0xe40] sm:$0xff]
        %v802 = vld [vmem:[#allocation6 + $0xe48] sm:$0xff]
        %v803 = vld [vmem:[#allocation6 + $0xe50] sm:$0xff]
        %v804 = vld [vmem:[#allocation6 + $0xe58] sm:$0xff]
        %v805 = vld [vmem:[#allocation6 + $0xe60] sm:$0xff]
        %v806 = vld [vmem:[#allocation6 + $0xe68] sm:$0xff]
        %v807 = vld [vmem:[#allocation6 + $0xe70] sm:$0xff]
        %v808 = vld [vmem:[#allocation6 + $0xe78] sm:$0xff]
        %v809 = vld [vmem:[#allocation6 + $0xe80] sm:$0xff]
        %v810 = vld [vmem:[#allocation6 + $0xe88] sm:$0xff]
        %v811 = vld [vmem:[#allocation6 + $0xe90] sm:$0xff]
        %v812 = vld [vmem:[#allocation6 + $0xe98] sm:$0xff]
        %v813 = vld [vmem:[#allocation6 + $0xea0] sm:$0xff]
        %v814 = vld [vmem:[#allocation6 + $0xea8] sm:$0xff]
        %v815 = vld [vmem:[#allocation6 + $0xeb0] sm:$0xff]
        %v816 = vld [vmem:[#allocation6 + $0xeb8] sm:$0xff]
        %v817 = vld [vmem:[#allocation6 + $0xec0] sm:$0xff]
        %v818 = vld [vmem:[#allocation6 + $0xec8] sm:$0xff]
        %v819 = vld [vmem:[#allocation6 + $0xed0] sm:$0xff]
        %v820 = vld [vmem:[#allocation6 + $0xed8] sm:$0xff]
        %v821 = vld [vmem:[#allocation6 + $0xee0] sm:$0xff]
        %v822 = vld [vmem:[#allocation6 + $0xee8] sm:$0xff]
        %v823 = vld [vmem:[#allocation6 + $0xef0] sm:$0xff]
        %v824 = vld [vmem:[#allocation6 + $0xef8] sm:$0xff]
        %v825 = vld [vmem:[#allocation6 + $0xf00] sm:$0xff]
        %v826 = vld [vmem:[#allocation6 + $0xf08] sm:$0xff]
        %v827 = vld [vmem:[#allocation6 + $0xf10] sm:$0xff]
        %v828 = vld [vmem:[#allocation6 + $0xf18] sm:$0xff]
        %v829 = vld [vmem:[#allocation6 + $0xf20] sm:$0xff]
        %v830 = vld [vmem:[#allocation6 + $0xf28] sm:$0xff]
        %v831 = vld [vmem:[#allocation6 + $0xf30] sm:$0xff]
        %v832 = vld [vmem:[#allocation6 + $0xf38] sm:$0xff]
        %v833 = vld [vmem:[#allocation6 + $0xf40] sm:$0xff]
        %v834 = vld [vmem:[#allocation6 + $0xf48] sm:$0xff]
        %v835 = vld [vmem:[#allocation6 + $0xf50] sm:$0xff]
        %v836 = vld [vmem:[#allocation6 + $0xf58] sm:$0xff]
        %v837 = vld [vmem:[#allocation6 + $0xf60] sm:$0xff]
        %v838 = vld [vmem:[#allocation6 + $0xf68] sm:$0xff]
        %v839 = vld [vmem:[#allocation6 + $0xf70] sm:$0xff]
        %v840 = vld [vmem:[#allocation6 + $0xf78] sm:$0xff]
        %v841 = vld [vmem:[#allocation6 + $0xf80] sm:$0xff]
        %v842 = vld [vmem:[#allocation6 + $0xf88] sm:$0xff]
        %v843 = vld [vmem:[#allocation6 + $0xf90] sm:$0xff]
        %v844 = vld [vmem:[#allocation6 + $0xf98] sm:$0xff]
        %v845 = vld [vmem:[#allocation6 + $0xfa0] sm:$0xff]
        %v846 = vld [vmem:[#allocation6 + $0xfa8] sm:$0xff]
        %v847 = vld [vmem:[#allocation6 + $0xfb0] sm:$0xff]
        %v848 = vld [vmem:[#allocation6 + $0xfb8] sm:$0xff]
        %v849 = vld [vmem:[#allocation6 + $0xfc0] sm:$0xff]
        %v850 = vld [vmem:[#allocation6 + $0xfc8] sm:$0xff]
        %v851 = vld [vmem:[#allocation6 + $0xfd0] sm:$0xff]
        %v852 = vld [vmem:[#allocation6 + $0xfd8] sm:$0xff]
        %v853 = vld [vmem:[#allocation6 + $0xfe0] sm:$0xff]
        %v854 = vld [vmem:[#allocation6 + $0xfe8] sm:$0xff]
        %v855 = vld [vmem:[#allocation6 + $0xff0] sm:$0xff]
        %v856 = vld [vmem:[#allocation6 + $0xff8] sm:$0xff]
        %v857 = vld [vmem:[#allocation6 + $0x1000] sm:$0xff]
        %v858 = vld [vmem:[#allocation6 + $0x1008] sm:$0xff]
        %v859 = vld [vmem:[#allocation6 + $0x1010] sm:$0xff]
        %v860 = vld [vmem:[#allocation6 + $0x1018] sm:$0xff]
        %v861 = vld [vmem:[#allocation6 + $0x1020] sm:$0xff]
        %v862 = vld [vmem:[#allocation6 + $0x1028] sm:$0xff]
        %v863 = vld [vmem:[#allocation6 + $0x1030] sm:$0xff]
        %v864 = vld [vmem:[#allocation6 + $0x1038] sm:$0xff]
        %v865 = vld [vmem:[#allocation6 + $0x1040] sm:$0xff]
        %v866 = vld [vmem:[#allocation6 + $0x1048] sm:$0xff]
        %v867 = vld [vmem:[#allocation6 + $0x1050] sm:$0xff]
        %v868 = vld [vmem:[#allocation6 + $0x1058] sm:$0xff]
        %v869 = vld [vmem:[#allocation6 + $0x1060] sm:$0xff]
        %v870 = vld [vmem:[#allocation6 + $0x1068] sm:$0xff]
        %v871 = vld [vmem:[#allocation6 + $0x1070] sm:$0xff]
        %v872 = vld [vmem:[#allocation6 + $0x1078] sm:$0xff]
        %v873 = vld [vmem:[#allocation6 + $0x1080] sm:$0xff]
        %v874 = vld [vmem:[#allocation6 + $0x1088] sm:$0xff]
        %v875 = vld [vmem:[#allocation6 + $0x1090] sm:$0xff]
        %v876 = vld [vmem:[#allocation6 + $0x1098] sm:$0xff]
        %v877 = vld [vmem:[#allocation6 + $0x10a0] sm:$0xff]
        %v878 = vld [vmem:[#allocation6 + $0x10a8] sm:$0xff]
        %v879 = vld [vmem:[#allocation6 + $0x10b0] sm:$0xff]
        %v880 = vld [vmem:[#allocation6 + $0x10b8] sm:$0xff]
        %v881 = vld [vmem:[#allocation6 + $0x10c0] sm:$0xff]
        %v882 = vld [vmem:[#allocation6 + $0x10c8] sm:$0xff]
        %v883 = vld [vmem:[#allocation6 + $0x10d0] sm:$0xff]
        %v884 = vld [vmem:[#allocation6 + $0x10d8] sm:$0xff]
        %v885 = vld [vmem:[#allocation6 + $0x10e0] sm:$0xff]
        %v886 = vld [vmem:[#allocation6 + $0x10e8] sm:$0xff]
        %v887 = vld [vmem:[#allocation6 + $0x10f0] sm:$0xff]
        %v888 = vld [vmem:[#allocation6 + $0x10f8] sm:$0xff]
        %v889 = vld [vmem:[#allocation6 + $0x1100] sm:$0xff]
        %v890 = vld [vmem:[#allocation6 + $0x1108] sm:$0xff]
        %v891 = vld [vmem:[#allocation6 + $0x1110] sm:$0xff]
        %v892 = vld [vmem:[#allocation6 + $0x1118] sm:$0xff]
        %v893 = vld [vmem:[#allocation6 + $0x1120] sm:$0xff]
        %v894 = vld [vmem:[#allocation6 + $0x1128] sm:$0xff]
        %v895 = vld [vmem:[#allocation6 + $0x1130] sm:$0xff]
        %v896 = vld [vmem:[#allocation6 + $0x1138] sm:$0xff]
        %v897 = vld [vmem:[#allocation6 + $0x1140] sm:$0xff]
        %v898 = vld [vmem:[#allocation6 + $0x1148] sm:$0xff]
        %v899 = vld [vmem:[#allocation6 + $0x1150] sm:$0xff]
        %v900 = vld [vmem:[#allocation6 + $0x1158] sm:$0xff]
        %v901 = vld [vmem:[#allocation6 + $0x1160] sm:$0xff]
        %v902 = vld [vmem:[#allocation6 + $0x1168] sm:$0xff]
        %v903 = vld [vmem:[#allocation6 + $0x1170] sm:$0xff]
        %v904 = vld [vmem:[#allocation6 + $0x1178] sm:$0xff]
        %v905 = vld [vmem:[#allocation6 + $0x1180] sm:$0xff]
        %v906 = vld [vmem:[#allocation6 + $0x1188] sm:$0xff]
        %v907 = vld [vmem:[#allocation6 + $0x1190] sm:$0xff]
        %v908 = vld [vmem:[#allocation6 + $0x1198] sm:$0xff]
        %v909 = vld [vmem:[#allocation6 + $0x11a0] sm:$0xff]
        %v910 = vld [vmem:[#allocation6 + $0x11a8] sm:$0xff]
        %v911 = vld [vmem:[#allocation6 + $0x11b0] sm:$0xff]
        %v912 = vld [vmem:[#allocation6 + $0x11b8] sm:$0xff]
        %v913 = vld [vmem:[#allocation6 + $0x11c0] sm:$0xff]
        %v914 = vld [vmem:[#allocation6 + $0x11c8] sm:$0xff]
        %v915 = vld [vmem:[#allocation6 + $0x11d0] sm:$0xff]
        %v916 = vld [vmem:[#allocation6 + $0x11d8] sm:$0xff]
        %v917 = vld [vmem:[#allocation6 + $0x11e0] sm:$0xff]
        %v918 = vld [vmem:[#allocation6 + $0x11e8] sm:$0xff]
        %v919 = vld [vmem:[#allocation6 + $0x11f0] sm:$0xff]
        %v920 = vld [vmem:[#allocation6 + $0x11f8] sm:$0xff]
        %v921 = vld [vmem:[#allocation6 + $0x1200] sm:$0xff]
        %v922 = vld [vmem:[#allocation6 + $0x1208] sm:$0xff]
        %v923 = vld [vmem:[#allocation6 + $0x1210] sm:$0xff]
        %v924 = vld [vmem:[#allocation6 + $0x1218] sm:$0xff]
        %v925 = vld [vmem:[#allocation6 + $0x1220] sm:$0xff]
        %v926 = vld [vmem:[#allocation6 + $0x1228] sm:$0xff]
        %v927 = vld [vmem:[#allocation6 + $0x1230] sm:$0xff]
        %v928 = vld [vmem:[#allocation6 + $0x1238] sm:$0xff]
        %v929 = vld [vmem:[#allocation6 + $0x1240] sm:$0xff]
        %v930 = vld [vmem:[#allocation6 + $0x1248] sm:$0xff]
        %v931 = vld [vmem:[#allocation6 + $0x1250] sm:$0xff]
        %v932 = vld [vmem:[#allocation6 + $0x1258] sm:$0xff]
        %v933 = vld [vmem:[#allocation6 + $0x1260] sm:$0xff]
        %v934 = vld [vmem:[#allocation6 + $0x1268] sm:$0xff]
        %v935 = vld [vmem:[#allocation6 + $0x1270] sm:$0xff]
        %v936 = vld [vmem:[#allocation6 + $0x1278] sm:$0xff]
        %v937 = vld [vmem:[#allocation6 + $0x1280] sm:$0xff]
        %v938 = vld [vmem:[#allocation6 + $0x1288] sm:$0xff]
        %v939 = vld [vmem:[#allocation6 + $0x1290] sm:$0xff]
        %v940 = vld [vmem:[#allocation6 + $0x1298] sm:$0xff]
        %v941 = vld [vmem:[#allocation6 + $0x12a0] sm:$0xff]
        %v942 = vld [vmem:[#allocation6 + $0x12a8] sm:$0xff]
        %v943 = vld [vmem:[#allocation6 + $0x12b0] sm:$0xff]
        %v944 = vld [vmem:[#allocation6 + $0x12b8] sm:$0xff]
        %v945 = vld [vmem:[#allocation6 + $0x12c0] sm:$0xff]
        %v946 = vld [vmem:[#allocation6 + $0x12c8] sm:$0xff]
        %v947 = vld [vmem:[#allocation6 + $0x12d0] sm:$0xff]
        %v948 = vld [vmem:[#allocation6 + $0x12d8] sm:$0xff]
        %v949 = vld [vmem:[#allocation6 + $0x12e0] sm:$0xff]
        %v950 = vld [vmem:[#allocation6 + $0x12e8] sm:$0xff]
        %v951 = vld [vmem:[#allocation6 + $0x12f0] sm:$0xff]
        %v952 = vld [vmem:[#allocation6 + $0x12f8] sm:$0xff]
        %v953 = vld [vmem:[#allocation6 + $0x1300] sm:$0xff]
        %v954 = vld [vmem:[#allocation6 + $0x1308] sm:$0xff]
        %v955 = vld [vmem:[#allocation6 + $0x1310] sm:$0xff]
        %v956 = vld [vmem:[#allocation6 + $0x1318] sm:$0xff]
        %v957 = vld [vmem:[#allocation6 + $0x1320] sm:$0xff]
        %v958 = vld [vmem:[#allocation6 + $0x1328] sm:$0xff]
        %v959 = vld [vmem:[#allocation6 + $0x1330] sm:$0xff]
        %v960 = vld [vmem:[#allocation6 + $0x1338] sm:$0xff]
        %v961 = vld [vmem:[#allocation6 + $0x1340] sm:$0xff]
        %v962 = vld [vmem:[#allocation6 + $0x1348] sm:$0xff]
        %v963 = vld [vmem:[#allocation6 + $0x1350] sm:$0xff]
        %v964 = vld [vmem:[#allocation6 + $0x1358] sm:$0xff]
        %v965 = vld [vmem:[#allocation6 + $0x1360] sm:$0xff]
        %v966 = vld [vmem:[#allocation6 + $0x1368] sm:$0xff]
        %v967 = vld [vmem:[#allocation6 + $0x1370] sm:$0xff]
        %v968 = vld [vmem:[#allocation6 + $0x1378] sm:$0xff]
        %v969 = vld [vmem:[#allocation6 + $0x1380] sm:$0xff]
        %v970 = vld [vmem:[#allocation6 + $0x1388] sm:$0xff]
        %v971 = vld [vmem:[#allocation6 + $0x1390] sm:$0xff]
        %v972 = vld [vmem:[#allocation6 + $0x1398] sm:$0xff]
        %v973 = vld [vmem:[#allocation6 + $0x13a0] sm:$0xff]
        %v974 = vld [vmem:[#allocation6 + $0x13a8] sm:$0xff]
        %v975 = vld [vmem:[#allocation6 + $0x13b0] sm:$0xff]
        %v976 = vld [vmem:[#allocation6 + $0x13b8] sm:$0xff]
        %v977 = vld [vmem:[#allocation6 + $0x13c0] sm:$0xff]
        %v978 = vld [vmem:[#allocation6 + $0x13c8] sm:$0xff]
        %v979 = vld [vmem:[#allocation6 + $0x13d0] sm:$0xff]
        %v980 = vld [vmem:[#allocation6 + $0x13d8] sm:$0xff]
        %v981 = vld [vmem:[#allocation6 + $0x13e0] sm:$0xff]
        %v982 = vld [vmem:[#allocation6 + $0x13e8] sm:$0xff]
        %v983 = vld [vmem:[#allocation6 + $0x13f0] sm:$0xff]
        %v984 = vld [vmem:[#allocation6 + $0x13f8] sm:$0xff]
        %v985 = vld [vmem:[#allocation6 + $0x1400] sm:$0xff]
        %v986 = vld [vmem:[#allocation6 + $0x1408] sm:$0xff]
        %v987 = vld [vmem:[#allocation6 + $0x1410] sm:$0xff]
        %v988 = vld [vmem:[#allocation6 + $0x1418] sm:$0xff]
        %v989 = vld [vmem:[#allocation6 + $0x1420] sm:$0xff]
        %v990 = vld [vmem:[#allocation6 + $0x1428] sm:$0xff]
        %v991 = vld [vmem:[#allocation6 + $0x1430] sm:$0xff]
        %v992 = vld [vmem:[#allocation6 + $0x1438] sm:$0xff]
        %v993 = vld [vmem:[#allocation6 + $0x1440] sm:$0xff]
        %v994 = vld [vmem:[#allocation6 + $0x1448] sm:$0xff]
        %v995 = vld [vmem:[#allocation6 + $0x1450] sm:$0xff]
        %v996 = vld [vmem:[#allocation6 + $0x1458] sm:$0xff]
        %v997 = vld [vmem:[#allocation6 + $0x1460] sm:$0xff]
        %v998 = vld [vmem:[#allocation6 + $0x1468] sm:$0xff]
        %v999 = vld [vmem:[#allocation6 + $0x1470] sm:$0xff]
        %v1000 = vld [vmem:[#allocation6 + $0x1478] sm:$0xff]
        %v1001 = vld [vmem:[#allocation6 + $0x1480] sm:$0xff]
        %v1002 = vld [vmem:[#allocation6 + $0x1488] sm:$0xff]
        %v1003 = vld [vmem:[#allocation6 + $0x1490] sm:$0xff]
        %v1004 = vld [vmem:[#allocation6 + $0x1498] sm:$0xff]
        %v1005 = vld [vmem:[#allocation6 + $0x14a0] sm:$0xff]
        %v1006 = vld [vmem:[#allocation6 + $0x14a8] sm:$0xff]
        %v1007 = vld [vmem:[#allocation6 + $0x14b0] sm:$0xff]
        %v1008 = vld [vmem:[#allocation6 + $0x14b8] sm:$0xff]
        %v1009 = vld [vmem:[#allocation6 + $0x14c0] sm:$0xff]
        %v1010 = vld [vmem:[#allocation6 + $0x14c8] sm:$0xff]
        %v1011 = vld [vmem:[#allocation6 + $0x14d0] sm:$0xff]
        %v1012 = vld [vmem:[#allocation6 + $0x14d8] sm:$0xff]
        %v1013 = vld [vmem:[#allocation6 + $0x14e0] sm:$0xff]
        %v1014 = vld [vmem:[#allocation6 + $0x14e8] sm:$0xff]
        %v1015 = vld [vmem:[#allocation6 + $0x14f0] sm:$0xff]
        %v1016 = vld [vmem:[#allocation6 + $0x14f8] sm:$0xff]
        %v1017 = vld [vmem:[#allocation6 + $0x1500] sm:$0xff]
        %v1018 = vld [vmem:[#allocation6 + $0x1508] sm:$0xff]
        %v1019 = vld [vmem:[#allocation6 + $0x1510] sm:$0xff]
        %v1020 = vld [vmem:[#allocation6 + $0x1518] sm:$0xff]
        %v1021 = vld [vmem:[#allocation6 + $0x1520] sm:$0xff]
        %v1022 = vld [vmem:[#allocation6 + $0x1528] sm:$0xff]
        %v1023 = vld [vmem:[#allocation6 + $0x1530] sm:$0xff]
        %v1024 = vld [vmem:[#allocation6 + $0x1538] sm:$0xff]
        %v1025 = vld [vmem:[#allocation6 + $0x1540] sm:$0xff]
        %v1026 = vld [vmem:[#allocation6 + $0x1548] sm:$0xff]
        %v1027 = vld [vmem:[#allocation6 + $0x1550] sm:$0xff]
        %v1028 = vld [vmem:[#allocation6 + $0x1558] sm:$0xff]
        %v1029 = vld [vmem:[#allocation6 + $0x1560] sm:$0xff]
        %v1030 = vld [vmem:[#allocation6 + $0x1568] sm:$0xff]
        %v1031 = vld [vmem:[#allocation6 + $0x1570] sm:$0xff]
        %v1032 = vld [vmem:[#allocation6 + $0x1578] sm:$0xff]
        %v1033 = vld [vmem:[#allocation6 + $0x1580] sm:$0xff]
        %v1034 = vld [vmem:[#allocation6 + $0x1588] sm:$0xff]
        %v1035 = vld [vmem:[#allocation6 + $0x1590] sm:$0xff]
        %v1036 = vld [vmem:[#allocation6 + $0x1598] sm:$0xff]
        %v1037 = vld [vmem:[#allocation6 + $0x15a0] sm:$0xff]
        %v1038 = vld [vmem:[#allocation6 + $0x15a8] sm:$0xff]
        %v1039 = vld [vmem:[#allocation6 + $0x15b0] sm:$0xff]
        %v1040 = vld [vmem:[#allocation6 + $0x15b8] sm:$0xff]
        %v1041 = vld [vmem:[#allocation6 + $0x15c0] sm:$0xff]
        %v1042 = vld [vmem:[#allocation6 + $0x15c8] sm:$0xff]
        %v1043 = vld [vmem:[#allocation6 + $0x15d0] sm:$0xff]
        %v1044 = vld [vmem:[#allocation6 + $0x15d8] sm:$0xff]
        %v1045 = vld [vmem:[#allocation6 + $0x15e0] sm:$0xff]
        %v1046 = vld [vmem:[#allocation6 + $0x15e8] sm:$0xff]
        %v1047 = vld [vmem:[#allocation6 + $0x15f0] sm:$0xff]
        %v1048 = vld [vmem:[#allocation6 + $0x15f8] sm:$0xff]
        %v1049 = vld [vmem:[#allocation6 + $0x1600] sm:$0xff]
        %v1050 = vld [vmem:[#allocation6 + $0x1608] sm:$0xff]
        %v1051 = vld [vmem:[#allocation6 + $0x1610] sm:$0xff]
        %v1052 = vld [vmem:[#allocation6 + $0x1618] sm:$0xff]
        %v1053 = vld [vmem:[#allocation6 + $0x1620] sm:$0xff]
        %v1054 = vld [vmem:[#allocation6 + $0x1628] sm:$0xff]
        %v1055 = vld [vmem:[#allocation6 + $0x1630] sm:$0xff]
        %v1056 = vld [vmem:[#allocation6 + $0x1638] sm:$0xff]
        %v1057 = vld [vmem:[#allocation6 + $0x1640] sm:$0xff]
        %v1058 = vld [vmem:[#allocation6 + $0x1648] sm:$0xff]
        %v1059 = vld [vmem:[#allocation6 + $0x1650] sm:$0xff]
        %v1060 = vld [vmem:[#allocation6 + $0x1658] sm:$0xff]
        %v1061 = vld [vmem:[#allocation6 + $0x1660] sm:$0xff]
        %v1062 = vld [vmem:[#allocation6 + $0x1668] sm:$0xff]
        %v1063 = vld [vmem:[#allocation6 + $0x1670] sm:$0xff]
        %v1064 = vld [vmem:[#allocation6 + $0x1678] sm:$0xff]
        %v1065 = vld [vmem:[#allocation6 + $0x1680] sm:$0xff]
        %v1066 = vld [vmem:[#allocation6 + $0x1688] sm:$0xff]
        %v1067 = vld [vmem:[#allocation6 + $0x1690] sm:$0xff]
        %v1068 = vld [vmem:[#allocation6 + $0x1698] sm:$0xff]
        %v1069 = vld [vmem:[#allocation6 + $0x16a0] sm:$0xff]
        %v1070 = vld [vmem:[#allocation6 + $0x16a8] sm:$0xff]
        %v1071 = vld [vmem:[#allocation6 + $0x16b0] sm:$0xff]
        %v1072 = vld [vmem:[#allocation6 + $0x16b8] sm:$0xff]
        %v1073 = vld [vmem:[#allocation6 + $0x16c0] sm:$0xff]
        %v1074 = vld [vmem:[#allocation6 + $0x16c8] sm:$0xff]
        %v1075 = vld [vmem:[#allocation6 + $0x16d0] sm:$0xff]
        %v1076 = vld [vmem:[#allocation6 + $0x16d8] sm:$0xff]
        %v1077 = vld [vmem:[#allocation6 + $0x16e0] sm:$0xff]
        %v1078 = vld [vmem:[#allocation6 + $0x16e8] sm:$0xff]
        %v1079 = vld [vmem:[#allocation6 + $0x16f0] sm:$0xff]
        %v1080 = vld [vmem:[#allocation6 + $0x16f8] sm:$0xff]
        %v1081 = vld [vmem:[#allocation6 + $0x1700] sm:$0xff]
        %v1082 = vld [vmem:[#allocation6 + $0x1708] sm:$0xff]
        %v1083 = vld [vmem:[#allocation6 + $0x1710] sm:$0xff]
        %v1084 = vld [vmem:[#allocation6 + $0x1718] sm:$0xff]
        %v1085 = vld [vmem:[#allocation6 + $0x1720] sm:$0xff]
        %v1086 = vld [vmem:[#allocation6 + $0x1728] sm:$0xff]
        %v1087 = vld [vmem:[#allocation6 + $0x1730] sm:$0xff]
        %v1088 = vld [vmem:[#allocation6 + $0x1738] sm:$0xff]
        %v1089 = vld [vmem:[#allocation6 + $0x1740] sm:$0xff]
        %v1090 = vld [vmem:[#allocation6 + $0x1748] sm:$0xff]
        %v1091 = vld [vmem:[#allocation6 + $0x1750] sm:$0xff]
        %v1092 = vld [vmem:[#allocation6 + $0x1758] sm:$0xff]
        %v1093 = vld [vmem:[#allocation6 + $0x1760] sm:$0xff]
        %v1094 = vld [vmem:[#allocation6 + $0x1768] sm:$0xff]
        %v1095 = vld [vmem:[#allocation6 + $0x1770] sm:$0xff]
        %v1096 = vld [vmem:[#allocation6 + $0x1778] sm:$0xff]
        %v1097 = vld [vmem:[#allocation6 + $0x1780] sm:$0xff]
        %v1098 = vld [vmem:[#allocation6 + $0x1788] sm:$0xff]
        %v1099 = vld [vmem:[#allocation6 + $0x1790] sm:$0xff]
        %v1100 = vld [vmem:[#allocation6 + $0x1798] sm:$0xff]
        %v1101 = vld [vmem:[#allocation6 + $0x17a0] sm:$0xff]
        %v1102 = vld [vmem:[#allocation6 + $0x17a8] sm:$0xff]
        %v1103 = vld [vmem:[#allocation6 + $0x17b0] sm:$0xff]
        %v1104 = vld [vmem:[#allocation6 + $0x17b8] sm:$0xff]
        %v1105 = vld [vmem:[#allocation6 + $0x17c0] sm:$0xff]
        %v1106 = vld [vmem:[#allocation6 + $0x17c8] sm:$0xff]
        %v1107 = vld [vmem:[#allocation6 + $0x17d0] sm:$0xff]
        %v1108 = vld [vmem:[#allocation6 + $0x17d8] sm:$0xff]
        %v1109 = vld [vmem:[#allocation6 + $0x17e0] sm:$0xff]
        %v1110 = vld [vmem:[#allocation6 + $0x17e8] sm:$0xff]
        %v1111 = vld [vmem:[#allocation6 + $0x17f0] sm:$0xff]
        %v1112 = vld [vmem:[#allocation6 + $0x17f8] sm:$0xff]
        %v1113 = vld [vmem:[#allocation6 + $0x1800] sm:$0xff]
        %v1114 = vld [vmem:[#allocation6 + $0x1808] sm:$0xff]
        %v1115 = vld [vmem:[#allocation6 + $0x1810] sm:$0xff]
        %v1116 = vld [vmem:[#allocation6 + $0x1818] sm:$0xff]
        %v1117 = vld [vmem:[#allocation6 + $0x1820] sm:$0xff]
        %v1118 = vld [vmem:[#allocation6 + $0x1828] sm:$0xff]
        %v1119 = vld [vmem:[#allocation6 + $0x1830] sm:$0xff]
        %v1120 = vld [vmem:[#allocation6 + $0x1838] sm:$0xff]
        %v1121 = vld [vmem:[#allocation6 + $0x1840] sm:$0xff]
        %v1122 = vld [vmem:[#allocation6 + $0x1848] sm:$0xff]
        %v1123 = vld [vmem:[#allocation6 + $0x1850] sm:$0xff]
        %v1124 = vld [vmem:[#allocation6 + $0x1858] sm:$0xff]
        %v1125 = vld [vmem:[#allocation6 + $0x1860] sm:$0xff]
        %v1126 = vld [vmem:[#allocation6 + $0x1868] sm:$0xff]
        %v1127 = vld [vmem:[#allocation6 + $0x1870] sm:$0xff]
        %v1128 = vld [vmem:[#allocation6 + $0x1878] sm:$0xff]
        %v1129 = vld [vmem:[#allocation6 + $0x1880] sm:$0xff]
        %v1130 = vld [vmem:[#allocation6 + $0x1888] sm:$0xff]
        %v1131 = vld [vmem:[#allocation6 + $0x1890] sm:$0xff]
        %v1132 = vld [vmem:[#allocation6 + $0x1898] sm:$0xff]
        %v1133 = vld [vmem:[#allocation6 + $0x18a0] sm:$0xff]
        %v1134 = vld [vmem:[#allocation6 + $0x18a8] sm:$0xff]
        %v1135 = vld [vmem:[#allocation6 + $0x18b0] sm:$0xff]
        %v1136 = vld [vmem:[#allocation6 + $0x18b8] sm:$0xff]
        %v1137 = vld [vmem:[#allocation6 + $0x18c0] sm:$0xff]
        %v1138 = vld [vmem:[#allocation6 + $0x18c8] sm:$0xff]
        %v1139 = vld [vmem:[#allocation6 + $0x18d0] sm:$0xff]
        %v1140 = vld [vmem:[#allocation6 + $0x18d8] sm:$0xff]
        %v1141 = vld [vmem:[#allocation6 + $0x18e0] sm:$0xff]
        %v1142 = vld [vmem:[#allocation6 + $0x18e8] sm:$0xff]
        %v1143 = vld [vmem:[#allocation6 + $0x18f0] sm:$0xff]
        %v1144 = vld [vmem:[#allocation6 + $0x18f8] sm:$0xff]
        %v1145 = vld [vmem:[#allocation6 + $0x1900] sm:$0xff]
        %v1146 = vld [vmem:[#allocation6 + $0x1908] sm:$0xff]
        %v1147 = vld [vmem:[#allocation6 + $0x1910] sm:$0xff]
        %v1148 = vld [vmem:[#allocation6 + $0x1918] sm:$0xff]
        %v1149 = vld [vmem:[#allocation6 + $0x1920] sm:$0xff]
        %v1150 = vld [vmem:[#allocation6 + $0x1928] sm:$0xff]
        %v1151 = vld [vmem:[#allocation6 + $0x1930] sm:$0xff]
        %v1152 = vld [vmem:[#allocation6 + $0x1938] sm:$0xff]
        %v1153 = vld [vmem:[#allocation6 + $0x1940] sm:$0xff]
        %v1154 = vld [vmem:[#allocation6 + $0x1948] sm:$0xff]
        %v1155 = vld [vmem:[#allocation6 + $0x1950] sm:$0xff]
        %v1156 = vld [vmem:[#allocation6 + $0x1958] sm:$0xff]
        %v1157 = vld [vmem:[#allocation6 + $0x1960] sm:$0xff]
        %v1158 = vld [vmem:[#allocation6 + $0x1968] sm:$0xff]
        %v1159 = vld [vmem:[#allocation6 + $0x1970] sm:$0xff]
        %v1160 = vld [vmem:[#allocation6 + $0x1978] sm:$0xff]
        %v1161 = vld [vmem:[#allocation6 + $0x1980] sm:$0xff]
        %v1162 = vld [vmem:[#allocation6 + $0x1988] sm:$0xff]
        %v1163 = vld [vmem:[#allocation6 + $0x1990] sm:$0xff]
        %v1164 = vld [vmem:[#allocation6 + $0x1998] sm:$0xff]
        %v1165 = vld [vmem:[#allocation6 + $0x19a0] sm:$0xff]
        %v1166 = vld [vmem:[#allocation6 + $0x19a8] sm:$0xff]
        %v1167 = vld [vmem:[#allocation6 + $0x19b0] sm:$0xff]
        %v1168 = vld [vmem:[#allocation6 + $0x19b8] sm:$0xff]
        %v1169 = vld [vmem:[#allocation6 + $0x19c0] sm:$0xff]
        %v1170 = vld [vmem:[#allocation6 + $0x19c8] sm:$0xff]
        %v1171 = vld [vmem:[#allocation6 + $0x19d0] sm:$0xff]
        %v1172 = vld [vmem:[#allocation6 + $0x19d8] sm:$0xff]
        %v1173 = vld [vmem:[#allocation6 + $0x19e0] sm:$0xff]
        %v1174 = vld [vmem:[#allocation6 + $0x19e8] sm:$0xff]
        %v1175 = vld [vmem:[#allocation6 + $0x19f0] sm:$0xff]
        %v1176 = vld [vmem:[#allocation6 + $0x19f8] sm:$0xff]
        %v1177 = vld [vmem:[#allocation6 + $0x1a00] sm:$0xff]
        %v1178 = vld [vmem:[#allocation6 + $0x1a08] sm:$0xff]
        %v1179 = vld [vmem:[#allocation6 + $0x1a10] sm:$0xff]
        %v1180 = vld [vmem:[#allocation6 + $0x1a18] sm:$0xff]
        %v1181 = vld [vmem:[#allocation6 + $0x1a20] sm:$0xff]
        %v1182 = vld [vmem:[#allocation6 + $0x1a28] sm:$0xff]
        %v1183 = vld [vmem:[#allocation6 + $0x1a30] sm:$0xff]
        %v1184 = vld [vmem:[#allocation6 + $0x1a38] sm:$0xff]
        %v1185 = vld [vmem:[#allocation6 + $0x1a40] sm:$0xff]
        %v1186 = vld [vmem:[#allocation6 + $0x1a48] sm:$0xff]
        %v1187 = vld [vmem:[#allocation6 + $0x1a50] sm:$0xff]
        %v1188 = vld [vmem:[#allocation6 + $0x1a58] sm:$0xff]
        %v1189 = vld [vmem:[#allocation6 + $0x1a60] sm:$0xff]
        %v1190 = vld [vmem:[#allocation6 + $0x1a68] sm:$0xff]
        %v1191 = vld [vmem:[#allocation6 + $0x1a70] sm:$0xff]
        %v1192 = vld [vmem:[#allocation6 + $0x1a78] sm:$0xff]
        %v1193 = vld [vmem:[#allocation6 + $0x1a80] sm:$0xff]
        %v1194 = vld [vmem:[#allocation6 + $0x1a88] sm:$0xff]
        %v1195 = vld [vmem:[#allocation6 + $0x1a90] sm:$0xff]
        %v1196 = vld [vmem:[#allocation6 + $0x1a98] sm:$0xff]
        %v1197 = vld [vmem:[#allocation6 + $0x1aa0] sm:$0xff]
        %v1198 = vld [vmem:[#allocation6 + $0x1aa8] sm:$0xff]
        %v1199 = vld [vmem:[#allocation6 + $0x1ab0] sm:$0xff]
        %v1200 = vld [vmem:[#allocation6 + $0x1ab8] sm:$0xff]
        %v1201 = vld [vmem:[#allocation6 + $0x1ac0] sm:$0xff]
        %v1202 = vld [vmem:[#allocation6 + $0x1ac8] sm:$0xff]
        %v1203 = vld [vmem:[#allocation6 + $0x1ad0] sm:$0xff]
        %v1204 = vld [vmem:[#allocation6 + $0x1ad8] sm:$0xff]
        %v1205 = vld [vmem:[#allocation6 + $0x1ae0] sm:$0xff]
        %v1206 = vld [vmem:[#allocation6 + $0x1ae8] sm:$0xff]
        %v1207 = vld [vmem:[#allocation6 + $0x1af0] sm:$0xff]
        %v1208 = vld [vmem:[#allocation6 + $0x1af8] sm:$0xff]
        %1209 = vmatprep.subr.mxu0 %v346
        %1210 = vmatpush1.msra.mxu0 %v345
        %1211 = vmatprep.subr.mxu0 %v355
        %1212 = vmatpush1.msra.mxu0 %v354
        %1213 = vmatprep.subr.mxu0 %v364
        %1214 = vmatpush1.msra.mxu0 %v363
        %1215 = vmatprep.subr.mxu0 %v373
        %1216 = vmatpush1.msra.mxu0 %v372
        %1217 = vmatprep.subr.mxu0 %v382
        %1218 = vmatpush1.msra.mxu0 %v381
        %1219 = vmatprep.subr.mxu0 %v391
        %1220 = vmatpush1.msra.mxu0 %v390
        %1221 = vmatprep.subr.mxu0 %v400
        %1222 = vmatpush1.msra.mxu0 %v399
        %1223 = vmatprep.subr.mxu0 %v409
        %1224 = vmatpush1.msra.mxu0 %v408
        %1225 = vmatprep.subr.mxu0 %v418
        %1226 = vmatpush1.msra.mxu0 %v417
        %1227 = vmatprep.subr.mxu0 %v427
        %1228 = vmatpush1.msra.mxu0 %v426
        %1229 = vmatprep.subr.mxu0 %v436
        %1230 = vmatpush1.msra.mxu0 %v435
        %1231 = vmatprep.subr.mxu0 %v445
        %1232 = vmatpush1.msra.mxu0 %v444
        %1233 = vmatprep.subr.mxu0 %v454
        %1234 = vmatpush1.msra.mxu0 %v453
        %1235 = vmatprep.subr.mxu0 %v463
        %1236 = vmatpush1.msra.mxu0 %v462
        %1237 = vmatprep.subr.mxu0 %v472
        %1238 = vmatpush1.msra.mxu0 %v471
        %1239 = vmatprep.subr.mxu0 %v481
        %1240 = vmatpush1.msra.mxu0 %v480
        %1241 = vmatprep.subr.mxu0 %v490
        %1242 = vmatpush1.msra.mxu0 %v489
        %1243 = vmatprep.subr.mxu0 %v499
        %1244 = vmatpush1.msra.mxu0 %v498
        %1245 = vmatprep.subr.mxu0 %v508
        %1246 = vmatpush1.msra.mxu0 %v507
        %1247 = vmatprep.subr.mxu0 %v517
        %1248 = vmatpush1.msra.mxu0 %v516
        %1249 = vmatprep.subr.mxu0 %v526
        %1250 = vmatpush1.msra.mxu0 %v525
        %1251 = vmatprep.subr.mxu0 %v535
        %1252 = vmatpush1.msra.mxu0 %v534
        %1253 = vmatprep.subr.mxu0 %v544
        %1254 = vmatpush1.msra.mxu0 %v543
        %1255 = vmatprep.subr.mxu0 %v553
        %1256 = vmatpush1.msra.mxu0 %v552
        %1257 = vmatprep.subr.mxu0 %v562
        %1258 = vmatpush1.msra.mxu0 %v561
        %1259 = vmatprep.subr.mxu0 %v571
        %1260 = vmatpush1.msra.mxu0 %v570
        %1261 = vmatprep.subr.mxu0 %v580
        %1262 = vmatpush1.msra.mxu0 %v579
        %1263 = vmatprep.subr.mxu0 %v589
        %1264 = vmatpush1.msra.mxu0 %v588
        %1265 = vmatprep.subr.mxu0 %v598
        %1266 = vmatpush1.msra.mxu0 %v597
        %1267 = vmatprep.subr.mxu0 %v607
        %1268 = vmatpush1.msra.mxu0 %v606
        %1269 = vmatprep.subr.mxu0 %v616
        %1270 = vmatpush1.msra.mxu0 %v615
        %1271 = vmatprep.subr.mxu0 %v625
        %1272 = vmatpush1.msra.mxu0 %v624
        %1273 = vmatprep.mubr.f32.mxu0 %v298
        %1274 = vmatmul.mubr.f32.gmra.mrb[0].mxu0 %v297
        %v1275 = vpop.f32.mrb[0].mxu0
        %v1276 = vadd.f32 0.0, %v1275
        %v1277 = vpop.f32.mrb[0].mxu0
        %v1278 = vadd.f32 0.0, %v1277
        %1279 = vmatprep.mubr.f32.mxu0 %v304
        %1280 = vmatmul.mubr.f32.gmra.mrb[0].mxu0 %v303
        %v1281 = vpop.f32.mrb[0].mxu0
        %v1282 = vadd.f32 0.0, %v1281
        %v1283 = vpop.f32.mrb[0].mxu0
        %v1284 = vadd.f32 0.0, %v1283
        %1285 = vmatprep.mubr.f32.mxu0 %v310
        %1286 = vmatmul.mubr.f32.gmra.mrb[0].mxu0 %v309
        %v1287 = vpop.f32.mrb[0].mxu0
        %v1288 = vadd.f32 0.0, %v1287
        %v1289 = vpop.f32.mrb[0].mxu0
        %v1290 = vadd.f32 0.0, %v1289
        %1291 = vmatprep.mubr.f32.mxu0 %v316
        %1292 = vmatmul.mubr.f32.gmra.mrb[0].mxu0 %v315
        %v1293 = vpop.f32.mrb[0].mxu0
        %v1294 = vadd.f32 0.0, %v1293
        %v1295 = vpop.f32.mrb[0].mxu0
        %v1296 = vadd.f32 0.0, %v1295
        %1297 = vmatprep.mubr.f32.mxu0 %v322
        %1298 = vmatmul.mubr.f32.gmra.mrb[0].mxu0 %v321
        %v1299 = vpop.f32.mrb[0].mxu0
        %v1300 = vadd.f32 0.0, %v1299
        %v1301 = vpop.f32.mrb[0].mxu0
        %v1302 = vadd.f32 0.0, %v1301
        %1303 = vmatprep.mubr.f32.mxu0 %v328
        %1304 = vmatmul.mubr.f32.gmra.mrb[0].mxu0 %v327
        %v1305 = vpop.f32.mrb[0].mxu0
        %v1306 = vadd.f32 0.0, %v1305
        %v1307 = vpop.f32.mrb[0].mxu0
        %v1308 = vadd.f32 0.0, %v1307
        %1309 = vmatprep.mubr.f32.mxu0 %v334
        %1310 = vmatmul.mubr.f32.gmra.mrb[0].mxu0 %v333
        %v1311 = vpop.f32.mrb[0].mxu0
        %v1312 = vadd.f32 0.0, %v1311
        %v1313 = vpop.f32.mrb[0].mxu0
        %v1314 = vadd.f32 0.0, %v1313
        %1315 = vmatprep.mubr.f32.mxu0 %v340
        %1316 = vmatmul.mubr.f32.gmra.mrb[0].mxu0 %v339
        %v1317 = vpop.f32.mrb[0].mxu0
        %v1318 = vadd.f32 0.0, %v1317
        %v1319 = vpop.f32.mrb[0].mxu0
        %v1320 = vadd.f32 0.0, %v1319
        %1321 = vdwg.mxu0
        %1322 = vmatprep.subr.mxu0 %v634
        %1323 = vmatpush1.msra.mxu0 %v633
        %1324 = vmatprep.subr.mxu0 %v643
        %1325 = vmatpush1.msra.mxu0 %v642
        %1326 = vmatprep.subr.mxu0 %v652
        %1327 = vmatpush1.msra.mxu0 %v651
        %1328 = vmatprep.subr.mxu0 %v661
        %1329 = vmatpush1.msra.mxu0 %v660
        %1330 = vmatprep.subr.mxu0 %v670
        %1331 = vmatpush1.msra.mxu0 %v669
        %1332 = vmatprep.subr.mxu0 %v679
        %1333 = vmatpush1.msra.mxu0 %v678
        %1334 = vmatprep.subr.mxu0 %v688
        %1335 = vmatpush1.msra.mxu0 %v687
        %1336 = vmatprep.subr.mxu0 %v697
        %1337 = vmatpush1.msra.mxu0 %v696
        %1338 = vmatprep.subr.mxu0 %v706
        %1339 = vmatpush1.msra.mxu0 %v705
        %1340 = vmatprep.subr.mxu0 %v715
        %1341 = vmatpush1.msra.mxu0 %v714
        %1342 = vmatprep.subr.mxu0 %v724
        %1343 = vmatpush1.msra.mxu0 %v723
        %1344 = vmatprep.subr.mxu0 %v733
        %1345 = vmatpush1.msra.mxu0 %v732
        %1346 = vmatprep.subr.mxu0 %v742
        %1347 = vmatpush1.msra.mxu0 %v741
        %1348 = vmatprep.subr.mxu0 %v751
        %1349 = vmatpush1.msra.mxu0 %v750
        %1350 = vmatprep.subr.mxu0 %v760
        %1351 = vmatpush1.msra.mxu0 %v759
        %1352 = vmatprep.subr.mxu0 %v769
        %1353 = vmatpush1.msra.mxu0 %v768
        %1354 = vmatprep.subr.mxu0 %v778
        %1355 = vmatpush1.msra.mxu0 %v777
        %1356 = vmatprep.subr.mxu0 %v787
        %1357 = vmatpush1.msra.mxu0 %v786
        %1358 = vmatprep.subr.mxu0 %v796
        %1359 = vmatpush1.msra.mxu0 %v795
        %1360 = vmatprep.subr.mxu0 %v805
        %1361 = vmatpush1.msra.mxu0 %v804
        %1362 = vmatprep.subr.mxu0 %v814
        %1363 = vmatpush1.msra.mxu0 %v813
        %1364 = vmatprep.subr.mxu0 %v823
        %1365 = vmatpush1.msra.mxu0 %v822
        %1366 = vmatprep.subr.mxu0 %v832
        %1367 = vmatpush1.msra.mxu0 %v831
        %1368 = vmatprep.subr.mxu0 %v841
        %1369 = vmatpush1.msra.mxu0 %v840
        %1370 = vmatprep.subr.mxu0 %v850
        %1371 = vmatpush1.msra.mxu0 %v849
        %1372 = vmatprep.subr.mxu0 %v859
        %1373 = vmatpush1.msra.mxu0 %v858
        %1374 = vmatprep.subr.mxu0 %v868
        %1375 = vmatpush1.msra.mxu0 %v867
        %1376 = vmatprep.subr.mxu0 %v877
        %1377 = vmatpush1.msra.mxu0 %v876
        %1378 = vmatprep.subr.mxu0 %v886
        %1379 = vmatpush1.msra.mxu0 %v885
        %1380 = vmatprep.subr.mxu0 %v895
        %1381 = vmatpush1.msra.mxu0 %v894
        %1382 = vmatprep.subr.mxu0 %v904
        %1383 = vmatpush1.msra.mxu0 %v903
        %1384 = vmatprep.subr.mxu0 %v913
        %1385 = vmatpush1.msra.mxu0 %v912
        %1386 = vmatprep.mubr.f32.mxu0 %v300
        %1387 = vmatmul.mubr.f32.gmra.mrb[0].mxu0 %v299
        %v1388 = vpop.f32.mrb[0].mxu0
        %v1389 = vadd.f32 %v1276, %v1388
        %v1390 = vpop.f32.mrb[0].mxu0
        %v1391 = vadd.f32 %v1278, %v1390
        %1392 = vmatprep.mubr.f32.mxu0 %v306
        %1393 = vmatmul.mubr.f32.gmra.mrb[0].mxu0 %v305
        %v1394 = vpop.f32.mrb[0].mxu0
        %v1395 = vadd.f32 %v1282, %v1394
        %v1396 = vpop.f32.mrb[0].mxu0
        %v1397 = vadd.f32 %v1284, %v1396
        %1398 = vmatprep.mubr.f32.mxu0 %v312
        %1399 = vmatmul.mubr.f32.gmra.mrb[0].mxu0 %v311
        %v1400 = vpop.f32.mrb[0].mxu0
        %v1401 = vadd.f32 %v1288, %v1400
        %v1402 = vpop.f32.mrb[0].mxu0
        %v1403 = vadd.f32 %v1290, %v1402
        %1404 = vmatprep.mubr.f32.mxu0 %v318
        %1405 = vmatmul.mubr.f32.gmra.mrb[0].mxu0 %v317
        %v1406 = vpop.f32.mrb[0].mxu0
        %v1407 = vadd.f32 %v1294, %v1406
        %v1408 = vpop.f32.mrb[0].mxu0
        %v1409 = vadd.f32 %v1296, %v1408
        %1410 = vmatprep.mubr.f32.mxu0 %v324
        %1411 = vmatmul.mubr.f32.gmra.mrb[0].mxu0 %v323
        %v1412 = vpop.f32.mrb[0].mxu0
        %v1413 = vadd.f32 %v1300, %v1412
        %v1414 = vpop.f32.mrb[0].mxu0
        %v1415 = vadd.f32 %v1302, %v1414
        %1416 = vmatprep.mubr.f32.mxu0 %v330
        %1417 = vmatmul.mubr.f32.gmra.mrb[0].mxu0 %v329
        %v1418 = vpop.f32.mrb[0].mxu0
        %v1419 = vadd.f32 %v1306, %v1418
        %v1420 = vpop.f32.mrb[0].mxu0
        %v1421 = vadd.f32 %v1308, %v1420
        %1422 = vmatprep.mubr.f32.mxu0 %v336
        %1423 = vmatmul.mubr.f32.gmra.mrb[0].mxu0 %v335
        %v1424 = vpop.f32.mrb[0].mxu0
        %v1425 = vadd.f32 %v1312, %v1424
        %v1426 = vpop.f32.mrb[0].mxu0
        %v1427 = vadd.f32 %v1314, %v1426
        %1428 = vmatprep.mubr.f32.mxu0 %v342
        %1429 = vmatmul.mubr.f32.gmra.mrb[0].mxu0 %v341
        %v1430 = vpop.f32.mrb[0].mxu0
        %v1431 = vadd.f32 %v1318, %v1430
        %v1432 = vpop.f32.mrb[0].mxu0
        %v1433 = vadd.f32 %v1320, %v1432
        %1434 = vdwg.mxu0
        %1435 = vmatprep.subr.mxu0 %v922
        %1436 = vmatpush1.msra.mxu0 %v921
        %1437 = vmatprep.subr.mxu0 %v931
        %1438 = vmatpush1.msra.mxu0 %v930
        %1439 = vmatprep.subr.mxu0 %v940
        %1440 = vmatpush1.msra.mxu0 %v939
        %1441 = vmatprep.subr.mxu0 %v949
        %1442 = vmatpush1.msra.mxu0 %v948
        %1443 = vmatprep.subr.mxu0 %v958
        %1444 = vmatpush1.msra.mxu0 %v957
        %1445 = vmatprep.subr.mxu0 %v967
        %1446 = vmatpush1.msra.mxu0 %v966
        %1447 = vmatprep.subr.mxu0 %v976
        %1448 = vmatpush1.msra.mxu0 %v975
        %1449 = vmatprep.subr.mxu0 %v985
        %1450 = vmatpush1.msra.mxu0 %v984
        %1451 = vmatprep.subr.mxu0 %v994
        %1452 = vmatpush1.msra.mxu0 %v993
        %1453 = vmatprep.subr.mxu0 %v1003
        %1454 = vmatpush1.msra.mxu0 %v1002
        %1455 = vmatprep.subr.mxu0 %v1012
        %1456 = vmatpush1.msra.mxu0 %v1011
        %1457 = vmatprep.subr.mxu0 %v1021
        %1458 = vmatpush1.msra.mxu0 %v1020
        %1459 = vmatprep.subr.mxu0 %v1030
        %1460 = vmatpush1.msra.mxu0 %v1029
        %1461 = vmatprep.subr.mxu0 %v1039
        %1462 = vmatpush1.msra.mxu0 %v1038
        %1463 = vmatprep.subr.mxu0 %v1048
        %1464 = vmatpush1.msra.mxu0 %v1047
        %1465 = vmatprep.subr.mxu0 %v1057
        %1466 = vmatpush1.msra.mxu0 %v1056
        %1467 = vmatprep.subr.mxu0 %v1066
        %1468 = vmatpush1.msra.mxu0 %v1065
        %1469 = vmatprep.subr.mxu0 %v1075
        %1470 = vmatpush1.msra.mxu0 %v1074
        %1471 = vmatprep.subr.mxu0 %v1084
        %1472 = vmatpush1.msra.mxu0 %v1083
        %1473 = vmatprep.subr.mxu0 %v1093
        %1474 = vmatpush1.msra.mxu0 %v1092
        %1475 = vmatprep.subr.mxu0 %v1102
        %1476 = vmatpush1.msra.mxu0 %v1101
        %1477 = vmatprep.subr.mxu0 %v1111
        %1478 = vmatpush1.msra.mxu0 %v1110
        %1479 = vmatprep.subr.mxu0 %v1120
        %1480 = vmatpush1.msra.mxu0 %v1119
        %1481 = vmatprep.subr.mxu0 %v1129
        %1482 = vmatpush1.msra.mxu0 %v1128
        %1483 = vmatprep.subr.mxu0 %v1138
        %1484 = vmatpush1.msra.mxu0 %v1137
        %1485 = vmatprep.subr.mxu0 %v1147
        %1486 = vmatpush1.msra.mxu0 %v1146
        %1487 = vmatprep.subr.mxu0 %v1156
        %1488 = vmatpush1.msra.mxu0 %v1155
        %1489 = vmatprep.subr.mxu0 %v1165
        %1490 = vmatpush1.msra.mxu0 %v1164
        %1491 = vmatprep.subr.mxu0 %v1174
        %1492 = vmatpush1.msra.mxu0 %v1173
        %1493 = vmatprep.subr.mxu0 %v1183
        %1494 = vmatpush1.msra.mxu0 %v1182
        %1495 = vmatprep.subr.mxu0 %v1192
        %1496 = vmatpush1.msra.mxu0 %v1191
        %1497 = vmatprep.subr.mxu0 %v1201
        %1498 = vmatpush1.msra.mxu0 %v1200
        %1499 = vmatprep.mubr.f32.mxu0 %v302
        %1500 = vmatmul.mubr.f32.gmra.mrb[0].mxu0 %v301
        %v1501 = vpop.f32.mrb[0].mxu0
        %v1502 = vadd.f32 %v1389, %v1501
        %v1503 = vpop.f32.mrb[0].mxu0
        %v1504 = vadd.f32 %v1391, %v1503
        %1505 = vmatprep.mubr.f32.mxu0 %v308
        %1506 = vmatmul.mubr.f32.gmra.mrb[0].mxu0 %v307
        %v1507 = vpop.f32.mrb[0].mxu0
        %v1508 = vadd.f32 %v1395, %v1507
        %v1509 = vpop.f32.mrb[0].mxu0
        %v1510 = vadd.f32 %v1397, %v1509
        %1511 = vmatprep.mubr.f32.mxu0 %v314
        %1512 = vmatmul.mubr.f32.gmra.mrb[0].mxu0 %v313
        %v1513 = vpop.f32.mrb[0].mxu0
        %v1514 = vadd.f32 %v1401, %v1513
        %v1515 = vpop.f32.mrb[0].mxu0
        %v1516 = vadd.f32 %v1403, %v1515
        %1517 = vmatprep.mubr.f32.mxu0 %v320
        %1518 = vmatmul.mubr.f32.gmra.mrb[0].mxu0 %v319
        %v1519 = vpop.f32.mrb[0].mxu0
        %v1520 = vadd.f32 %v1407, %v1519
        %v1521 = vpop.f32.mrb[0].mxu0
        %v1522 = vadd.f32 %v1409, %v1521
        %1523 = vmatprep.mubr.f32.mxu0 %v326
        %1524 = vmatmul.mubr.f32.gmra.mrb[0].mxu0 %v325
        %v1525 = vpop.f32.mrb[0].mxu0
        %v1526 = vadd.f32 %v1413, %v1525
        %v1527 = vpop.f32.mrb[0].mxu0
        %v1528 = vadd.f32 %v1415, %v1527
        %1529 = vmatprep.mubr.f32.mxu0 %v332
        %1530 = vmatmul.mubr.f32.gmra.mrb[0].mxu0 %v331
        %v1531 = vpop.f32.mrb[0].mxu0
        %v1532 = vadd.f32 %v1419, %v1531
        %v1533 = vpop.f32.mrb[0].mxu0
        %v1534 = vadd.f32 %v1421, %v1533
        %1535 = vmatprep.mubr.f32.mxu0 %v338
        %1536 = vmatmul.mubr.f32.gmra.mrb[0].mxu0 %v337
        %v1537 = vpop.f32.mrb[0].mxu0
        %v1538 = vadd.f32 %v1425, %v1537
        %v1539 = vpop.f32.mrb[0].mxu0
        %v1540 = vadd.f32 %v1427, %v1539
        %1541 = vmatprep.mubr.f32.mxu0 %v344
        %1542 = vmatmul.mubr.f32.gmra.mrb[0].mxu0 %v343
        %v1543 = vpop.f32.mrb[0].mxu0
        %v1544 = vadd.f32 %v1431, %v1543
        %v1545 = vpop.f32.mrb[0].mxu0
        %v1546 = vadd.f32 %v1433, %v1545
        %1547 = vdwg.mxu0
        %1548 = vmatprep.subr.mxu0 %v348
        %1549 = vmatpush1.msra.mxu0 %v347
        %1550 = vmatprep.subr.mxu0 %v357
        %1551 = vmatpush1.msra.mxu0 %v356
        %1552 = vmatprep.subr.mxu0 %v366
        %1553 = vmatpush1.msra.mxu0 %v365
        %1554 = vmatprep.subr.mxu0 %v375
        %1555 = vmatpush1.msra.mxu0 %v374
        %1556 = vmatprep.subr.mxu0 %v384
        %1557 = vmatpush1.msra.mxu0 %v383
        %1558 = vmatprep.subr.mxu0 %v393
        %1559 = vmatpush1.msra.mxu0 %v392
        %1560 = vmatprep.subr.mxu0 %v402
        %1561 = vmatpush1.msra.mxu0 %v401
        %1562 = vmatprep.subr.mxu0 %v411
        %1563 = vmatpush1.msra.mxu0 %v410
        %1564 = vmatprep.subr.mxu0 %v420
        %1565 = vmatpush1.msra.mxu0 %v419
        %1566 = vmatprep.subr.mxu0 %v429
        %1567 = vmatpush1.msra.mxu0 %v428
        %1568 = vmatprep.subr.mxu0 %v438
        %1569 = vmatpush1.msra.mxu0 %v437
        %1570 = vmatprep.subr.mxu0 %v447
        %1571 = vmatpush1.msra.mxu0 %v446
        %1572 = vmatprep.subr.mxu0 %v456
        %1573 = vmatpush1.msra.mxu0 %v455
        %1574 = vmatprep.subr.mxu0 %v465
        %1575 = vmatpush1.msra.mxu0 %v464
        %1576 = vmatprep.subr.mxu0 %v474
        %1577 = vmatpush1.msra.mxu0 %v473
        %1578 = vmatprep.subr.mxu0 %v483
        %1579 = vmatpush1.msra.mxu0 %v482
        %1580 = vmatprep.subr.mxu0 %v492
        %1581 = vmatpush1.msra.mxu0 %v491
        %1582 = vmatprep.subr.mxu0 %v501
        %1583 = vmatpush1.msra.mxu0 %v500
        %1584 = vmatprep.subr.mxu0 %v510
        %1585 = vmatpush1.msra.mxu0 %v509
        %1586 = vmatprep.subr.mxu0 %v519
        %1587 = vmatpush1.msra.mxu0 %v518
        %1588 = vmatprep.subr.mxu0 %v528
        %1589 = vmatpush1.msra.mxu0 %v527
        %1590 = vmatprep.subr.mxu0 %v537
        %1591 = vmatpush1.msra.mxu0 %v536
        %1592 = vmatprep.subr.mxu0 %v546
        %1593 = vmatpush1.msra.mxu0 %v545
        %1594 = vmatprep.subr.mxu0 %v555
        %1595 = vmatpush1.msra.mxu0 %v554
        %1596 = vmatprep.subr.mxu0 %v564
        %1597 = vmatpush1.msra.mxu0 %v563
        %1598 = vmatprep.subr.mxu0 %v573
        %1599 = vmatpush1.msra.mxu0 %v572
        %1600 = vmatprep.subr.mxu0 %v582
        %1601 = vmatpush1.msra.mxu0 %v581
        %1602 = vmatprep.subr.mxu0 %v591
        %1603 = vmatpush1.msra.mxu0 %v590
        %1604 = vmatprep.subr.mxu0 %v600
        %1605 = vmatpush1.msra.mxu0 %v599
        %1606 = vmatprep.subr.mxu0 %v609
        %1607 = vmatpush1.msra.mxu0 %v608
        %1608 = vmatprep.subr.mxu0 %v618
        %1609 = vmatpush1.msra.mxu0 %v617
        %1610 = vmatprep.subr.mxu0 %v627
        %1611 = vmatpush1.msra.mxu0 %v626
        %1612 = vmatprep.mubr.f32.mxu0 %v298
        %1613 = vmatmul.mubr.f32.gmra.mrb[0].mxu0 %v297
        %v1614 = vpop.f32.mrb[0].mxu0
        %v1615 = vadd.f32 0.0, %v1614
        %v1616 = vpop.f32.mrb[0].mxu0
        %v1617 = vadd.f32 0.0, %v1616
        %1618 = vmatprep.mubr.f32.mxu0 %v304
        %1619 = vmatmul.mubr.f32.gmra.mrb[0].mxu0 %v303
        %v1620 = vpop.f32.mrb[0].mxu0
        %v1621 = vadd.f32 0.0, %v1620
        %v1622 = vpop.f32.mrb[0].mxu0
        %v1623 = vadd.f32 0.0, %v1622
        %1624 = vmatprep.mubr.f32.mxu0 %v310
        %1625 = vmatmul.mubr.f32.gmra.mrb[0].mxu0 %v309
        %v1626 = vpop.f32.mrb[0].mxu0
        %v1627 = vadd.f32 0.0, %v1626
        %v1628 = vpop.f32.mrb[0].mxu0
        %v1629 = vadd.f32 0.0, %v1628
        %1630 = vmatprep.mubr.f32.mxu0 %v316
        %1631 = vmatmul.mubr.f32.gmra.mrb[0].mxu0 %v315
        %v1632 = vpop.f32.mrb[0].mxu0
        %v1633 = vadd.f32 0.0, %v1632
        %v1634 = vpop.f32.mrb[0].mxu0
        %v1635 = vadd.f32 0.0, %v1634
        %1636 = vmatprep.mubr.f32.mxu0 %v322
        %1637 = vmatmul.mubr.f32.gmra.mrb[0].mxu0 %v321
        %v1638 = vpop.f32.mrb[0].mxu0
        %v1639 = vadd.f32 0.0, %v1638
        %v1640 = vpop.f32.mrb[0].mxu0
        %v1641 = vadd.f32 0.0, %v1640
        %1642 = vmatprep.mubr.f32.mxu0 %v328
        %1643 = vmatmul.mubr.f32.gmra.mrb[0].mxu0 %v327
        %v1644 = vpop.f32.mrb[0].mxu0
        %v1645 = vadd.f32 0.0, %v1644
        %v1646 = vpop.f32.mrb[0].mxu0
        %v1647 = vadd.f32 0.0, %v1646
        %1648 = vmatprep.mubr.f32.mxu0 %v334
        %1649 = vmatmul.mubr.f32.gmra.mrb[0].mxu0 %v333
        %v1650 = vpop.f32.mrb[0].mxu0
        %v1651 = vadd.f32 0.0, %v1650
        %v1652 = vpop.f32.mrb[0].mxu0
        %v1653 = vadd.f32 0.0, %v1652
        %1654 = vmatprep.mubr.f32.mxu0 %v340
        %1655 = vmatmul.mubr.f32.gmra.mrb[0].mxu0 %v339
        %v1656 = vpop.f32.mrb[0].mxu0
        %v1657 = vadd.f32 0.0, %v1656
        %v1658 = vpop.f32.mrb[0].mxu0
        %v1659 = vadd.f32 0.0, %v1658
        %1660 = vdwg.mxu0
        %1661 = vmatprep.subr.mxu0 %v636
        %1662 = vmatpush1.msra.mxu0 %v635
        %1663 = vmatprep.subr.mxu0 %v645
        %1664 = vmatpush1.msra.mxu0 %v644
        %1665 = vmatprep.subr.mxu0 %v654
        %1666 = vmatpush1.msra.mxu0 %v653
        %1667 = vmatprep.subr.mxu0 %v663
        %1668 = vmatpush1.msra.mxu0 %v662
        %1669 = vmatprep.subr.mxu0 %v672
        %1670 = vmatpush1.msra.mxu0 %v671
        %1671 = vmatprep.subr.mxu0 %v681
        %1672 = vmatpush1.msra.mxu0 %v680
        %1673 = vmatprep.subr.mxu0 %v690
        %1674 = vmatpush1.msra.mxu0 %v689
        %1675 = vmatprep.subr.mxu0 %v699
        %1676 = vmatpush1.msra.mxu0 %v698
        %1677 = vmatprep.subr.mxu0 %v708
        %1678 = vmatpush1.msra.mxu0 %v707
        %1679 = vmatprep.subr.mxu0 %v717
        %1680 = vmatpush1.msra.mxu0 %v716
        %1681 = vmatprep.subr.mxu0 %v726
        %1682 = vmatpush1.msra.mxu0 %v725
        %1683 = vmatprep.subr.mxu0 %v735
        %1684 = vmatpush1.msra.mxu0 %v734
        %1685 = vmatprep.subr.mxu0 %v744
        %1686 = vmatpush1.msra.mxu0 %v743
        %1687 = vmatprep.subr.mxu0 %v753
        %1688 = vmatpush1.msra.mxu0 %v752
        %1689 = vmatprep.subr.mxu0 %v762
        %1690 = vmatpush1.msra.mxu0 %v761
        %1691 = vmatprep.subr.mxu0 %v771
        %1692 = vmatpush1.msra.mxu0 %v770
        %1693 = vmatprep.subr.mxu0 %v780
        %1694 = vmatpush1.msra.mxu0 %v779
        %1695 = vmatprep.subr.mxu0 %v789
        %1696 = vmatpush1.msra.mxu0 %v788
        %1697 = vmatprep.subr.mxu0 %v798
        %1698 = vmatpush1.msra.mxu0 %v797
        %1699 = vmatprep.subr.mxu0 %v807
        %1700 = vmatpush1.msra.mxu0 %v806
        %1701 = vmatprep.subr.mxu0 %v816
        %1702 = vmatpush1.msra.mxu0 %v815
        %1703 = vmatprep.subr.mxu0 %v825
        %1704 = vmatpush1.msra.mxu0 %v824
        %1705 = vmatprep.subr.mxu0 %v834
        %1706 = vmatpush1.msra.mxu0 %v833
        %1707 = vmatprep.subr.mxu0 %v843
        %1708 = vmatpush1.msra.mxu0 %v842
        %1709 = vmatprep.subr.mxu0 %v852
        %1710 = vmatpush1.msra.mxu0 %v851
        %1711 = vmatprep.subr.mxu0 %v861
        %1712 = vmatpush1.msra.mxu0 %v860
        %1713 = vmatprep.subr.mxu0 %v870
        %1714 = vmatpush1.msra.mxu0 %v869
        %1715 = vmatprep.subr.mxu0 %v879
        %1716 = vmatpush1.msra.mxu0 %v878
        %1717 = vmatprep.subr.mxu0 %v888
        %1718 = vmatpush1.msra.mxu0 %v887
        %1719 = vmatprep.subr.mxu0 %v897
        %1720 = vmatpush1.msra.mxu0 %v896
        %1721 = vmatprep.subr.mxu0 %v906
        %1722 = vmatpush1.msra.mxu0 %v905
        %1723 = vmatprep.subr.mxu0 %v915
        %1724 = vmatpush1.msra.mxu0 %v914
        %1725 = vmatprep.mubr.f32.mxu0 %v300
        %1726 = vmatmul.mubr.f32.gmra.mrb[0].mxu0 %v299
        %v1727 = vpop.f32.mrb[0].mxu0
        %v1728 = vadd.f32 %v1615, %v1727
        %v1729 = vpop.f32.mrb[0].mxu0
        %v1730 = vadd.f32 %v1617, %v1729
        %1731 = vmatprep.mubr.f32.mxu0 %v306
        %1732 = vmatmul.mubr.f32.gmra.mrb[0].mxu0 %v305
        %v1733 = vpop.f32.mrb[0].mxu0
        %v1734 = vadd.f32 %v1621, %v1733
        %v1735 = vpop.f32.mrb[0].mxu0
        %v1736 = vadd.f32 %v1623, %v1735
        %1737 = vmatprep.mubr.f32.mxu0 %v312
        %1738 = vmatmul.mubr.f32.gmra.mrb[0].mxu0 %v311
        %v1739 = vpop.f32.mrb[0].mxu0
        %v1740 = vadd.f32 %v1627, %v1739
        %v1741 = vpop.f32.mrb[0].mxu0
        %v1742 = vadd.f32 %v1629, %v1741
        %1743 = vmatprep.mubr.f32.mxu0 %v318
        %1744 = vmatmul.mubr.f32.gmra.mrb[0].mxu0 %v317
        %v1745 = vpop.f32.mrb[0].mxu0
        %v1746 = vadd.f32 %v1633, %v1745
        %v1747 = vpop.f32.mrb[0].mxu0
        %v1748 = vadd.f32 %v1635, %v1747
        %1749 = vmatprep.mubr.f32.mxu0 %v324
        %1750 = vmatmul.mubr.f32.gmra.mrb[0].mxu0 %v323
        %v1751 = vpop.f32.mrb[0].mxu0
        %v1752 = vadd.f32 %v1639, %v1751
        %v1753 = vpop.f32.mrb[0].mxu0
        %v1754 = vadd.f32 %v1641, %v1753
        %1755 = vmatprep.mubr.f32.mxu0 %v330
        %1756 = vmatmul.mubr.f32.gmra.mrb[0].mxu0 %v329
        %v1757 = vpop.f32.mrb[0].mxu0
        %v1758 = vadd.f32 %v1645, %v1757
        %v1759 = vpop.f32.mrb[0].mxu0
        %v1760 = vadd.f32 %v1647, %v1759
        %1761 = vmatprep.mubr.f32.mxu0 %v336
        %1762 = vmatmul.mubr.f32.gmra.mrb[0].mxu0 %v335
        %v1763 = vpop.f32.mrb[0].mxu0
        %v1764 = vadd.f32 %v1651, %v1763
        %v1765 = vpop.f32.mrb[0].mxu0
        %v1766 = vadd.f32 %v1653, %v1765
        %1767 = vmatprep.mubr.f32.mxu0 %v342
        %1768 = vmatmul.mubr.f32.gmra.mrb[0].mxu0 %v341
        %v1769 = vpop.f32.mrb[0].mxu0
        %v1770 = vadd.f32 %v1657, %v1769
        %v1771 = vpop.f32.mrb[0].mxu0
        %v1772 = vadd.f32 %v1659, %v1771
        %1773 = vdwg.mxu0
        %1774 = vmatprep.subr.mxu0 %v924
        %1775 = vmatpush1.msra.mxu0 %v923
        %1776 = vmatprep.subr.mxu0 %v933
        %1777 = vmatpush1.msra.mxu0 %v932
        %1778 = vmatprep.subr.mxu0 %v942
        %1779 = vmatpush1.msra.mxu0 %v941
        %1780 = vmatprep.subr.mxu0 %v951
        %1781 = vmatpush1.msra.mxu0 %v950
        %1782 = vmatprep.subr.mxu0 %v960
        %1783 = vmatpush1.msra.mxu0 %v959
        %1784 = vmatprep.subr.mxu0 %v969
        %1785 = vmatpush1.msra.mxu0 %v968
        %1786 = vmatprep.subr.mxu0 %v978
        %1787 = vmatpush1.msra.mxu0 %v977
        %1788 = vmatprep.subr.mxu0 %v987
        %1789 = vmatpush1.msra.mxu0 %v986
        %1790 = vmatprep.subr.mxu0 %v996
        %1791 = vmatpush1.msra.mxu0 %v995
        %1792 = vmatprep.subr.mxu0 %v1005
        %1793 = vmatpush1.msra.mxu0 %v1004
        %1794 = vmatprep.subr.mxu0 %v1014
        %1795 = vmatpush1.msra.mxu0 %v1013
        %1796 = vmatprep.subr.mxu0 %v1023
        %1797 = vmatpush1.msra.mxu0 %v1022
        %1798 = vmatprep.subr.mxu0 %v1032
        %1799 = vmatpush1.msra.mxu0 %v1031
        %1800 = vmatprep.subr.mxu0 %v1041
        %1801 = vmatpush1.msra.mxu0 %v1040
        %1802 = vmatprep.subr.mxu0 %v1050
        %1803 = vmatpush1.msra.mxu0 %v1049
        %1804 = vmatprep.subr.mxu0 %v1059
        %1805 = vmatpush1.msra.mxu0 %v1058
        %1806 = vmatprep.subr.mxu0 %v1068
        %1807 = vmatpush1.msra.mxu0 %v1067
        %1808 = vmatprep.subr.mxu0 %v1077
        %1809 = vmatpush1.msra.mxu0 %v1076
        %1810 = vmatprep.subr.mxu0 %v1086
        %1811 = vmatpush1.msra.mxu0 %v1085
        %1812 = vmatprep.subr.mxu0 %v1095
        %1813 = vmatpush1.msra.mxu0 %v1094
        %1814 = vmatprep.subr.mxu0 %v1104
        %1815 = vmatpush1.msra.mxu0 %v1103
        %1816 = vmatprep.subr.mxu0 %v1113
        %1817 = vmatpush1.msra.mxu0 %v1112
        %1818 = vmatprep.subr.mxu0 %v1122
        %1819 = vmatpush1.msra.mxu0 %v1121
        %1820 = vmatprep.subr.mxu0 %v1131
        %1821 = vmatpush1.msra.mxu0 %v1130
        %1822 = vmatprep.subr.mxu0 %v1140
        %1823 = vmatpush1.msra.mxu0 %v1139
        %1824 = vmatprep.subr.mxu0 %v1149
        %1825 = vmatpush1.msra.mxu0 %v1148
        %1826 = vmatprep.subr.mxu0 %v1158
        %1827 = vmatpush1.msra.mxu0 %v1157
        %1828 = vmatprep.subr.mxu0 %v1167
        %1829 = vmatpush1.msra.mxu0 %v1166
        %1830 = vmatprep.subr.mxu0 %v1176
        %1831 = vmatpush1.msra.mxu0 %v1175
        %1832 = vmatprep.subr.mxu0 %v1185
        %1833 = vmatpush1.msra.mxu0 %v1184
        %1834 = vmatprep.subr.mxu0 %v1194
        %1835 = vmatpush1.msra.mxu0 %v1193
        %1836 = vmatprep.subr.mxu0 %v1203
        %1837 = vmatpush1.msra.mxu0 %v1202
        %1838 = vmatprep.mubr.f32.mxu0 %v302
        %1839 = vmatmul.mubr.f32.gmra.mrb[0].mxu0 %v301
        %v1840 = vpop.f32.mrb[0].mxu0
        %v1841 = vadd.f32 %v1728, %v1840
        %v1842 = vpop.f32.mrb[0].mxu0
        %v1843 = vadd.f32 %v1730, %v1842
        %1844 = vmatprep.mubr.f32.mxu0 %v308
        %1845 = vmatmul.mubr.f32.gmra.mrb[0].mxu0 %v307
        %v1846 = vpop.f32.mrb[0].mxu0
        %v1847 = vadd.f32 %v1734, %v1846
        %v1848 = vpop.f32.mrb[0].mxu0
        %v1849 = vadd.f32 %v1736, %v1848
        %1850 = vmatprep.mubr.f32.mxu0 %v314
        %1851 = vmatmul.mubr.f32.gmra.mrb[0].mxu0 %v313
        %v1852 = vpop.f32.mrb[0].mxu0
        %v1853 = vadd.f32 %v1740, %v1852
        %v1854 = vpop.f32.mrb[0].mxu0
        %v1855 = vadd.f32 %v1742, %v1854
        %1856 = vmatprep.mubr.f32.mxu0 %v320
        %1857 = vmatmul.mubr.f32.gmra.mrb[0].mxu0 %v319
        %v1858 = vpop.f32.mrb[0].mxu0
        %v1859 = vadd.f32 %v1746, %v1858
        %v1860 = vpop.f32.mrb[0].mxu0
        %v1861 = vadd.f32 %v1748, %v1860
        %1862 = vmatprep.mubr.f32.mxu0 %v326
        %1863 = vmatmul.mubr.f32.gmra.mrb[0].mxu0 %v325
        %v1864 = vpop.f32.mrb[0].mxu0
        %v1865 = vadd.f32 %v1752, %v1864
        %v1866 = vpop.f32.mrb[0].mxu0
        %v1867 = vadd.f32 %v1754, %v1866
        %1868 = vmatprep.mubr.f32.mxu0 %v332
        %1869 = vmatmul.mubr.f32.gmra.mrb[0].mxu0 %v331
        %v1870 = vpop.f32.mrb[0].mxu0
        %v1871 = vadd.f32 %v1758, %v1870
        %v1872 = vpop.f32.mrb[0].mxu0
        %v1873 = vadd.f32 %v1760, %v1872
        %1874 = vmatprep.mubr.f32.mxu0 %v338
        %1875 = vmatmul.mubr.f32.gmra.mrb[0].mxu0 %v337
        %v1876 = vpop.f32.mrb[0].mxu0
        %v1877 = vadd.f32 %v1764, %v1876
        %v1878 = vpop.f32.mrb[0].mxu0
        %v1879 = vadd.f32 %v1766, %v1878
        %1880 = vmatprep.mubr.f32.mxu0 %v344
        %1881 = vmatmul.mubr.f32.gmra.mrb[0].mxu0 %v343
        %v1882 = vpop.f32.mrb[0].mxu0
        %v1883 = vadd.f32 %v1770, %v1882
        %v1884 = vpop.f32.mrb[0].mxu0
        %v1885 = vadd.f32 %v1772, %v1884
        %1886 = vdwg.mxu0
        %1887 = vmatprep.subr.mxu0 %v350
        %1888 = vmatpush1.msra.mxu0 %v349
        %1889 = vmatprep.subr.mxu0 %v359
        %1890 = vmatpush1.msra.mxu0 %v358
        %1891 = vmatprep.subr.mxu0 %v368
        %1892 = vmatpush1.msra.mxu0 %v367
        %1893 = vmatprep.subr.mxu0 %v377
        %1894 = vmatpush1.msra.mxu0 %v376
        %1895 = vmatprep.subr.mxu0 %v386
        %1896 = vmatpush1.msra.mxu0 %v385
        %1897 = vmatprep.subr.mxu0 %v395
        %1898 = vmatpush1.msra.mxu0 %v394
        %1899 = vmatprep.subr.mxu0 %v404
        %1900 = vmatpush1.msra.mxu0 %v403
        %1901 = vmatprep.subr.mxu0 %v413
        %1902 = vmatpush1.msra.mxu0 %v412
        %1903 = vmatprep.subr.mxu0 %v422
        %1904 = vmatpush1.msra.mxu0 %v421
        %1905 = vmatprep.subr.mxu0 %v431
        %1906 = vmatpush1.msra.mxu0 %v430
        %1907 = vmatprep.subr.mxu0 %v440
        %1908 = vmatpush1.msra.mxu0 %v439
        %1909 = vmatprep.subr.mxu0 %v449
        %1910 = vmatpush1.msra.mxu0 %v448
        %1911 = vmatprep.subr.mxu0 %v458
        %1912 = vmatpush1.msra.mxu0 %v457
        %1913 = vmatprep.subr.mxu0 %v467
        %1914 = vmatpush1.msra.mxu0 %v466
        %1915 = vmatprep.subr.mxu0 %v476
        %1916 = vmatpush1.msra.mxu0 %v475
        %1917 = vmatprep.subr.mxu0 %v485
        %1918 = vmatpush1.msra.mxu0 %v484
        %1919 = vmatprep.subr.mxu0 %v494
        %1920 = vmatpush1.msra.mxu0 %v493
        %1921 = vmatprep.subr.mxu0 %v503
        %1922 = vmatpush1.msra.mxu0 %v502
        %1923 = vmatprep.subr.mxu0 %v512
        %1924 = vmatpush1.msra.mxu0 %v511
        %1925 = vmatprep.subr.mxu0 %v521
        %1926 = vmatpush1.msra.mxu0 %v520
        %1927 = vmatprep.subr.mxu0 %v530
        %1928 = vmatpush1.msra.mxu0 %v529
        %1929 = vmatprep.subr.mxu0 %v539
        %1930 = vmatpush1.msra.mxu0 %v538
        %1931 = vmatprep.subr.mxu0 %v548
        %1932 = vmatpush1.msra.mxu0 %v547
        %1933 = vmatprep.subr.mxu0 %v557
        %1934 = vmatpush1.msra.mxu0 %v556
        %1935 = vmatprep.subr.mxu0 %v566
        %1936 = vmatpush1.msra.mxu0 %v565
        %1937 = vmatprep.subr.mxu0 %v575
        %1938 = vmatpush1.msra.mxu0 %v574
        %1939 = vmatprep.subr.mxu0 %v584
        %1940 = vmatpush1.msra.mxu0 %v583
        %1941 = vmatprep.subr.mxu0 %v593
        %1942 = vmatpush1.msra.mxu0 %v592
        %1943 = vmatprep.subr.mxu0 %v602
        %1944 = vmatpush1.msra.mxu0 %v601
        %1945 = vmatprep.subr.mxu0 %v611
        %1946 = vmatpush1.msra.mxu0 %v610
        %1947 = vmatprep.subr.mxu0 %v620
        %1948 = vmatpush1.msra.mxu0 %v619
        %1949 = vmatprep.subr.mxu0 %v629
        %1950 = vmatpush1.msra.mxu0 %v628
        %1951 = vmatprep.mubr.f32.mxu0 %v298
        %1952 = vmatmul.mubr.f32.gmra.mrb[0].mxu0 %v297
        %v1953 = vpop.f32.mrb[0].mxu0
        %v1954 = vadd.f32 0.0, %v1953
        %v1955 = vpop.f32.mrb[0].mxu0
        %v1956 = vadd.f32 0.0, %v1955
        %1957 = vmatprep.mubr.f32.mxu0 %v304
        %1958 = vmatmul.mubr.f32.gmra.mrb[0].mxu0 %v303
        %v1959 = vpop.f32.mrb[0].mxu0
        %v1960 = vadd.f32 0.0, %v1959
        %v1961 = vpop.f32.mrb[0].mxu0
        %v1962 = vadd.f32 0.0, %v1961
        %1963 = vmatprep.mubr.f32.mxu0 %v310
        %1964 = vmatmul.mubr.f32.gmra.mrb[0].mxu0 %v309
        %v1965 = vpop.f32.mrb[0].mxu0
        %v1966 = vadd.f32 0.0, %v1965
        %v1967 = vpop.f32.mrb[0].mxu0
        %v1968 = vadd.f32 0.0, %v1967
        %1969 = vmatprep.mubr.f32.mxu0 %v316
        %1970 = vmatmul.mubr.f32.gmra.mrb[0].mxu0 %v315
        %v1971 = vpop.f32.mrb[0].mxu0
        %v1972 = vadd.f32 0.0, %v1971
        %v1973 = vpop.f32.mrb[0].mxu0
        %v1974 = vadd.f32 0.0, %v1973
        %1975 = vmatprep.mubr.f32.mxu0 %v322
        %1976 = vmatmul.mubr.f32.gmra.mrb[0].mxu0 %v321
        %v1977 = vpop.f32.mrb[0].mxu0
        %v1978 = vadd.f32 0.0, %v1977
        %v1979 = vpop.f32.mrb[0].mxu0
        %v1980 = vadd.f32 0.0, %v1979
        %1981 = vmatprep.mubr.f32.mxu0 %v328
        %1982 = vmatmul.mubr.f32.gmra.mrb[0].mxu0 %v327
        %v1983 = vpop.f32.mrb[0].mxu0
        %v1984 = vadd.f32 0.0, %v1983
        %v1985 = vpop.f32.mrb[0].mxu0
        %v1986 = vadd.f32 0.0, %v1985
        %1987 = vmatprep.mubr.f32.mxu0 %v334
        %1988 = vmatmul.mubr.f32.gmra.mrb[0].mxu0 %v333
        %v1989 = vpop.f32.mrb[0].mxu0
        %v1990 = vadd.f32 0.0, %v1989
        %v1991 = vpop.f32.mrb[0].mxu0
        %v1992 = vadd.f32 0.0, %v1991
        %1993 = vmatprep.mubr.f32.mxu0 %v340
        %1994 = vmatmul.mubr.f32.gmra.mrb[0].mxu0 %v339
        %v1995 = vpop.f32.mrb[0].mxu0
        %v1996 = vadd.f32 0.0, %v1995
        %v1997 = vpop.f32.mrb[0].mxu0
        %v1998 = vadd.f32 0.0, %v1997
        %1999 = vdwg.mxu0
        %2000 = vmatprep.subr.mxu0 %v638
        %2001 = vmatpush1.msra.mxu0 %v637
        %2002 = vmatprep.subr.mxu0 %v647
        %2003 = vmatpush1.msra.mxu0 %v646
        %2004 = vmatprep.subr.mxu0 %v656
        %2005 = vmatpush1.msra.mxu0 %v655
        %2006 = vmatprep.subr.mxu0 %v665
        %2007 = vmatpush1.msra.mxu0 %v664
        %2008 = vmatprep.subr.mxu0 %v674
        %2009 = vmatpush1.msra.mxu0 %v673
        %2010 = vmatprep.subr.mxu0 %v683
        %2011 = vmatpush1.msra.mxu0 %v682
        %2012 = vmatprep.subr.mxu0 %v692
        %2013 = vmatpush1.msra.mxu0 %v691
        %2014 = vmatprep.subr.mxu0 %v701
        %2015 = vmatpush1.msra.mxu0 %v700
        %2016 = vmatprep.subr.mxu0 %v710
        %2017 = vmatpush1.msra.mxu0 %v709
        %2018 = vmatprep.subr.mxu0 %v719
        %2019 = vmatpush1.msra.mxu0 %v718
        %2020 = vmatprep.subr.mxu0 %v728
        %2021 = vmatpush1.msra.mxu0 %v727
        %2022 = vmatprep.subr.mxu0 %v737
        %2023 = vmatpush1.msra.mxu0 %v736
        %2024 = vmatprep.subr.mxu0 %v746
        %2025 = vmatpush1.msra.mxu0 %v745
        %2026 = vmatprep.subr.mxu0 %v755
        %2027 = vmatpush1.msra.mxu0 %v754
        %2028 = vmatprep.subr.mxu0 %v764
        %2029 = vmatpush1.msra.mxu0 %v763
        %2030 = vmatprep.subr.mxu0 %v773
        %2031 = vmatpush1.msra.mxu0 %v772
        %2032 = vmatprep.subr.mxu0 %v782
        %2033 = vmatpush1.msra.mxu0 %v781
        %2034 = vmatprep.subr.mxu0 %v791
        %2035 = vmatpush1.msra.mxu0 %v790
        %2036 = vmatprep.subr.mxu0 %v800
        %2037 = vmatpush1.msra.mxu0 %v799
        %2038 = vmatprep.subr.mxu0 %v809
        %2039 = vmatpush1.msra.mxu0 %v808
        %2040 = vmatprep.subr.mxu0 %v818
        %2041 = vmatpush1.msra.mxu0 %v817
        %2042 = vmatprep.subr.mxu0 %v827
        %2043 = vmatpush1.msra.mxu0 %v826
        %2044 = vmatprep.subr.mxu0 %v836
        %2045 = vmatpush1.msra.mxu0 %v835
        %2046 = vmatprep.subr.mxu0 %v845
        %2047 = vmatpush1.msra.mxu0 %v844
        %2048 = vmatprep.subr.mxu0 %v854
        %2049 = vmatpush1.msra.mxu0 %v853
        %2050 = vmatprep.subr.mxu0 %v863
        %2051 = vmatpush1.msra.mxu0 %v862
        %2052 = vmatprep.subr.mxu0 %v872
        %2053 = vmatpush1.msra.mxu0 %v871
        %2054 = vmatprep.subr.mxu0 %v881
        %2055 = vmatpush1.msra.mxu0 %v880
        %2056 = vmatprep.subr.mxu0 %v890
        %2057 = vmatpush1.msra.mxu0 %v889
        %2058 = vmatprep.subr.mxu0 %v899
        %2059 = vmatpush1.msra.mxu0 %v898
        %2060 = vmatprep.subr.mxu0 %v908
        %2061 = vmatpush1.msra.mxu0 %v907
        %2062 = vmatprep.subr.mxu0 %v917
        %2063 = vmatpush1.msra.mxu0 %v916
        %2064 = vmatprep.mubr.f32.mxu0 %v300
        %2065 = vmatmul.mubr.f32.gmra.mrb[0].mxu0 %v299
        %v2066 = vpop.f32.mrb[0].mxu0
        %v2067 = vadd.f32 %v1954, %v2066
        %v2068 = vpop.f32.mrb[0].mxu0
        %v2069 = vadd.f32 %v1956, %v2068
        %2070 = vmatprep.mubr.f32.mxu0 %v306
        %2071 = vmatmul.mubr.f32.gmra.mrb[0].mxu0 %v305
        %v2072 = vpop.f32.mrb[0].mxu0
        %v2073 = vadd.f32 %v1960, %v2072
        %v2074 = vpop.f32.mrb[0].mxu0
        %v2075 = vadd.f32 %v1962, %v2074
        %2076 = vmatprep.mubr.f32.mxu0 %v312
        %2077 = vmatmul.mubr.f32.gmra.mrb[0].mxu0 %v311
        %v2078 = vpop.f32.mrb[0].mxu0
        %v2079 = vadd.f32 %v1966, %v2078
        %v2080 = vpop.f32.mrb[0].mxu0
        %v2081 = vadd.f32 %v1968, %v2080
        %2082 = vmatprep.mubr.f32.mxu0 %v318
        %2083 = vmatmul.mubr.f32.gmra.mrb[0].mxu0 %v317
        %v2084 = vpop.f32.mrb[0].mxu0
        %v2085 = vadd.f32 %v1972, %v2084
        %v2086 = vpop.f32.mrb[0].mxu0
        %v2087 = vadd.f32 %v1974, %v2086
        %2088 = vmatprep.mubr.f32.mxu0 %v324
        %2089 = vmatmul.mubr.f32.gmra.mrb[0].mxu0 %v323
        %v2090 = vpop.f32.mrb[0].mxu0
        %v2091 = vadd.f32 %v1978, %v2090
        %v2092 = vpop.f32.mrb[0].mxu0
        %v2093 = vadd.f32 %v1980, %v2092
        %2094 = vmatprep.mubr.f32.mxu0 %v330
        %2095 = vmatmul.mubr.f32.gmra.mrb[0].mxu0 %v329
        %v2096 = vpop.f32.mrb[0].mxu0
        %v2097 = vadd.f32 %v1984, %v2096
        %v2098 = vpop.f32.mrb[0].mxu0
        %v2099 = vadd.f32 %v1986, %v2098
        %2100 = vmatprep.mubr.f32.mxu0 %v336
        %2101 = vmatmul.mubr.f32.gmra.mrb[0].mxu0 %v335
        %v2102 = vpop.f32.mrb[0].mxu0
        %v2103 = vadd.f32 %v1990, %v2102
        %v2104 = vpop.f32.mrb[0].mxu0
        %v2105 = vadd.f32 %v1992, %v2104
        %2106 = vmatprep.mubr.f32.mxu0 %v342
        %2107 = vmatmul.mubr.f32.gmra.mrb[0].mxu0 %v341
        %v2108 = vpop.f32.mrb[0].mxu0
        %v2109 = vadd.f32 %v1996, %v2108
        %v2110 = vpop.f32.mrb[0].mxu0
        %v2111 = vadd.f32 %v1998, %v2110
        %2112 = vdwg.mxu0
        %2113 = vmatprep.subr.mxu0 %v926
        %2114 = vmatpush1.msra.mxu0 %v925
        %2115 = vmatprep.subr.mxu0 %v935
        %2116 = vmatpush1.msra.mxu0 %v934
        %2117 = vmatprep.subr.mxu0 %v944
        %2118 = vmatpush1.msra.mxu0 %v943
        %2119 = vmatprep.subr.mxu0 %v953
        %2120 = vmatpush1.msra.mxu0 %v952
        %2121 = vmatprep.subr.mxu0 %v962
        %2122 = vmatpush1.msra.mxu0 %v961
        %2123 = vmatprep.subr.mxu0 %v971
        %2124 = vmatpush1.msra.mxu0 %v970
        %2125 = vmatprep.subr.mxu0 %v980
        %2126 = vmatpush1.msra.mxu0 %v979
        %2127 = vmatprep.subr.mxu0 %v989
        %2128 = vmatpush1.msra.mxu0 %v988
        %2129 = vmatprep.subr.mxu0 %v998
        %2130 = vmatpush1.msra.mxu0 %v997
        %2131 = vmatprep.subr.mxu0 %v1007
        %2132 = vmatpush1.msra.mxu0 %v1006
        %2133 = vmatprep.subr.mxu0 %v1016
        %2134 = vmatpush1.msra.mxu0 %v1015
        %2135 = vmatprep.subr.mxu0 %v1025
        %2136 = vmatpush1.msra.mxu0 %v1024
        %2137 = vmatprep.subr.mxu0 %v1034
        %2138 = vmatpush1.msra.mxu0 %v1033
        %2139 = vmatprep.subr.mxu0 %v1043
        %2140 = vmatpush1.msra.mxu0 %v1042
        %2141 = vmatprep.subr.mxu0 %v1052
        %2142 = vmatpush1.msra.mxu0 %v1051
        %2143 = vmatprep.subr.mxu0 %v1061
        %2144 = vmatpush1.msra.mxu0 %v1060
        %2145 = vmatprep.subr.mxu0 %v1070
        %2146 = vmatpush1.msra.mxu0 %v1069
        %2147 = vmatprep.subr.mxu0 %v1079
        %2148 = vmatpush1.msra.mxu0 %v1078
        %2149 = vmatprep.subr.mxu0 %v1088
        %2150 = vmatpush1.msra.mxu0 %v1087
        %2151 = vmatprep.subr.mxu0 %v1097
        %2152 = vmatpush1.msra.mxu0 %v1096
        %2153 = vmatprep.subr.mxu0 %v1106
        %2154 = vmatpush1.msra.mxu0 %v1105
        %2155 = vmatprep.subr.mxu0 %v1115
        %2156 = vmatpush1.msra.mxu0 %v1114
        %2157 = vmatprep.subr.mxu0 %v1124
        %2158 = vmatpush1.msra.mxu0 %v1123
        %2159 = vmatprep.subr.mxu0 %v1133
        %2160 = vmatpush1.msra.mxu0 %v1132
        %2161 = vmatprep.subr.mxu0 %v1142
        %2162 = vmatpush1.msra.mxu0 %v1141
        %2163 = vmatprep.subr.mxu0 %v1151
        %2164 = vmatpush1.msra.mxu0 %v1150
        %2165 = vmatprep.subr.mxu0 %v1160
        %2166 = vmatpush1.msra.mxu0 %v1159
        %2167 = vmatprep.subr.mxu0 %v1169
        %2168 = vmatpush1.msra.mxu0 %v1168
        %2169 = vmatprep.subr.mxu0 %v1178
        %2170 = vmatpush1.msra.mxu0 %v1177
        %2171 = vmatprep.subr.mxu0 %v1187
        %2172 = vmatpush1.msra.mxu0 %v1186
        %2173 = vmatprep.subr.mxu0 %v1196
        %2174 = vmatpush1.msra.mxu0 %v1195
        %2175 = vmatprep.subr.mxu0 %v1205
        %2176 = vmatpush1.msra.mxu0 %v1204
        %2177 = vmatprep.mubr.f32.mxu0 %v302
        %2178 = vmatmul.mubr.f32.gmra.mrb[0].mxu0 %v301
        %v2179 = vpop.f32.mrb[0].mxu0
        %v2180 = vadd.f32 %v2067, %v2179
        %v2181 = vpop.f32.mrb[0].mxu0
        %v2182 = vadd.f32 %v2069, %v2181
        %2183 = vmatprep.mubr.f32.mxu0 %v308
        %2184 = vmatmul.mubr.f32.gmra.mrb[0].mxu0 %v307
        %v2185 = vpop.f32.mrb[0].mxu0
        %v2186 = vadd.f32 %v2073, %v2185
        %v2187 = vpop.f32.mrb[0].mxu0
        %v2188 = vadd.f32 %v2075, %v2187
        %2189 = vmatprep.mubr.f32.mxu0 %v314
        %2190 = vmatmul.mubr.f32.gmra.mrb[0].mxu0 %v313
        %v2191 = vpop.f32.mrb[0].mxu0
        %v2192 = vadd.f32 %v2079, %v2191
        %v2193 = vpop.f32.mrb[0].mxu0
        %v2194 = vadd.f32 %v2081, %v2193
        %2195 = vmatprep.mubr.f32.mxu0 %v320
        %2196 = vmatmul.mubr.f32.gmra.mrb[0].mxu0 %v319
        %v2197 = vpop.f32.mrb[0].mxu0
        %v2198 = vadd.f32 %v2085, %v2197
        %v2199 = vpop.f32.mrb[0].mxu0
        %v2200 = vadd.f32 %v2087, %v2199
        %2201 = vmatprep.mubr.f32.mxu0 %v326
        %2202 = vmatmul.mubr.f32.gmra.mrb[0].mxu0 %v325
        %v2203 = vpop.f32.mrb[0].mxu0
        %v2204 = vadd.f32 %v2091, %v2203
        %v2205 = vpop.f32.mrb[0].mxu0
        %v2206 = vadd.f32 %v2093, %v2205
        %2207 = vmatprep.mubr.f32.mxu0 %v332
        %2208 = vmatmul.mubr.f32.gmra.mrb[0].mxu0 %v331
        %v2209 = vpop.f32.mrb[0].mxu0
        %v2210 = vadd.f32 %v2097, %v2209
        %v2211 = vpop.f32.mrb[0].mxu0
        %v2212 = vadd.f32 %v2099, %v2211
        %2213 = vmatprep.mubr.f32.mxu0 %v338
        %2214 = vmatmul.mubr.f32.gmra.mrb[0].mxu0 %v337
        %v2215 = vpop.f32.mrb[0].mxu0
        %v2216 = vadd.f32 %v2103, %v2215
        %v2217 = vpop.f32.mrb[0].mxu0
        %v2218 = vadd.f32 %v2105, %v2217
        %2219 = vmatprep.mubr.f32.mxu0 %v344
        %2220 = vmatmul.mubr.f32.gmra.mrb[0].mxu0 %v343
        %v2221 = vpop.f32.mrb[0].mxu0
        %v2222 = vadd.f32 %v2109, %v2221
        %v2223 = vpop.f32.mrb[0].mxu0
        %v2224 = vadd.f32 %v2111, %v2223
        %2225 = vdwg.mxu0
        %2226 = vmatprep.subr.mxu0 %v352
        %2227 = vmatpush1.msra.mxu0 %v351
        %2228 = vmatprep.subr.mxu0 %v361
        %2229 = vmatpush1.msra.mxu0 %v360
        %2230 = vmatprep.subr.mxu0 %v370
        %2231 = vmatpush1.msra.mxu0 %v369
        %2232 = vmatprep.subr.mxu0 %v379
        %2233 = vmatpush1.msra.mxu0 %v378
        %2234 = vmatprep.subr.mxu0 %v388
        %2235 = vmatpush1.msra.mxu0 %v387
        %2236 = vmatprep.subr.mxu0 %v397
        %2237 = vmatpush1.msra.mxu0 %v396
        %2238 = vmatprep.subr.mxu0 %v406
        %2239 = vmatpush1.msra.mxu0 %v405
        %2240 = vmatprep.subr.mxu0 %v415
        %2241 = vmatpush1.msra.mxu0 %v414
        %2242 = vmatprep.subr.mxu0 %v424
        %2243 = vmatpush1.msra.mxu0 %v423
        %2244 = vmatprep.subr.mxu0 %v433
        %2245 = vmatpush1.msra.mxu0 %v432
        %2246 = vmatprep.subr.mxu0 %v442
        %2247 = vmatpush1.msra.mxu0 %v441
        %2248 = vmatprep.subr.mxu0 %v451
        %2249 = vmatpush1.msra.mxu0 %v450
        %2250 = vmatprep.subr.mxu0 %v460
        %2251 = vmatpush1.msra.mxu0 %v459
        %2252 = vmatprep.subr.mxu0 %v469
        %2253 = vmatpush1.msra.mxu0 %v468
        %2254 = vmatprep.subr.mxu0 %v478
        %2255 = vmatpush1.msra.mxu0 %v477
        %2256 = vmatprep.subr.mxu0 %v487
        %2257 = vmatpush1.msra.mxu0 %v486
        %2258 = vmatprep.subr.mxu0 %v496
        %2259 = vmatpush1.msra.mxu0 %v495
        %2260 = vmatprep.subr.mxu0 %v505
        %2261 = vmatpush1.msra.mxu0 %v504
        %2262 = vmatprep.subr.mxu0 %v514
        %2263 = vmatpush1.msra.mxu0 %v513
        %2264 = vmatprep.subr.mxu0 %v523
        %2265 = vmatpush1.msra.mxu0 %v522
        %2266 = vmatprep.subr.mxu0 %v532
        %2267 = vmatpush1.msra.mxu0 %v531
        %2268 = vmatprep.subr.mxu0 %v541
        %2269 = vmatpush1.msra.mxu0 %v540
        %2270 = vmatprep.subr.mxu0 %v550
        %2271 = vmatpush1.msra.mxu0 %v549
        %2272 = vmatprep.subr.mxu0 %v559
        %2273 = vmatpush1.msra.mxu0 %v558
        %2274 = vmatprep.subr.mxu0 %v568
        %2275 = vmatpush1.msra.mxu0 %v567
        %2276 = vmatprep.subr.mxu0 %v577
        %2277 = vmatpush1.msra.mxu0 %v576
        %2278 = vmatprep.subr.mxu0 %v586
        %2279 = vmatpush1.msra.mxu0 %v585
        %2280 = vmatprep.subr.mxu0 %v595
        %2281 = vmatpush1.msra.mxu0 %v594
        %2282 = vmatprep.subr.mxu0 %v604
        %2283 = vmatpush1.msra.mxu0 %v603
        %2284 = vmatprep.subr.mxu0 %v613
        %2285 = vmatpush1.msra.mxu0 %v612
        %2286 = vmatprep.subr.mxu0 %v622
        %2287 = vmatpush1.msra.mxu0 %v621
        %2288 = vmatprep.subr.mxu0 %v631
        %2289 = vmatpush1.msra.mxu0 %v630
        %2290 = vmatprep.mubr.f32.mxu0 %v298
        %2291 = vmatmul.mubr.f32.gmra.mrb[0].mxu0 %v297
        %v2292 = vpop.f32.mrb[0].mxu0
        %v2293 = vadd.f32 0.0, %v2292
        %v2294 = vpop.f32.mrb[0].mxu0
        %v2295 = vadd.f32 0.0, %v2294
        %2296 = vmatprep.mubr.f32.mxu0 %v304
        %2297 = vmatmul.mubr.f32.gmra.mrb[0].mxu0 %v303
        %v2298 = vpop.f32.mrb[0].mxu0
        %v2299 = vadd.f32 0.0, %v2298
        %v2300 = vpop.f32.mrb[0].mxu0
        %v2301 = vadd.f32 0.0, %v2300
        %2302 = vmatprep.mubr.f32.mxu0 %v310
        %2303 = vmatmul.mubr.f32.gmra.mrb[0].mxu0 %v309
        %v2304 = vpop.f32.mrb[0].mxu0
        %v2305 = vadd.f32 0.0, %v2304
        %v2306 = vpop.f32.mrb[0].mxu0
        %v2307 = vadd.f32 0.0, %v2306
        %2308 = vmatprep.mubr.f32.mxu0 %v316
        %2309 = vmatmul.mubr.f32.gmra.mrb[0].mxu0 %v315
        %v2310 = vpop.f32.mrb[0].mxu0
        %v2311 = vadd.f32 0.0, %v2310
        %v2312 = vpop.f32.mrb[0].mxu0
        %v2313 = vadd.f32 0.0, %v2312
        %2314 = vmatprep.mubr.f32.mxu0 %v322
        %2315 = vmatmul.mubr.f32.gmra.mrb[0].mxu0 %v321
        %v2316 = vpop.f32.mrb[0].mxu0
        %v2317 = vadd.f32 0.0, %v2316
        %v2318 = vpop.f32.mrb[0].mxu0
        %v2319 = vadd.f32 0.0, %v2318
        %2320 = vmatprep.mubr.f32.mxu0 %v328
        %2321 = vmatmul.mubr.f32.gmra.mrb[0].mxu0 %v327
        %v2322 = vpop.f32.mrb[0].mxu0
        %v2323 = vadd.f32 0.0, %v2322
        %v2324 = vpop.f32.mrb[0].mxu0
        %v2325 = vadd.f32 0.0, %v2324
        %2326 = vmatprep.mubr.f32.mxu0 %v334
        %2327 = vmatmul.mubr.f32.gmra.mrb[0].mxu0 %v333
        %v2328 = vpop.f32.mrb[0].mxu0
        %v2329 = vadd.f32 0.0, %v2328
        %v2330 = vpop.f32.mrb[0].mxu0
        %v2331 = vadd.f32 0.0, %v2330
        %2332 = vmatprep.mubr.f32.mxu0 %v340
        %2333 = vmatmul.mubr.f32.gmra.mrb[0].mxu0 %v339
        %v2334 = vpop.f32.mrb[0].mxu0
        %v2335 = vadd.f32 0.0, %v2334
        %v2336 = vpop.f32.mrb[0].mxu0
        %v2337 = vadd.f32 0.0, %v2336
        %2338 = vdwg.mxu0
        %2339 = vmatprep.subr.mxu0 %v640
        %2340 = vmatpush1.msra.mxu0 %v639
        %2341 = vmatprep.subr.mxu0 %v649
        %2342 = vmatpush1.msra.mxu0 %v648
        %2343 = vmatprep.subr.mxu0 %v658
        %2344 = vmatpush1.msra.mxu0 %v657
        %2345 = vmatprep.subr.mxu0 %v667
        %2346 = vmatpush1.msra.mxu0 %v666
        %2347 = vmatprep.subr.mxu0 %v676
        %2348 = vmatpush1.msra.mxu0 %v675
        %2349 = vmatprep.subr.mxu0 %v685
        %2350 = vmatpush1.msra.mxu0 %v684
        %2351 = vmatprep.subr.mxu0 %v694
        %2352 = vmatpush1.msra.mxu0 %v693
        %2353 = vmatprep.subr.mxu0 %v703
        %2354 = vmatpush1.msra.mxu0 %v702
        %2355 = vmatprep.subr.mxu0 %v712
        %2356 = vmatpush1.msra.mxu0 %v711
        %2357 = vmatprep.subr.mxu0 %v721
        %2358 = vmatpush1.msra.mxu0 %v720
        %2359 = vmatprep.subr.mxu0 %v730
        %2360 = vmatpush1.msra.mxu0 %v729
        %2361 = vmatprep.subr.mxu0 %v739
        %2362 = vmatpush1.msra.mxu0 %v738
        %2363 = vmatprep.subr.mxu0 %v748
        %2364 = vmatpush1.msra.mxu0 %v747
        %2365 = vmatprep.subr.mxu0 %v757
        %2366 = vmatpush1.msra.mxu0 %v756
        %2367 = vmatprep.subr.mxu0 %v766
        %2368 = vmatpush1.msra.mxu0 %v765
        %2369 = vmatprep.subr.mxu0 %v775
        %2370 = vmatpush1.msra.mxu0 %v774
        %2371 = vmatprep.subr.mxu0 %v784
        %2372 = vmatpush1.msra.mxu0 %v783
        %2373 = vmatprep.subr.mxu0 %v793
        %2374 = vmatpush1.msra.mxu0 %v792
        %2375 = vmatprep.subr.mxu0 %v802
        %2376 = vmatpush1.msra.mxu0 %v801
        %2377 = vmatprep.subr.mxu0 %v811
        %2378 = vmatpush1.msra.mxu0 %v810
        %2379 = vmatprep.subr.mxu0 %v820
        %2380 = vmatpush1.msra.mxu0 %v819
        %2381 = vmatprep.subr.mxu0 %v829
        %2382 = vmatpush1.msra.mxu0 %v828
        %2383 = vmatprep.subr.mxu0 %v838
        %2384 = vmatpush1.msra.mxu0 %v837
        %2385 = vmatprep.subr.mxu0 %v847
        %2386 = vmatpush1.msra.mxu0 %v846
        %2387 = vmatprep.subr.mxu0 %v856
        %2388 = vmatpush1.msra.mxu0 %v855
        %2389 = vmatprep.subr.mxu0 %v865
        %2390 = vmatpush1.msra.mxu0 %v864
        %2391 = vmatprep.subr.mxu0 %v874
        %2392 = vmatpush1.msra.mxu0 %v873
        %2393 = vmatprep.subr.mxu0 %v883
        %2394 = vmatpush1.msra.mxu0 %v882
        %2395 = vmatprep.subr.mxu0 %v892
        %2396 = vmatpush1.msra.mxu0 %v891
        %2397 = vmatprep.subr.mxu0 %v901
        %2398 = vmatpush1.msra.mxu0 %v900
        %2399 = vmatprep.subr.mxu0 %v910
        %2400 = vmatpush1.msra.mxu0 %v909
        %2401 = vmatprep.subr.mxu0 %v919
        %2402 = vmatpush1.msra.mxu0 %v918
        %2403 = vmatprep.mubr.f32.mxu0 %v300
        %2404 = vmatmul.mubr.f32.gmra.mrb[0].mxu0 %v299
        %v2405 = vpop.f32.mrb[0].mxu0
        %v2406 = vadd.f32 %v2293, %v2405
        %v2407 = vpop.f32.mrb[0].mxu0
        %v2408 = vadd.f32 %v2295, %v2407
        %2409 = vmatprep.mubr.f32.mxu0 %v306
        %2410 = vmatmul.mubr.f32.gmra.mrb[0].mxu0 %v305
        %v2411 = vpop.f32.mrb[0].mxu0
        %v2412 = vadd.f32 %v2299, %v2411
        %v2413 = vpop.f32.mrb[0].mxu0
        %v2414 = vadd.f32 %v2301, %v2413
        %2415 = vmatprep.mubr.f32.mxu0 %v312
        %2416 = vmatmul.mubr.f32.gmra.mrb[0].mxu0 %v311
        %v2417 = vpop.f32.mrb[0].mxu0
        %v2418 = vadd.f32 %v2305, %v2417
        %v2419 = vpop.f32.mrb[0].mxu0
        %v2420 = vadd.f32 %v2307, %v2419
        %2421 = vmatprep.mubr.f32.mxu0 %v318
        %2422 = vmatmul.mubr.f32.gmra.mrb[0].mxu0 %v317
        %v2423 = vpop.f32.mrb[0].mxu0
        %v2424 = vadd.f32 %v2311, %v2423
        %v2425 = vpop.f32.mrb[0].mxu0
        %v2426 = vadd.f32 %v2313, %v2425
        %2427 = vmatprep.mubr.f32.mxu0 %v324
        %2428 = vmatmul.mubr.f32.gmra.mrb[0].mxu0 %v323
        %v2429 = vpop.f32.mrb[0].mxu0
        %v2430 = vadd.f32 %v2317, %v2429
        %v2431 = vpop.f32.mrb[0].mxu0
        %v2432 = vadd.f32 %v2319, %v2431
        %2433 = vmatprep.mubr.f32.mxu0 %v330
        %2434 = vmatmul.mubr.f32.gmra.mrb[0].mxu0 %v329
        %v2435 = vpop.f32.mrb[0].mxu0
        %v2436 = vadd.f32 %v2323, %v2435
        %v2437 = vpop.f32.mrb[0].mxu0
        %v2438 = vadd.f32 %v2325, %v2437
        %2439 = vmatprep.mubr.f32.mxu0 %v336
        %2440 = vmatmul.mubr.f32.gmra.mrb[0].mxu0 %v335
        %v2441 = vpop.f32.mrb[0].mxu0
        %v2442 = vadd.f32 %v2329, %v2441
        %v2443 = vpop.f32.mrb[0].mxu0
        %v2444 = vadd.f32 %v2331, %v2443
        %2445 = vmatprep.mubr.f32.mxu0 %v342
        %2446 = vmatmul.mubr.f32.gmra.mrb[0].mxu0 %v341
        %v2447 = vpop.f32.mrb[0].mxu0
        %v2448 = vadd.f32 %v2335, %v2447
        %v2449 = vpop.f32.mrb[0].mxu0
        %v2450 = vadd.f32 %v2337, %v2449
        %2451 = vdwg.mxu0
        %2452 = vmatprep.subr.mxu0 %v928
        %2453 = vmatpush1.msra.mxu0 %v927
        %2454 = vmatprep.subr.mxu0 %v937
        %2455 = vmatpush1.msra.mxu0 %v936
        %2456 = vmatprep.subr.mxu0 %v946
        %2457 = vmatpush1.msra.mxu0 %v945
        %2458 = vmatprep.subr.mxu0 %v955
        %2459 = vmatpush1.msra.mxu0 %v954
        %2460 = vmatprep.subr.mxu0 %v964
        %2461 = vmatpush1.msra.mxu0 %v963
        %2462 = vmatprep.subr.mxu0 %v973
        %2463 = vmatpush1.msra.mxu0 %v972
        %2464 = vmatprep.subr.mxu0 %v982
        %2465 = vmatpush1.msra.mxu0 %v981
        %2466 = vmatprep.subr.mxu0 %v991
        %2467 = vmatpush1.msra.mxu0 %v990
        %2468 = vmatprep.subr.mxu0 %v1000
        %2469 = vmatpush1.msra.mxu0 %v999
        %2470 = vmatprep.subr.mxu0 %v1009
        %2471 = vmatpush1.msra.mxu0 %v1008
        %2472 = vmatprep.subr.mxu0 %v1018
        %2473 = vmatpush1.msra.mxu0 %v1017
        %2474 = vmatprep.subr.mxu0 %v1027
        %2475 = vmatpush1.msra.mxu0 %v1026
        %2476 = vmatprep.subr.mxu0 %v1036
        %2477 = vmatpush1.msra.mxu0 %v1035
        %2478 = vmatprep.subr.mxu0 %v1045
        %2479 = vmatpush1.msra.mxu0 %v1044
        %2480 = vmatprep.subr.mxu0 %v1054
        %2481 = vmatpush1.msra.mxu0 %v1053
        %2482 = vmatprep.subr.mxu0 %v1063
        %2483 = vmatpush1.msra.mxu0 %v1062
        %2484 = vmatprep.subr.mxu0 %v1072
        %2485 = vmatpush1.msra.mxu0 %v1071
        %2486 = vmatprep.subr.mxu0 %v1081
        %2487 = vmatpush1.msra.mxu0 %v1080
        %2488 = vmatprep.subr.mxu0 %v1090
        %2489 = vmatpush1.msra.mxu0 %v1089
        %2490 = vmatprep.subr.mxu0 %v1099
        %2491 = vmatpush1.msra.mxu0 %v1098
        %2492 = vmatprep.subr.mxu0 %v1108
        %2493 = vmatpush1.msra.mxu0 %v1107
        %2494 = vmatprep.subr.mxu0 %v1117
        %2495 = vmatpush1.msra.mxu0 %v1116
        %2496 = vmatprep.subr.mxu0 %v1126
        %2497 = vmatpush1.msra.mxu0 %v1125
        %2498 = vmatprep.subr.mxu0 %v1135
        %2499 = vmatpush1.msra.mxu0 %v1134
        %2500 = vmatprep.subr.mxu0 %v1144
        %2501 = vmatpush1.msra.mxu0 %v1143
        %2502 = vmatprep.subr.mxu0 %v1153
        %2503 = vmatpush1.msra.mxu0 %v1152
        %2504 = vmatprep.subr.mxu0 %v1162
        %2505 = vmatpush1.msra.mxu0 %v1161
        %2506 = vmatprep.subr.mxu0 %v1171
        %2507 = vmatpush1.msra.mxu0 %v1170
        %2508 = vmatprep.subr.mxu0 %v1180
        %2509 = vmatpush1.msra.mxu0 %v1179
        %2510 = vmatprep.subr.mxu0 %v1189
        %2511 = vmatpush1.msra.mxu0 %v1188
        %2512 = vmatprep.subr.mxu0 %v1198
        %2513 = vmatpush1.msra.mxu0 %v1197
        %2514 = vmatprep.subr.mxu0 %v1207
        %2515 = vmatpush1.msra.mxu0 %v1206
        %2516 = vmatprep.mubr.f32.mxu0 %v302
        %2517 = vmatmul.mubr.f32.gmra.mrb[0].mxu0 %v301
        %v2518 = vpop.f32.mrb[0].mxu0
        %v2519 = vadd.f32 %v2406, %v2518
        %v2520 = vpop.f32.mrb[0].mxu0
        %v2521 = vadd.f32 %v2408, %v2520
        %2522 = vmatprep.mubr.f32.mxu0 %v308
        %2523 = vmatmul.mubr.f32.gmra.mrb[0].mxu0 %v307
        %v2524 = vpop.f32.mrb[0].mxu0
        %v2525 = vadd.f32 %v2412, %v2524
        %v2526 = vpop.f32.mrb[0].mxu0
        %v2527 = vadd.f32 %v2414, %v2526
        %2528 = vmatprep.mubr.f32.mxu0 %v314
        %2529 = vmatmul.mubr.f32.gmra.mrb[0].mxu0 %v313
        %v2530 = vpop.f32.mrb[0].mxu0
        %v2531 = vadd.f32 %v2418, %v2530
        %v2532 = vpop.f32.mrb[0].mxu0
        %v2533 = vadd.f32 %v2420, %v2532
        %2534 = vmatprep.mubr.f32.mxu0 %v320
        %2535 = vmatmul.mubr.f32.gmra.mrb[0].mxu0 %v319
        %v2536 = vpop.f32.mrb[0].mxu0
        %v2537 = vadd.f32 %v2424, %v2536
        %v2538 = vpop.f32.mrb[0].mxu0
        %v2539 = vadd.f32 %v2426, %v2538
        %2540 = vmatprep.mubr.f32.mxu0 %v326
        %2541 = vmatmul.mubr.f32.gmra.mrb[0].mxu0 %v325
        %v2542 = vpop.f32.mrb[0].mxu0
        %v2543 = vadd.f32 %v2430, %v2542
        %v2544 = vpop.f32.mrb[0].mxu0
        %v2545 = vadd.f32 %v2432, %v2544
        %2546 = vmatprep.mubr.f32.mxu0 %v332
        %2547 = vmatmul.mubr.f32.gmra.mrb[0].mxu0 %v331
        %v2548 = vpop.f32.mrb[0].mxu0
        %v2549 = vadd.f32 %v2436, %v2548
        %v2550 = vpop.f32.mrb[0].mxu0
        %v2551 = vadd.f32 %v2438, %v2550
        %2552 = vmatprep.mubr.f32.mxu0 %v338
        %2553 = vmatmul.mubr.f32.gmra.mrb[0].mxu0 %v337
        %v2554 = vpop.f32.mrb[0].mxu0
        %v2555 = vadd.f32 %v2442, %v2554
        %v2556 = vpop.f32.mrb[0].mxu0
        %v2557 = vadd.f32 %v2444, %v2556
        %2558 = vmatprep.mubr.f32.mxu0 %v344
        %2559 = vmatmul.mubr.f32.gmra.mrb[0].mxu0 %v343
        %v2560 = vpop.f32.mrb[0].mxu0
        %v2561 = vadd.f32 %v2448, %v2560
        %v2562 = vpop.f32.mrb[0].mxu0
        %v2563 = vadd.f32 %v2450, %v2562
        %2564 = vdwg.mxu0
        %2565 = vmatprep.subr.mxu0 0.0
        %2566 = vmatpush1.msra.mxu0 %v353
        %2567 = vmatprep.subr.mxu0 0.0
        %2568 = vmatpush1.msra.mxu0 %v362
        %2569 = vmatprep.subr.mxu0 0.0
        %2570 = vmatpush1.msra.mxu0 %v371
        %2571 = vmatprep.subr.mxu0 0.0
        %2572 = vmatpush1.msra.mxu0 %v380
        %2573 = vmatprep.subr.mxu0 0.0
        %2574 = vmatpush1.msra.mxu0 %v389
        %2575 = vmatprep.subr.mxu0 0.0
        %2576 = vmatpush1.msra.mxu0 %v398
        %2577 = vmatprep.subr.mxu0 0.0
        %2578 = vmatpush1.msra.mxu0 %v407
        %2579 = vmatprep.subr.mxu0 0.0
        %2580 = vmatpush1.msra.mxu0 %v416
        %2581 = vmatprep.subr.mxu0 0.0
        %2582 = vmatpush1.msra.mxu0 %v425
        %2583 = vmatprep.subr.mxu0 0.0
        %2584 = vmatpush1.msra.mxu0 %v434
        %2585 = vmatprep.subr.mxu0 0.0
        %2586 = vmatpush1.msra.mxu0 %v443
        %2587 = vmatprep.subr.mxu0 0.0
        %2588 = vmatpush1.msra.mxu0 %v452
        %2589 = vmatprep.subr.mxu0 0.0
        %2590 = vmatpush1.msra.mxu0 %v461
        %2591 = vmatprep.subr.mxu0 0.0
        %2592 = vmatpush1.msra.mxu0 %v470
        %2593 = vmatprep.subr.mxu0 0.0
        %2594 = vmatpush1.msra.mxu0 %v479
        %2595 = vmatprep.subr.mxu0 0.0
        %2596 = vmatpush1.msra.mxu0 %v488
        %2597 = vmatprep.subr.mxu0 0.0
        %2598 = vmatpush1.msra.mxu0 %v497
        %2599 = vmatprep.subr.mxu0 0.0
        %2600 = vmatpush1.msra.mxu0 %v506
        %2601 = vmatprep.subr.mxu0 0.0
        %2602 = vmatpush1.msra.mxu0 %v515
        %2603 = vmatprep.subr.mxu0 0.0
        %2604 = vmatpush1.msra.mxu0 %v524
        %2605 = vmatprep.subr.mxu0 0.0
        %2606 = vmatpush1.msra.mxu0 %v533
        %2607 = vmatprep.subr.mxu0 0.0
        %2608 = vmatpush1.msra.mxu0 %v542
        %2609 = vmatprep.subr.mxu0 0.0
        %2610 = vmatpush1.msra.mxu0 %v551
        %2611 = vmatprep.subr.mxu0 0.0
        %2612 = vmatpush1.msra.mxu0 %v560
        %2613 = vmatprep.subr.mxu0 0.0
        %2614 = vmatpush1.msra.mxu0 %v569
        %2615 = vmatprep.subr.mxu0 0.0
        %2616 = vmatpush1.msra.mxu0 %v578
        %2617 = vmatprep.subr.mxu0 0.0
        %2618 = vmatpush1.msra.mxu0 %v587
        %2619 = vmatprep.subr.mxu0 0.0
        %2620 = vmatpush1.msra.mxu0 %v596
        %2621 = vmatprep.subr.mxu0 0.0
        %2622 = vmatpush1.msra.mxu0 %v605
        %2623 = vmatprep.subr.mxu0 0.0
        %2624 = vmatpush1.msra.mxu0 %v614
        %2625 = vmatprep.subr.mxu0 0.0
        %2626 = vmatpush1.msra.mxu0 %v623
        %2627 = vmatprep.subr.mxu0 0.0
        %2628 = vmatpush1.msra.mxu0 %v632
        %2629 = vmatprep.mubr.f32.mxu0 %v298
        %2630 = vmatmul.mubr.f32.gmra.mrb[0].mxu0 %v297
        %v2631 = vpop.f32.mrb[0].mxu0
        %v2632 = vadd.f32 0.0, %v2631
        %v2633 = vpop.f32.mrb[0].mxu0
        %2634 = vmatprep.mubr.f32.mxu0 %v304
        %2635 = vmatmul.mubr.f32.gmra.mrb[0].mxu0 %v303
        %v2636 = vpop.f32.mrb[0].mxu0
        %v2637 = vadd.f32 0.0, %v2636
        %v2638 = vpop.f32.mrb[0].mxu0
        %2639 = vmatprep.mubr.f32.mxu0 %v310
        %2640 = vmatmul.mubr.f32.gmra.mrb[0].mxu0 %v309
        %v2641 = vpop.f32.mrb[0].mxu0
        %v2642 = vadd.f32 0.0, %v2641
        %v2643 = vpop.f32.mrb[0].mxu0
        %2644 = vmatprep.mubr.f32.mxu0 %v316
        %2645 = vmatmul.mubr.f32.gmra.mrb[0].mxu0 %v315
        %v2646 = vpop.f32.mrb[0].mxu0
        %v2647 = vadd.f32 0.0, %v2646
        %v2648 = vpop.f32.mrb[0].mxu0
        %2649 = vmatprep.mubr.f32.mxu0 %v322
        %2650 = vmatmul.mubr.f32.gmra.mrb[0].mxu0 %v321
        %v2651 = vpop.f32.mrb[0].mxu0
        %v2652 = vadd.f32 0.0, %v2651
        %v2653 = vpop.f32.mrb[0].mxu0
        %2654 = vmatprep.mubr.f32.mxu0 %v328
        %2655 = vmatmul.mubr.f32.gmra.mrb[0].mxu0 %v327
        %v2656 = vpop.f32.mrb[0].mxu0
        %v2657 = vadd.f32 0.0, %v2656
        %v2658 = vpop.f32.mrb[0].mxu0
        %2659 = vmatprep.mubr.f32.mxu0 %v334
        %2660 = vmatmul.mubr.f32.gmra.mrb[0].mxu0 %v333
        %v2661 = vpop.f32.mrb[0].mxu0
        %v2662 = vadd.f32 0.0, %v2661
        %v2663 = vpop.f32.mrb[0].mxu0
        %2664 = vmatprep.mubr.f32.mxu0 %v340
        %2665 = vmatmul.mubr.f32.gmra.mrb[0].mxu0 %v339
        %v2666 = vpop.f32.mrb[0].mxu0
        %v2667 = vadd.f32 0.0, %v2666
        %v2668 = vpop.f32.mrb[0].mxu0
        %2669 = vdwg.mxu0
        %2670 = vmatprep.subr.mxu0 0.0
        %2671 = vmatpush1.msra.mxu0 %v641
        %2672 = vmatprep.subr.mxu0 0.0
        %2673 = vmatpush1.msra.mxu0 %v650
        %2674 = vmatprep.subr.mxu0 0.0
        %2675 = vmatpush1.msra.mxu0 %v659
        %2676 = vmatprep.subr.mxu0 0.0
        %2677 = vmatpush1.msra.mxu0 %v668
        %2678 = vmatprep.subr.mxu0 0.0
        %2679 = vmatpush1.msra.mxu0 %v677
        %2680 = vmatprep.subr.mxu0 0.0
        %2681 = vmatpush1.msra.mxu0 %v686
        %2682 = vmatprep.subr.mxu0 0.0
        %2683 = vmatpush1.msra.mxu0 %v695
        %2684 = vmatprep.subr.mxu0 0.0
        %2685 = vmatpush1.msra.mxu0 %v704
        %2686 = vmatprep.subr.mxu0 0.0
        %2687 = vmatpush1.msra.mxu0 %v713
        %2688 = vmatprep.subr.mxu0 0.0
        %2689 = vmatpush1.msra.mxu0 %v722
        %2690 = vmatprep.subr.mxu0 0.0
        %2691 = vmatpush1.msra.mxu0 %v731
        %2692 = vmatprep.subr.mxu0 0.0
        %2693 = vmatpush1.msra.mxu0 %v740
        %2694 = vmatprep.subr.mxu0 0.0
        %2695 = vmatpush1.msra.mxu0 %v749
        %2696 = vmatprep.subr.mxu0 0.0
        %2697 = vmatpush1.msra.mxu0 %v758
        %2698 = vmatprep.subr.mxu0 0.0
        %2699 = vmatpush1.msra.mxu0 %v767
        %2700 = vmatprep.subr.mxu0 0.0
        %2701 = vmatpush1.msra.mxu0 %v776
        %2702 = vmatprep.subr.mxu0 0.0
        %2703 = vmatpush1.msra.mxu0 %v785
        %2704 = vmatprep.subr.mxu0 0.0
        %2705 = vmatpush1.msra.mxu0 %v794
        %2706 = vmatprep.subr.mxu0 0.0
        %2707 = vmatpush1.msra.mxu0 %v803
        %2708 = vmatprep.subr.mxu0 0.0
        %2709 = vmatpush1.msra.mxu0 %v812
        %2710 = vmatprep.subr.mxu0 0.0
        %2711 = vmatpush1.msra.mxu0 %v821
        %2712 = vmatprep.subr.mxu0 0.0
        %2713 = vmatpush1.msra.mxu0 %v830
        %2714 = vmatprep.subr.mxu0 0.0
        %2715 = vmatpush1.msra.mxu0 %v839
        %2716 = vmatprep.subr.mxu0 0.0
        %2717 = vmatpush1.msra.mxu0 %v848
        %2718 = vmatprep.subr.mxu0 0.0
        %2719 = vmatpush1.msra.mxu0 %v857
        %2720 = vmatprep.subr.mxu0 0.0
        %2721 = vmatpush1.msra.mxu0 %v866
        %2722 = vmatprep.subr.mxu0 0.0
        %2723 = vmatpush1.msra.mxu0 %v875
        %2724 = vmatprep.subr.mxu0 0.0
        %2725 = vmatpush1.msra.mxu0 %v884
        %2726 = vmatprep.subr.mxu0 0.0
        %2727 = vmatpush1.msra.mxu0 %v893
        %2728 = vmatprep.subr.mxu0 0.0
        %2729 = vmatpush1.msra.mxu0 %v902
        %2730 = vmatprep.subr.mxu0 0.0
        %2731 = vmatpush1.msra.mxu0 %v911
        %2732 = vmatprep.subr.mxu0 0.0
        %2733 = vmatpush1.msra.mxu0 %v920
        %2734 = vmatprep.mubr.f32.mxu0 %v300
        %2735 = vmatmul.mubr.f32.gmra.mrb[0].mxu0 %v299
        %v2736 = vpop.f32.mrb[0].mxu0
        %v2737 = vadd.f32 %v2632, %v2736
        %v2738 = vpop.f32.mrb[0].mxu0
        %2739 = vmatprep.mubr.f32.mxu0 %v306
        %2740 = vmatmul.mubr.f32.gmra.mrb[0].mxu0 %v305
        %v2741 = vpop.f32.mrb[0].mxu0
        %v2742 = vadd.f32 %v2637, %v2741
        %v2743 = vpop.f32.mrb[0].mxu0
        %2744 = vmatprep.mubr.f32.mxu0 %v312
        %2745 = vmatmul.mubr.f32.gmra.mrb[0].mxu0 %v311
        %v2746 = vpop.f32.mrb[0].mxu0
        %v2747 = vadd.f32 %v2642, %v2746
        %v2748 = vpop.f32.mrb[0].mxu0
        %2749 = vmatprep.mubr.f32.mxu0 %v318
        %2750 = vmatmul.mubr.f32.gmra.mrb[0].mxu0 %v317
        %v2751 = vpop.f32.mrb[0].mxu0
        %v2752 = vadd.f32 %v2647, %v2751
        %v2753 = vpop.f32.mrb[0].mxu0
        %2754 = vmatprep.mubr.f32.mxu0 %v324
        %2755 = vmatmul.mubr.f32.gmra.mrb[0].mxu0 %v323
        %v2756 = vpop.f32.mrb[0].mxu0
        %v2757 = vadd.f32 %v2652, %v2756
        %v2758 = vpop.f32.mrb[0].mxu0
        %2759 = vmatprep.mubr.f32.mxu0 %v330
        %2760 = vmatmul.mubr.f32.gmra.mrb[0].mxu0 %v329
        %v2761 = vpop.f32.mrb[0].mxu0
        %v2762 = vadd.f32 %v2657, %v2761
        %v2763 = vpop.f32.mrb[0].mxu0
        %2764 = vmatprep.mubr.f32.mxu0 %v336
        %2765 = vmatmul.mubr.f32.gmra.mrb[0].mxu0 %v335
        %v2766 = vpop.f32.mrb[0].mxu0
        %v2767 = vadd.f32 %v2662, %v2766
        %v2768 = vpop.f32.mrb[0].mxu0
        %2769 = vmatprep.mubr.f32.mxu0 %v342
        %2770 = vmatmul.mubr.f32.gmra.mrb[0].mxu0 %v341
        %v2771 = vpop.f32.mrb[0].mxu0
        %v2772 = vadd.f32 %v2667, %v2771
        %v2773 = vpop.f32.mrb[0].mxu0
        %2774 = vdwg.mxu0
        %2775 = vmatprep.subr.mxu0 0.0
        %2776 = vmatpush1.msra.mxu0 %v929
        %2777 = vmatprep.subr.mxu0 0.0
        %2778 = vmatpush1.msra.mxu0 %v938
        %2779 = vmatprep.subr.mxu0 0.0
        %2780 = vmatpush1.msra.mxu0 %v947
        %2781 = vmatprep.subr.mxu0 0.0
        %2782 = vmatpush1.msra.mxu0 %v956
        %2783 = vmatprep.subr.mxu0 0.0
        %2784 = vmatpush1.msra.mxu0 %v965
        %2785 = vmatprep.subr.mxu0 0.0
        %2786 = vmatpush1.msra.mxu0 %v974
        %2787 = vmatprep.subr.mxu0 0.0
        %2788 = vmatpush1.msra.mxu0 %v983
        %2789 = vmatprep.subr.mxu0 0.0
        %2790 = vmatpush1.msra.mxu0 %v992
        %2791 = vmatprep.subr.mxu0 0.0
        %2792 = vmatpush1.msra.mxu0 %v1001
        %2793 = vmatprep.subr.mxu0 0.0
        %2794 = vmatpush1.msra.mxu0 %v1010
        %2795 = vmatprep.subr.mxu0 0.0
        %2796 = vmatpush1.msra.mxu0 %v1019
        %2797 = vmatprep.subr.mxu0 0.0
        %2798 = vmatpush1.msra.mxu0 %v1028
        %2799 = vmatprep.subr.mxu0 0.0
        %2800 = vmatpush1.msra.mxu0 %v1037
        %2801 = vmatprep.subr.mxu0 0.0
        %2802 = vmatpush1.msra.mxu0 %v1046
        %2803 = vmatprep.subr.mxu0 0.0
        %2804 = vmatpush1.msra.mxu0 %v1055
        %2805 = vmatprep.subr.mxu0 0.0
        %2806 = vmatpush1.msra.mxu0 %v1064
        %2807 = vmatprep.subr.mxu0 0.0
        %2808 = vmatpush1.msra.mxu0 %v1073
        %2809 = vmatprep.subr.mxu0 0.0
        %2810 = vmatpush1.msra.mxu0 %v1082
        %2811 = vmatprep.subr.mxu0 0.0
        %2812 = vmatpush1.msra.mxu0 %v1091
        %2813 = vmatprep.subr.mxu0 0.0
        %2814 = vmatpush1.msra.mxu0 %v1100
        %2815 = vmatprep.subr.mxu0 0.0
        %2816 = vmatpush1.msra.mxu0 %v1109
        %2817 = vmatprep.subr.mxu0 0.0
        %2818 = vmatpush1.msra.mxu0 %v1118
        %2819 = vmatprep.subr.mxu0 0.0
        %2820 = vmatpush1.msra.mxu0 %v1127
        %2821 = vmatprep.subr.mxu0 0.0
        %2822 = vmatpush1.msra.mxu0 %v1136
        %2823 = vmatprep.subr.mxu0 0.0
        %2824 = vmatpush1.msra.mxu0 %v1145
        %2825 = vmatprep.subr.mxu0 0.0
        %2826 = vmatpush1.msra.mxu0 %v1154
        %2827 = vmatprep.subr.mxu0 0.0
        %2828 = vmatpush1.msra.mxu0 %v1163
        %2829 = vmatprep.subr.mxu0 0.0
        %2830 = vmatpush1.msra.mxu0 %v1172
        %2831 = vmatprep.subr.mxu0 0.0
        %2832 = vmatpush1.msra.mxu0 %v1181
        %2833 = vmatprep.subr.mxu0 0.0
        %2834 = vmatpush1.msra.mxu0 %v1190
        %2835 = vmatprep.subr.mxu0 0.0
        %2836 = vmatpush1.msra.mxu0 %v1199
        %2837 = vmatprep.subr.mxu0 0.0
        %2838 = vmatpush1.msra.mxu0 %v1208
        %2839 = vmatprep.mubr.f32.mxu0 %v302
        %2840 = vmatmul.mubr.f32.gmra.mrb[0].mxu0 %v301
        %v2841 = vpop.f32.mrb[0].mxu0
        %v2842 = vadd.f32 %v2737, %v2841
        %v2843 = vpop.f32.mrb[0].mxu0
        %2844 = vmatprep.mubr.f32.mxu0 %v308
        %2845 = vmatmul.mubr.f32.gmra.mrb[0].mxu0 %v307
        %v2846 = vpop.f32.mrb[0].mxu0
        %v2847 = vadd.f32 %v2742, %v2846
        %v2848 = vpop.f32.mrb[0].mxu0
        %2849 = vmatprep.mubr.f32.mxu0 %v314
        %2850 = vmatmul.mubr.f32.gmra.mrb[0].mxu0 %v313
        %v2851 = vpop.f32.mrb[0].mxu0
        %v2852 = vadd.f32 %v2747, %v2851
        %v2853 = vpop.f32.mrb[0].mxu0
        %2854 = vmatprep.mubr.f32.mxu0 %v320
        %2855 = vmatmul.mubr.f32.gmra.mrb[0].mxu0 %v319
        %v2856 = vpop.f32.mrb[0].mxu0
        %v2857 = vadd.f32 %v2752, %v2856
        %v2858 = vpop.f32.mrb[0].mxu0
        %2859 = vmatprep.mubr.f32.mxu0 %v326
        %2860 = vmatmul.mubr.f32.gmra.mrb[0].mxu0 %v325
        %v2861 = vpop.f32.mrb[0].mxu0
        %v2862 = vadd.f32 %v2757, %v2861
        %v2863 = vpop.f32.mrb[0].mxu0
        %2864 = vmatprep.mubr.f32.mxu0 %v332
        %2865 = vmatmul.mubr.f32.gmra.mrb[0].mxu0 %v331
        %v2866 = vpop.f32.mrb[0].mxu0
        %v2867 = vadd.f32 %v2762, %v2866
        %v2868 = vpop.f32.mrb[0].mxu0
        %2869 = vmatprep.mubr.f32.mxu0 %v338
        %2870 = vmatmul.mubr.f32.gmra.mrb[0].mxu0 %v337
        %v2871 = vpop.f32.mrb[0].mxu0
        %v2872 = vadd.f32 %v2767, %v2871
        %v2873 = vpop.f32.mrb[0].mxu0
        %2874 = vmatprep.mubr.f32.mxu0 %v344
        %2875 = vmatmul.mubr.f32.gmra.mrb[0].mxu0 %v343
        %v2876 = vpop.f32.mrb[0].mxu0
        %v2877 = vadd.f32 %v2772, %v2876
        %v2878 = vpop.f32.mrb[0].mxu0
        %2879 = vdwg.mxu0
        %2880 = vst [vmem:[#allocation2] sm:$0xff] %v1502
        %2881 = vst [vmem:[#allocation2 + $0x8] sm:$0xff] %v1504
        %2882 = vst [vmem:[#allocation2 + $0x10] sm:$0xff] %v1841
        %2883 = vst [vmem:[#allocation2 + $0x18] sm:$0xff] %v1843
        %2884 = vst [vmem:[#allocation2 + $0x20] sm:$0xff] %v2180
        %2885 = vst [vmem:[#allocation2 + $0x28] sm:$0xff] %v2182
        %2886 = vst [vmem:[#allocation2 + $0x30] sm:$0xff] %v2519
        %2887 = vst [vmem:[#allocation2 + $0x38] sm:$0xff] %v2521
        %2888 = vst [vmem:[#allocation2 + $0x40] sm:$0xff] %v2842
        %2889 = vst [vmem:[#allocation2 + $0x48] sm:$0xff] %v1508
        %2890 = vst [vmem:[#allocation2 + $0x50] sm:$0xff] %v1510
        %2891 = vst [vmem:[#allocation2 + $0x58] sm:$0xff] %v1847
        %2892 = vst [vmem:[#allocation2 + $0x60] sm:$0xff] %v1849
        %2893 = vst [vmem:[#allocation2 + $0x68] sm:$0xff] %v2186
        %2894 = vst [vmem:[#allocation2 + $0x70] sm:$0xff] %v2188
        %2895 = vst [vmem:[#allocation2 + $0x78] sm:$0xff] %v2525
        %2896 = vst [vmem:[#allocation2 + $0x80] sm:$0xff] %v2527
        %2897 = vst [vmem:[#allocation2 + $0x88] sm:$0xff] %v2847
        %2898 = vst [vmem:[#allocation2 + $0x90] sm:$0xff] %v1514
        %2899 = vst [vmem:[#allocation2 + $0x98] sm:$0xff] %v1516
        %2900 = vst [vmem:[#allocation2 + $0xa0] sm:$0xff] %v1853
        %2901 = vst [vmem:[#allocation2 + $0xa8] sm:$0xff] %v1855
        %2902 = vst [vmem:[#allocation2 + $0xb0] sm:$0xff] %v2192
        %2903 = vst [vmem:[#allocation2 + $0xb8] sm:$0xff] %v2194
        %2904 = vst [vmem:[#allocation2 + $0xc0] sm:$0xff] %v2531
        %2905 = vst [vmem:[#allocation2 + $0xc8] sm:$0xff] %v2533
        %2906 = vst [vmem:[#allocation2 + $0xd0] sm:$0xff] %v2852
        %2907 = vst [vmem:[#allocation2 + $0xd8] sm:$0xff] %v1520
        %2908 = vst [vmem:[#allocation2 + $0xe0] sm:$0xff] %v1522
        %2909 = vst [vmem:[#allocation2 + $0xe8] sm:$0xff] %v1859
        %2910 = vst [vmem:[#allocation2 + $0xf0] sm:$0xff] %v1861
        %2911 = vst [vmem:[#allocation2 + $0xf8] sm:$0xff] %v2198
        %2912 = vst [vmem:[#allocation2 + $0x100] sm:$0xff] %v2200
        %2913 = vst [vmem:[#allocation2 + $0x108] sm:$0xff] %v2537
        %2914 = vst [vmem:[#allocation2 + $0x110] sm:$0xff] %v2539
        %2915 = vst [vmem:[#allocation2 + $0x118] sm:$0xff] %v2857
        %2916 = vst [vmem:[#allocation2 + $0x120] sm:$0xff] %v1526
        %2917 = vst [vmem:[#allocation2 + $0x128] sm:$0xff] %v1528
        %2918 = vst [vmem:[#allocation2 + $0x130] sm:$0xff] %v1865
        %2919 = vst [vmem:[#allocation2 + $0x138] sm:$0xff] %v1867
        %2920 = vst [vmem:[#allocation2 + $0x140] sm:$0xff] %v2204
        %2921 = vst [vmem:[#allocation2 + $0x148] sm:$0xff] %v2206
        %2922 = vst [vmem:[#allocation2 + $0x150] sm:$0xff] %v2543
        %2923 = vst [vmem:[#allocation2 + $0x158] sm:$0xff] %v2545
        %2924 = vst [vmem:[#allocation2 + $0x160] sm:$0xff] %v2862
        %2925 = vst [vmem:[#allocation2 + $0x168] sm:$0xff] %v1532
        %2926 = vst [vmem:[#allocation2 + $0x170] sm:$0xff] %v1534
        %2927 = vst [vmem:[#allocation2 + $0x178] sm:$0xff] %v1871
        %2928 = vst [vmem:[#allocation2 + $0x180] sm:$0xff] %v1873
        %2929 = vst [vmem:[#allocation2 + $0x188] sm:$0xff] %v2210
        %2930 = vst [vmem:[#allocation2 + $0x190] sm:$0xff] %v2212
        %2931 = vst [vmem:[#allocation2 + $0x198] sm:$0xff] %v2549
        %2932 = vst [vmem:[#allocation2 + $0x1a0] sm:$0xff] %v2551
        %2933 = vst [vmem:[#allocation2 + $0x1a8] sm:$0xff] %v2867
        %2934 = vst [vmem:[#allocation2 + $0x1b0] sm:$0xff] %v1538
        %2935 = vst [vmem:[#allocation2 + $0x1b8] sm:$0xff] %v1540
        %2936 = vst [vmem:[#allocation2 + $0x1c0] sm:$0xff] %v1877
        %2937 = vst [vmem:[#allocation2 + $0x1c8] sm:$0xff] %v1879
        %2938 = vst [vmem:[#allocation2 + $0x1d0] sm:$0xff] %v2216
        %2939 = vst [vmem:[#allocation2 + $0x1d8] sm:$0xff] %v2218
        %2940 = vst [vmem:[#allocation2 + $0x1e0] sm:$0xff] %v2555
        %2941 = vst [vmem:[#allocation2 + $0x1e8] sm:$0xff] %v2557
        %2942 = vst [vmem:[#allocation2 + $0x1f0] sm:$0xff] %v2872
        %2943 = vst [vmem:[#allocation2 + $0x1f8] sm:$0xff] %v1544
        %2944 = vst [vmem:[#allocation2 + $0x200] sm:$0xff] %v1546
        %2945 = vst [vmem:[#allocation2 + $0x208] sm:$0xff] %v1883
        %2946 = vst [vmem:[#allocation2 + $0x210] sm:$0xff] %v1885
        %2947 = vst [vmem:[#allocation2 + $0x218] sm:$0xff] %v2222
        %2948 = vst [vmem:[#allocation2 + $0x220] sm:$0xff] %v2224
        %2949 = vst [vmem:[#allocation2 + $0x228] sm:$0xff] %v2561
        %2950 = vst [vmem:[#allocation2 + $0x230] sm:$0xff] %v2563
        %2951 = vst [vmem:[#allocation2 + $0x238] sm:$0xff] %v2877
        %2952 = vst [vmem:[#allocation2 + $0x240] sm:$0xff] 0.0
        %2953 = vst [vmem:[#allocation2 + $0x248] sm:$0xff] 0.0
        %2954 = vst [vmem:[#allocation2 + $0x250] sm:$0xff] 0.0
        %2955 = vst [vmem:[#allocation2 + $0x258] sm:$0xff] 0.0
        %2956 = vst [vmem:[#allocation2 + $0x260] sm:$0xff] 0.0
        %2957 = vst [vmem:[#allocation2 + $0x268] sm:$0xff] 0.0
        %2958 = vst [vmem:[#allocation2 + $0x270] sm:$0xff] 0.0
        %2959 = vst [vmem:[#allocation2 + $0x278] sm:$0xff] 0.0
        %2960 = vst [vmem:[#allocation2 + $0x280] sm:$0xff] 0.0
        %v2961 = vld [vmem:[#allocation2] sm:$0xff]
        %v2962 = vld [vmem:[#allocation2 + $0x8] sm:$0xff]
        %v2963 = vld [vmem:[#allocation2 + $0x10] sm:$0xff]
        %v2964 = vld [vmem:[#allocation2 + $0x48] sm:$0xff]
        %v2965 = vld [vmem:[#allocation2 + $0x50] sm:$0xff]
        %v2966 = vld [vmem:[#allocation2 + $0x58] sm:$0xff]
        %v2967 = vld [vmem:[#allocation2 + $0x90] sm:$0xff]
        %v2968 = vld [vmem:[#allocation2 + $0x98] sm:$0xff]
        %v2969 = vld [vmem:[#allocation2 + $0xa0] sm:$0xff]
        %v2970 = vld [vmem:[#allocation2 + $0xd8] sm:$0xff]
        %v2971 = vld [vmem:[#allocation2 + $0xe0] sm:$0xff]
        %v2972 = vld [vmem:[#allocation2 + $0xe8] sm:$0xff]
        %v2973 = vld [vmem:[#allocation2 + $0x120] sm:$0xff]
        %v2974 = vld [vmem:[#allocation2 + $0x128] sm:$0xff]
        %v2975 = vld [vmem:[#allocation2 + $0x130] sm:$0xff]
        %v2976 = vld [vmem:[#allocation2 + $0x168] sm:$0xff]
        %v2977 = vld [vmem:[#allocation2 + $0x170] sm:$0xff]
        %v2978 = vld [vmem:[#allocation2 + $0x178] sm:$0xff]
        %v2979 = vld [vmem:[#allocation2 + $0x1b0] sm:$0xff]
        %v2980 = vld [vmem:[#allocation2 + $0x1b8] sm:$0xff]
        %v2981 = vld [vmem:[#allocation2 + $0x1c0] sm:$0xff]
        %v2982 = vld [vmem:[#allocation2 + $0x1f8] sm:$0xff]
        %v2983 = vld [vmem:[#allocation2 + $0x200] sm:$0xff]
        %v2984 = vld [vmem:[#allocation2 + $0x208] sm:$0xff]
        %v2985 = vld [vmem:[#allocation2 + $0x18] sm:$0xfe]
        %v2986 = vld [vmem:[#allocation2 + $0x20] sm:$0xfe]
        %v2987 = vld [vmem:[#allocation2 + $0x28] sm:$0xfe]
        %v2988 = vld [vmem:[#allocation2 + $0x60] sm:$0xff]
        %v2989 = vld [vmem:[#allocation2 + $0x68] sm:$0xff]
        %v2990 = vld [vmem:[#allocation2 + $0x70] sm:$0xff]
        %v2991 = vld [vmem:[#allocation2 + $0xa8] sm:$0xff]
        %v2992 = vld [vmem:[#allocation2 + $0xb0] sm:$0xff]
        %v2993 = vld [vmem:[#allocation2 + $0xb8] sm:$0xff]
        %v2994 = vld [vmem:[#allocation2 + $0xf0] sm:$0xff]
        %v2995 = vld [vmem:[#allocation2 + $0xf8] sm:$0xff]
        %v2996 = vld [vmem:[#allocation2 + $0x100] sm:$0xff]
        %v2997 = vld [vmem:[#allocation2 + $0x138] sm:$0xff]
        %v2998 = vld [vmem:[#allocation2 + $0x140] sm:$0xff]
        %v2999 = vld [vmem:[#allocation2 + $0x148] sm:$0xff]
        %v3000 = vld [vmem:[#allocation2 + $0x180] sm:$0xff]
        %v3001 = vld [vmem:[#allocation2 + $0x188] sm:$0xff]
        %v3002 = vld [vmem:[#allocation2 + $0x190] sm:$0xff]
        %v3003 = vld [vmem:[#allocation2 + $0x1c8] sm:$0xff]
        %v3004 = vld [vmem:[#allocation2 + $0x1d0] sm:$0xff]
        %v3005 = vld [vmem:[#allocation2 + $0x1d8] sm:$0xff]
        %v3006 = vld [vmem:[#allocation2 + $0x210] sm:$0xff]
        %v3007 = vld [vmem:[#allocation2 + $0x218] sm:$0xff]
        %v3008 = vld [vmem:[#allocation2 + $0x220] sm:$0xff]
        %v3009 = vld [vmem:[#allocation2 + $0x258] sm:$0x1]
        %v3010 = vld [vmem:[#allocation2 + $0x260] sm:$0x1]
        %v3011 = vld [vmem:[#allocation2 + $0x268] sm:$0x1]
        %v3012 = vld [vmem:[#allocation2 + $0x30] sm:$0xfc]
        %v3013 = vld [vmem:[#allocation2 + $0x38] sm:$0xfc]
        %v3014 = vld [vmem:[#allocation2 + $0x78] sm:$0xff]
        %v3015 = vld [vmem:[#allocation2 + $0x80] sm:$0xff]
        %v3016 = vld [vmem:[#allocation2 + $0xc0] sm:$0xff]
        %v3017 = vld [vmem:[#allocation2 + $0xc8] sm:$0xff]
        %v3018 = vld [vmem:[#allocation2 + $0x108] sm:$0xff]
        %v3019 = vld [vmem:[#allocation2 + $0x110] sm:$0xff]
        %v3020 = vld [vmem:[#allocation2 + $0x150] sm:$0xff]
        %v3021 = vld [vmem:[#allocation2 + $0x158] sm:$0xff]
        %v3022 = vld [vmem:[#allocation2 + $0x198] sm:$0xff]
        %v3023 = vld [vmem:[#allocation2 + $0x1a0] sm:$0xff]
        %v3024 = vld [vmem:[#allocation2 + $0x1e0] sm:$0xff]
        %v3025 = vld [vmem:[#allocation2 + $0x1e8] sm:$0xff]
        %v3026 = vld [vmem:[#allocation2 + $0x228] sm:$0xff]
        %v3027 = vld [vmem:[#allocation2 + $0x230] sm:$0xff]
        %v3028 = vld [vmem:[#allocation2 + $0x270] sm:$0x3]
        %v3029 = vld [vmem:[#allocation2 + $0x278] sm:$0x3]
        %v3030 = vld [vmem:[#allocation2 + $0x40] sm:$0xf8]
        %v3031 = vld [vmem:[#allocation2 + $0x88] sm:$0xff]
        %v3032 = vld [vmem:[#allocation2 + $0xd0] sm:$0xff]
        %v3033 = vld [vmem:[#allocation2 + $0x118] sm:$0xff]
        %v3034 = vld [vmem:[#allocation2 + $0x160] sm:$0xff]
        %v3035 = vld [vmem:[#allocation2 + $0x1a8] sm:$0xff]
        %v3036 = vld [vmem:[#allocation2 + $0x1f0] sm:$0xff]
        %v3037 = vld [vmem:[#allocation2 + $0x238] sm:$0xff]
        %v3038 = vld [vmem:[#allocation2 + $0x280] sm:$0x7]
        %vm3048 = vcmask 1046528
        %v3049 = vrot.slane %v2985, 1
        %v3050 = vrot.slane %v2988, 1
        %v3051 = vsel %vm3048, %v3049, %v3050
        %v3052 = vrot.slane %v2991, 1
        %v3053 = vsel %vm3048, %v3050, %v3052
        %v3054 = vrot.slane %v2994, 1
        %v3055 = vsel %vm3048, %v3052, %v3054
        %v3056 = vrot.slane %v2997, 1
        %v3057 = vsel %vm3048, %v3054, %v3056
        %v3058 = vrot.slane %v3000, 1
        %v3059 = vsel %vm3048, %v3056, %v3058
        %v3060 = vrot.slane %v3003, 1
        %v3061 = vsel %vm3048, %v3058, %v3060
        %v3062 = vrot.slane %v3006, 1
        %v3063 = vsel %vm3048, %v3060, %v3062
        %v3064 = vrot.slane %v3009, 1
        %v3065 = vsel %vm3048, %v3062, %v3064
        %v3074 = vadd.f32 %v2961, %v3051
        %v3075 = vadd.f32 %v2964, %v3053
        %v3076 = vadd.f32 %v2967, %v3055
        %v3077 = vadd.f32 %v2970, %v3057
        %v3078 = vadd.f32 %v2973, %v3059
        %v3079 = vadd.f32 %v2976, %v3061
        %v3080 = vadd.f32 %v2979, %v3063
        %v3081 = vadd.f32 %v2982, %v3065
        %v3082 = vld [vmem:[#allocation8] sm:$0x1]
        %v3084 = vlaneseq
        %v3085 = vshrl.u32 %v3084, 7
        %v3086 = vsub.s32 0, %v3085
        %v3087 = vrot.slane %v3082, %v3086
        %v3089 = vadd.f32 %v3074, %v3087
        %v3090 = vadd.f32 %v3075, %v3087
        %v3091 = vadd.f32 %v3076, %v3087
        %v3092 = vadd.f32 %v3077, %v3087
        %v3093 = vadd.f32 %v3078, %v3087
        %v3094 = vadd.f32 %v3079, %v3087
        %v3095 = vadd.f32 %v3080, %v3087
        %v3096 = vadd.f32 %v3081, %v3087
        %v3106 = vrot.slane %v2986, 1
        %v3107 = vrot.slane %v2989, 1
        %v3108 = vsel %vm3048, %v3106, %v3107
        %v3109 = vrot.slane %v2992, 1
        %v3110 = vsel %vm3048, %v3107, %v3109
        %v3111 = vrot.slane %v2995, 1
        %v3112 = vsel %vm3048, %v3109, %v3111
        %v3113 = vrot.slane %v2998, 1
        %v3114 = vsel %vm3048, %v3111, %v3113
        %v3115 = vrot.slane %v3001, 1
        %v3116 = vsel %vm3048, %v3113, %v3115
        %v3117 = vrot.slane %v3004, 1
        %v3118 = vsel %vm3048, %v3115, %v3117
        %v3119 = vrot.slane %v3007, 1
        %v3120 = vsel %vm3048, %v3117, %v3119
        %v3121 = vrot.slane %v3010, 1
        %v3122 = vsel %vm3048, %v3119, %v3121
        %v3131 = vadd.f32 %v2962, %v3108
        %v3132 = vadd.f32 %v2965, %v3110
        %v3133 = vadd.f32 %v2968, %v3112
        %v3134 = vadd.f32 %v2971, %v3114
        %v3135 = vadd.f32 %v2974, %v3116
        %v3136 = vadd.f32 %v2977, %v3118
        %v3137 = vadd.f32 %v2980, %v3120
        %v3138 = vadd.f32 %v2983, %v3122
        %vm3148 = vcmask 1045504
        %v3149 = vrot.slane %v3012, 2
        %v3150 = vrot.slane %v3014, 2
        %v3151 = vsel %vm3148, %v3149, %v3150
        %v3152 = vrot.slane %v3016, 2
        %v3153 = vsel %vm3148, %v3150, %v3152
        %v3154 = vrot.slane %v3018, 2
        %v3155 = vsel %vm3148, %v3152, %v3154
        %v3156 = vrot.slane %v3020, 2
        %v3157 = vsel %vm3148, %v3154, %v3156
        %v3158 = vrot.slane %v3022, 2
        %v3159 = vsel %vm3148, %v3156, %v3158
        %v3160 = vrot.slane %v3024, 2
        %v3161 = vsel %vm3148, %v3158, %v3160
        %v3162 = vrot.slane %v3026, 2
        %v3163 = vsel %vm3148, %v3160, %v3162
        %v3164 = vrot.slane %v3028, 2
        %v3165 = vsel %vm3148, %v3162, %v3164
        %v3174 = vadd.f32 %v3131, %v3151
        %v3175 = vadd.f32 %v3132, %v3153
        %v3176 = vadd.f32 %v3133, %v3155
        %v3177 = vadd.f32 %v3134, %v3157
        %v3178 = vadd.f32 %v3135, %v3159
        %v3179 = vadd.f32 %v3136, %v3161
        %v3180 = vadd.f32 %v3137, %v3163
        %v3181 = vadd.f32 %v3138, %v3165
        %v3182 = vld [vmem:[#allocation9] sm:$0x1]
        %v3184 = vlaneseq
        %v3185 = vshrl.u32 %v3184, 7
        %v3186 = vsub.s32 0, %v3185
        %v3187 = vrot.slane %v3182, %v3186
        %v3189 = vadd.f32 %v3174, %v3187
        %v3190 = vadd.f32 %v3175, %v3187
        %v3191 = vadd.f32 %v3176, %v3187
        %v3192 = vadd.f32 %v3177, %v3187
        %v3193 = vadd.f32 %v3178, %v3187
        %v3194 = vadd.f32 %v3179, %v3187
        %v3195 = vadd.f32 %v3180, %v3187
        %v3196 = vadd.f32 %v3181, %v3187
        %v3206 = vrot.slane %v2987, 1
        %v3207 = vrot.slane %v2990, 1
        %v3208 = vsel %vm3048, %v3206, %v3207
        %v3209 = vrot.slane %v2993, 1
        %v3210 = vsel %vm3048, %v3207, %v3209
        %v3211 = vrot.slane %v2996, 1
        %v3212 = vsel %vm3048, %v3209, %v3211
        %v3213 = vrot.slane %v2999, 1
        %v3214 = vsel %vm3048, %v3211, %v3213
        %v3215 = vrot.slane %v3002, 1
        %v3216 = vsel %vm3048, %v3213, %v3215
        %v3217 = vrot.slane %v3005, 1
        %v3218 = vsel %vm3048, %v3215, %v3217
        %v3219 = vrot.slane %v3008, 1
        %v3220 = vsel %vm3048, %v3217, %v3219
        %v3221 = vrot.slane %v3011, 1
        %v3222 = vsel %vm3048, %v3219, %v3221
        %v3231 = vadd.f32 %v2963, %v3208
        %v3232 = vadd.f32 %v2966, %v3210
        %v3233 = vadd.f32 %v2969, %v3212
        %v3234 = vadd.f32 %v2972, %v3214
        %v3235 = vadd.f32 %v2975, %v3216
        %v3236 = vadd.f32 %v2978, %v3218
        %v3237 = vadd.f32 %v2981, %v3220
        %v3238 = vadd.f32 %v2984, %v3222
        %v3248 = vrot.slane %v3013, 2
        %v3249 = vrot.slane %v3015, 2
        %v3250 = vsel %vm3148, %v3248, %v3249
        %v3251 = vrot.slane %v3017, 2
        %v3252 = vsel %vm3148, %v3249, %v3251
        %v3253 = vrot.slane %v3019, 2
        %v3254 = vsel %vm3148, %v3251, %v3253
        %v3255 = vrot.slane %v3021, 2
        %v3256 = vsel %vm3148, %v3253, %v3255
        %v3257 = vrot.slane %v3023, 2
        %v3258 = vsel %vm3148, %v3255, %v3257
        %v3259 = vrot.slane %v3025, 2
        %v3260 = vsel %vm3148, %v3257, %v3259
        %v3261 = vrot.slane %v3027, 2
        %v3262 = vsel %vm3148, %v3259, %v3261
        %v3263 = vrot.slane %v3029, 2
        %v3264 = vsel %vm3148, %v3261, %v3263
        %v3273 = vadd.f32 %v3231, %v3250
        %v3274 = vadd.f32 %v3232, %v3252
        %v3275 = vadd.f32 %v3233, %v3254
        %v3276 = vadd.f32 %v3234, %v3256
        %v3277 = vadd.f32 %v3235, %v3258
        %v3278 = vadd.f32 %v3236, %v3260
        %v3279 = vadd.f32 %v3237, %v3262
        %v3280 = vadd.f32 %v3238, %v3264
        %vm3290 = vcmask 1044480
        %v3291 = vrot.slane %v3030, 3
        %v3292 = vrot.slane %v3031, 3
        %v3293 = vsel %vm3290, %v3291, %v3292
        %v3294 = vrot.slane %v3032, 3
        %v3295 = vsel %vm3290, %v3292, %v3294
        %v3296 = vrot.slane %v3033, 3
        %v3297 = vsel %vm3290, %v3294, %v3296
        %v3298 = vrot.slane %v3034, 3
        %v3299 = vsel %vm3290, %v3296, %v3298
        %v3300 = vrot.slane %v3035, 3
        %v3301 = vsel %vm3290, %v3298, %v3300
        %v3302 = vrot.slane %v3036, 3
        %v3303 = vsel %vm3290, %v3300, %v3302
        %v3304 = vrot.slane %v3037, 3
        %v3305 = vsel %vm3290, %v3302, %v3304
        %v3306 = vrot.slane %v3038, 3
        %v3307 = vsel %vm3290, %v3304, %v3306
        %v3316 = vadd.f32 %v3273, %v3293
        %v3317 = vadd.f32 %v3274, %v3295
        %v3318 = vadd.f32 %v3275, %v3297
        %v3319 = vadd.f32 %v3276, %v3299
        %v3320 = vadd.f32 %v3277, %v3301
        %v3321 = vadd.f32 %v3278, %v3303
        %v3322 = vadd.f32 %v3279, %v3305
        %v3323 = vadd.f32 %v3280, %v3307
        %v3324 = vld [vmem:[#allocation11] sm:$0x1]
        %v3326 = vlaneseq
        %v3327 = vshrl.u32 %v3326, 7
        %v3328 = vsub.s32 0, %v3327
        %v3329 = vrot.slane %v3324, %v3328
        %v3331 = vadd.f32 %v3316, %v3329
        %v3332 = vadd.f32 %v3317, %v3329
        %v3333 = vadd.f32 %v3318, %v3329
        %v3334 = vadd.f32 %v3319, %v3329
        %v3335 = vadd.f32 %v3320, %v3329
        %v3336 = vadd.f32 %v3321, %v3329
        %v3337 = vadd.f32 %v3322, %v3329
        %v3338 = vadd.f32 %v3323, %v3329
        %v3339 = vlaneseq
        %v3340 = vshrl.u32 %v3339, 7
        %vm3341 = vcmp.ge.f32.partialorder %v3089, 0.0
        %vm3342 = vcmp.ge.f32.partialorder %v3090, 0.0
        %vm3343 = vcmp.ge.f32.partialorder %v3091, 0.0
        %vm3344 = vcmp.ge.f32.partialorder %v3092, 0.0
        %vm3345 = vcmp.ge.f32.partialorder %v3093, 0.0
        %vm3346 = vcmp.ge.f32.partialorder %v3094, 0.0
        %vm3347 = vcmp.ge.f32.partialorder %v3095, 0.0
        %vm3348 = vcmp.ge.f32.partialorder %v3096, 0.0
        %v3349 = vmul.f32 %v3089, 0.01
        %v3350 = vmul.f32 %v3090, 0.01
        %v3351 = vmul.f32 %v3091, 0.01
        %v3352 = vmul.f32 %v3092, 0.01
        %v3353 = vmul.f32 %v3093, 0.01
        %v3354 = vmul.f32 %v3094, 0.01
        %v3355 = vmul.f32 %v3095, 0.01
        %v3356 = vmul.f32 %v3096, 0.01
        %v3357 = vsel %vm3341, %v3089, %v3349
        %v3358 = vsel %vm3342, %v3090, %v3350
        %v3359 = vsel %vm3343, %v3091, %v3351
        %v3360 = vsel %vm3344, %v3092, %v3352
        %v3361 = vsel %vm3345, %v3093, %v3353
        %v3362 = vsel %vm3346, %v3094, %v3354
        %v3363 = vsel %vm3347, %v3095, %v3355
        %v3364 = vsel %vm3348, %v3096, %v3356
        %vm3365 = vcmp.lt.s32.totalorder %v3340, 7
        %v3366 = vsel %vm3365, 1, 0
        %vm3367 = vcmp.eq.s32.totalorder %v3366, 1
        %v3368 = vsel %vm3367, %v3357, -inf
        %v3369 = vsel %vm3367, %v3358, -inf
        %v3370 = vsel %vm3367, %v3359, -inf
        %v3371 = vsel %vm3367, %v3360, -inf
        %v3372 = vsel %vm3367, %v3361, -inf
        %v3373 = vsel %vm3367, %v3362, -inf
        %v3374 = vsel %vm3367, %v3363, -inf
        %v3375 = vsel %vm3367, %v3364, -inf
        %v3376 = vrot.slane %v3368, 4
        %v3377 = vmax.f32 %v3368, %v3376
        %v3378 = vrot.slane %v3377, 2
        %v3379 = vmax.f32 %v3377, %v3378
        %v3380 = vrot.slane %v3379, 1
        %v3381 = vmax.f32 %v3379, %v3380
        %v3382 = vrot.slane %v3369, 4
        %v3383 = vmax.f32 %v3369, %v3382
        %v3384 = vrot.slane %v3383, 2
        %v3385 = vmax.f32 %v3383, %v3384
        %v3386 = vrot.slane %v3385, 1
        %v3387 = vmax.f32 %v3385, %v3386
        %v3388 = vrot.slane %v3370, 4
        %v3389 = vmax.f32 %v3370, %v3388
        %v3390 = vrot.slane %v3389, 2
        %v3391 = vmax.f32 %v3389, %v3390
        %v3392 = vrot.slane %v3391, 1
        %v3393 = vmax.f32 %v3391, %v3392
        %v3394 = vrot.slane %v3371, 4
        %v3395 = vmax.f32 %v3371, %v3394
        %v3396 = vrot.slane %v3395, 2
        %v3397 = vmax.f32 %v3395, %v3396
        %v3398 = vrot.slane %v3397, 1
        %v3399 = vmax.f32 %v3397, %v3398
        %v3400 = vrot.slane %v3372, 4
        %v3401 = vmax.f32 %v3372, %v3400
        %v3402 = vrot.slane %v3401, 2
        %v3403 = vmax.f32 %v3401, %v3402
        %v3404 = vrot.slane %v3403, 1
        %v3405 = vmax.f32 %v3403, %v3404
        %v3406 = vrot.slane %v3373, 4
        %v3407 = vmax.f32 %v3373, %v3406
        %v3408 = vrot.slane %v3407, 2
        %v3409 = vmax.f32 %v3407, %v3408
        %v3410 = vrot.slane %v3409, 1
        %v3411 = vmax.f32 %v3409, %v3410
        %v3412 = vrot.slane %v3374, 4
        %v3413 = vmax.f32 %v3374, %v3412
        %v3414 = vrot.slane %v3413, 2
        %v3415 = vmax.f32 %v3413, %v3414
        %v3416 = vrot.slane %v3415, 1
        %v3417 = vmax.f32 %v3415, %v3416
        %v3418 = vrot.slane %v3375, 4
        %v3419 = vmax.f32 %v3375, %v3418
        %v3420 = vrot.slane %v3419, 2
        %v3421 = vmax.f32 %v3419, %v3420
        %v3422 = vrot.slane %v3421, 1
        %v3423 = vmax.f32 %v3421, %v3422
        %vm3432 = vcmask 1041409
        %v3433 = vsel %vm3432, %v3387, %v3381
        %vm3434 = vcmask 1042434
        %v3435 = vsel %vm3434, %v3393, %v3433
        %vm3436 = vcmask 1043459
        %v3437 = vsel %vm3436, %v3399, %v3435
        %vm3438 = vcmask 1044484
        %v3439 = vsel %vm3438, %v3405, %v3437
        %vm3440 = vcmask 1045509
        %v3441 = vsel %vm3440, %v3411, %v3439
        %vm3442 = vcmask 1046534
        %v3443 = vsel %vm3442, %v3417, %v3441
        %vm3444 = vcmask 1047559
        %v3445 = vsel %vm3444, %v3423, %v3443
        %3447 = vst [vmem:[%s295] sm:$0xff] %v3445
        %vm3448 = vcmp.ge.f32.partialorder %v3189, 0.0
        %vm3449 = vcmp.ge.f32.partialorder %v3190, 0.0
        %vm3450 = vcmp.ge.f32.partialorder %v3191, 0.0
        %vm3451 = vcmp.ge.f32.partialorder %v3192, 0.0
        %vm3452 = vcmp.ge.f32.partialorder %v3193, 0.0
        %vm3453 = vcmp.ge.f32.partialorder %v3194, 0.0
        %vm3454 = vcmp.ge.f32.partialorder %v3195, 0.0
        %vm3455 = vcmp.ge.f32.partialorder %v3196, 0.0
        %v3456 = vmul.f32 %v3189, 0.01
        %v3457 = vmul.f32 %v3190, 0.01
        %v3458 = vmul.f32 %v3191, 0.01
        %v3459 = vmul.f32 %v3192, 0.01
        %v3460 = vmul.f32 %v3193, 0.01
        %v3461 = vmul.f32 %v3194, 0.01
        %v3462 = vmul.f32 %v3195, 0.01
        %v3463 = vmul.f32 %v3196, 0.01
        %v3464 = vsel %vm3448, %v3189, %v3456
        %v3465 = vsel %vm3449, %v3190, %v3457
        %v3466 = vsel %vm3450, %v3191, %v3458
        %v3467 = vsel %vm3451, %v3192, %v3459
        %v3468 = vsel %vm3452, %v3193, %v3460
        %v3469 = vsel %vm3453, %v3194, %v3461
        %v3470 = vsel %vm3454, %v3195, %v3462
        %v3471 = vsel %vm3455, %v3196, %v3463
        %vm3472 = vcmp.lt.s32.totalorder %v3340, 6
        %v3473 = vsel %vm3472, 1, 0
        %vm3474 = vcmp.eq.s32.totalorder %v3473, 1
        %v3475 = vsel %vm3474, %v3464, -inf
        %v3476 = vsel %vm3474, %v3465, -inf
        %v3477 = vsel %vm3474, %v3466, -inf
        %v3478 = vsel %vm3474, %v3467, -inf
        %v3479 = vsel %vm3474, %v3468, -inf
        %v3480 = vsel %vm3474, %v3469, -inf
        %v3481 = vsel %vm3474, %v3470, -inf
        %v3482 = vsel %vm3474, %v3471, -inf
        %v3483 = vrot.slane %v3475, 4
        %v3484 = vmax.f32 %v3475, %v3483
        %v3485 = vrot.slane %v3484, 2
        %v3486 = vmax.f32 %v3484, %v3485
        %v3487 = vrot.slane %v3486, 1
        %v3488 = vmax.f32 %v3486, %v3487
        %v3489 = vrot.slane %v3476, 4
        %v3490 = vmax.f32 %v3476, %v3489
        %v3491 = vrot.slane %v3490, 2
        %v3492 = vmax.f32 %v3490, %v3491
        %v3493 = vrot.slane %v3492, 1
        %v3494 = vmax.f32 %v3492, %v3493
        %v3495 = vrot.slane %v3477, 4
        %v3496 = vmax.f32 %v3477, %v3495
        %v3497 = vrot.slane %v3496, 2
        %v3498 = vmax.f32 %v3496, %v3497
        %v3499 = vrot.slane %v3498, 1
        %v3500 = vmax.f32 %v3498, %v3499
        %v3501 = vrot.slane %v3478, 4
        %v3502 = vmax.f32 %v3478, %v3501
        %v3503 = vrot.slane %v3502, 2
        %v3504 = vmax.f32 %v3502, %v3503
        %v3505 = vrot.slane %v3504, 1
        %v3506 = vmax.f32 %v3504, %v3505
        %v3507 = vrot.slane %v3479, 4
        %v3508 = vmax.f32 %v3479, %v3507
        %v3509 = vrot.slane %v3508, 2
        %v3510 = vmax.f32 %v3508, %v3509
        %v3511 = vrot.slane %v3510, 1
        %v3512 = vmax.f32 %v3510, %v3511
        %v3513 = vrot.slane %v3480, 4
        %v3514 = vmax.f32 %v3480, %v3513
        %v3515 = vrot.slane %v3514, 2
        %v3516 = vmax.f32 %v3514, %v3515
        %v3517 = vrot.slane %v3516, 1
        %v3518 = vmax.f32 %v3516, %v3517
        %v3519 = vrot.slane %v3481, 4
        %v3520 = vmax.f32 %v3481, %v3519
        %v3521 = vrot.slane %v3520, 2
        %v3522 = vmax.f32 %v3520, %v3521
        %v3523 = vrot.slane %v3522, 1
        %v3524 = vmax.f32 %v3522, %v3523
        %v3525 = vrot.slane %v3482, 4
        %v3526 = vmax.f32 %v3482, %v3525
        %v3527 = vrot.slane %v3526, 2
        %v3528 = vmax.f32 %v3526, %v3527
        %v3529 = vrot.slane %v3528, 1
        %v3530 = vmax.f32 %v3528, %v3529
        %v3539 = vsel %vm3432, %v3494, %v3488
        %v3540 = vsel %vm3434, %v3500, %v3539
        %v3541 = vsel %vm3436, %v3506, %v3540
        %v3542 = vsel %vm3438, %v3512, %v3541
        %v3543 = vsel %vm3440, %v3518, %v3542
        %v3544 = vsel %vm3442, %v3524, %v3543
        %v3545 = vsel %vm3444, %v3530, %v3544
        %3547 = vst [vmem:[%s295 + $0x8] sm:$0xff] %v3545
        %vm3548 = vcmp.ge.f32.partialorder %v3331, 0.0
        %vm3549 = vcmp.ge.f32.partialorder %v3332, 0.0
        %vm3550 = vcmp.ge.f32.partialorder %v3333, 0.0
        %vm3551 = vcmp.ge.f32.partialorder %v3334, 0.0
        %vm3552 = vcmp.ge.f32.partialorder %v3335, 0.0
        %vm3553 = vcmp.ge.f32.partialorder %v3336, 0.0
        %vm3554 = vcmp.ge.f32.partialorder %v3337, 0.0
        %vm3555 = vcmp.ge.f32.partialorder %v3338, 0.0
        %v3556 = vmul.f32 %v3331, 0.01
        %v3557 = vmul.f32 %v3332, 0.01
        %v3558 = vmul.f32 %v3333, 0.01
        %v3559 = vmul.f32 %v3334, 0.01
        %v3560 = vmul.f32 %v3335, 0.01
        %v3561 = vmul.f32 %v3336, 0.01
        %v3562 = vmul.f32 %v3337, 0.01
        %v3563 = vmul.f32 %v3338, 0.01
        %v3564 = vsel %vm3548, %v3331, %v3556
        %v3565 = vsel %vm3549, %v3332, %v3557
        %v3566 = vsel %vm3550, %v3333, %v3558
        %v3567 = vsel %vm3551, %v3334, %v3559
        %v3568 = vsel %vm3552, %v3335, %v3560
        %v3569 = vsel %vm3553, %v3336, %v3561
        %v3570 = vsel %vm3554, %v3337, %v3562
        %v3571 = vsel %vm3555, %v3338, %v3563
        %vm3572 = vcmp.lt.s32.totalorder %v3340, 5
        %v3573 = vsel %vm3572, 1, 0
        %vm3574 = vcmp.eq.s32.totalorder %v3573, 1
        %v3575 = vsel %vm3574, %v3564, -inf
        %v3576 = vsel %vm3574, %v3565, -inf
        %v3577 = vsel %vm3574, %v3566, -inf
        %v3578 = vsel %vm3574, %v3567, -inf
        %v3579 = vsel %vm3574, %v3568, -inf
        %v3580 = vsel %vm3574, %v3569, -inf
        %v3581 = vsel %vm3574, %v3570, -inf
        %v3582 = vsel %vm3574, %v3571, -inf
        %v3583 = vrot.slane %v3575, 4
        %v3584 = vmax.f32 %v3575, %v3583
        %v3585 = vrot.slane %v3584, 2
        %v3586 = vmax.f32 %v3584, %v3585
        %v3587 = vrot.slane %v3586, 1
        %v3588 = vmax.f32 %v3586, %v3587
        %v3589 = vrot.slane %v3576, 4
        %v3590 = vmax.f32 %v3576, %v3589
        %v3591 = vrot.slane %v3590, 2
        %v3592 = vmax.f32 %v3590, %v3591
        %v3593 = vrot.slane %v3592, 1
        %v3594 = vmax.f32 %v3592, %v3593
        %v3595 = vrot.slane %v3577, 4
        %v3596 = vmax.f32 %v3577, %v3595
        %v3597 = vrot.slane %v3596, 2
        %v3598 = vmax.f32 %v3596, %v3597
        %v3599 = vrot.slane %v3598, 1
        %v3600 = vmax.f32 %v3598, %v3599
        %v3601 = vrot.slane %v3578, 4
        %v3602 = vmax.f32 %v3578, %v3601
        %v3603 = vrot.slane %v3602, 2
        %v3604 = vmax.f32 %v3602, %v3603
        %v3605 = vrot.slane %v3604, 1
        %v3606 = vmax.f32 %v3604, %v3605
        %v3607 = vrot.slane %v3579, 4
        %v3608 = vmax.f32 %v3579, %v3607
        %v3609 = vrot.slane %v3608, 2
        %v3610 = vmax.f32 %v3608, %v3609
        %v3611 = vrot.slane %v3610, 1
        %v3612 = vmax.f32 %v3610, %v3611
        %v3613 = vrot.slane %v3580, 4
        %v3614 = vmax.f32 %v3580, %v3613
        %v3615 = vrot.slane %v3614, 2
        %v3616 = vmax.f32 %v3614, %v3615
        %v3617 = vrot.slane %v3616, 1
        %v3618 = vmax.f32 %v3616, %v3617
        %v3619 = vrot.slane %v3581, 4
        %v3620 = vmax.f32 %v3581, %v3619
        %v3621 = vrot.slane %v3620, 2
        %v3622 = vmax.f32 %v3620, %v3621
        %v3623 = vrot.slane %v3622, 1
        %v3624 = vmax.f32 %v3622, %v3623
        %v3625 = vrot.slane %v3582, 4
        %v3626 = vmax.f32 %v3582, %v3625
        %v3627 = vrot.slane %v3626, 2
        %v3628 = vmax.f32 %v3626, %v3627
        %v3629 = vrot.slane %v3628, 1
        %v3630 = vmax.f32 %v3628, %v3629
        %v3639 = vsel %vm3432, %v3594, %v3588
        %v3640 = vsel %vm3434, %v3600, %v3639
        %v3641 = vsel %vm3436, %v3606, %v3640
        %v3642 = vsel %vm3438, %v3612, %v3641
        %v3643 = vsel %vm3440, %v3618, %v3642
        %v3644 = vsel %vm3442, %v3624, %v3643
        %v3645 = vsel %vm3444, %v3630, %v3644
        %3647 = vst [vmem:[%s295 + $0x10] sm:$0xff] %v3645
        %s3648 = sand.u32 %s142, 1
        %s3649 = scalar_lea.sflag [#allocation5], %s3648
        %s3650 = sand.u32 %s142, 1
        %s3651 = smul.addr %s3650, 24
        %s3652 = scalar_lea.vmem [#allocation12], %s3651
        // Predicated region
        $region61: #{tpu_custom_call.1} parent=39 // pred_check
          %p3653 = pneg %p152
        $region62: #{tpu_custom_call.1} parent=39 // pred_check_branch
          %3655 = sbr.rel (%p3653) target = $region64
        $region63: #{tpu_custom_call.1} parent=39 // pred_region
          %s3657 = ssub.s32 384, 384
          %3658 = vsyncadd %s3649, %s3657
          %s3659 = smul.addr %s24, 3
          %s3660 = smul.addr %s3659, 128
          %s3661 = scalar_lea.hbm %s5, %s3660
          %s3663 = sshll.u32 %s3652, 4
          %s3664 = int_to_ptr.vmem [resolvable:$true] %s3663
          %3666 = dma.vmem_to_hbm [thread:$0]  %s3664, 384, %s3661, %s3649
        $region64: #{tpu_custom_call.1} parent=39 // pred_fallthru
          _
      $region40: #{tpu_custom_call.1} parent=5 // pred_fallthru
        _
      %p3667 = scmp.le.s32.totalorder 2, %s19
      // Predicated region
      $region65: #{tpu_custom_call.1} parent=5 // pred_check
        %p3668 = pneg %p3667
      $region66: #{tpu_custom_call.1} parent=5 // pred_check_branch
        %3670 = sbr.rel (%p3668) target = $region68
      $region67: #{tpu_custom_call.1} parent=5 // pred_region
        %s3671 = ssub.s32 %s19, 2
        // Predicated region
        $region69: #{tpu_custom_call.1} parent=67 // pred_check
          %p3672 = pneg %p158
        $region70: #{tpu_custom_call.1} parent=67 // pred_check_branch
          %3674 = sbr.rel (%p3672) target = $region72
        $region71: #{tpu_custom_call.1} parent=67 // pred_region
          %s3675 = sand.u32 %s143, 1
          %s3676 = scalar_lea.sflag [#allocation5], %s3675
          %s3677 = sand.u32 %s143, 1
          %s3678 = smul.addr %s3677, 24
          %s3679 = scalar_lea.vmem [#allocation12], %s3678
          %3680 = dma.done %s3676, 384
        $region72: #{tpu_custom_call.1} parent=67 // pred_fallthru
          _
      $region68: #{tpu_custom_call.1} parent=5 // pred_fallthru
        _
    $region6: #{tpu_custom_call.1} parent=1 // loop_footer
      %s23 = sadd.s32 1, %s19
    $region7: #{tpu_custom_call.1} parent=1 // loop_footer_branch
      %18 = sbr.rel target = $region3
    $region8: #{tpu_custom_call.1} parent=1 // loop_exit
      _
    %3681 = vsyncpa [#allocation4], 1
    %s3682 = scalar_lea.sflag [#allocation4], 1
    %3683 = vsyncpa %s3682, 1
    %3684 = vsyncpa [#allocation7], 1
    %3685 = vsyncpa [#allocation10], 1
    %3686 = vsyncpa [#allocation5], 1
    %s3687 = scalar_lea.sflag [#allocation5], 1
    %3688 = vsyncpa %s3687, 1

</llo_original>
